<compile_context>
chip_gen: v5e
topology: v5e:2x2
jax: 0.10.0
libtpu: 0.0.40
codegen_flags: <defaults>
</compile_context>

<pallas_src>
import functools

import jax
import jax.numpy as jnp
from jax.experimental import pallas as pl
from jax.experimental.pallas import tpu as pltpu


# ----------------------------------------------------------------------------
# Kernel: fused ResidualBlock for one batch image
# ----------------------------------------------------------------------------
def _residual_block_kernel(xp_ref, w1_ref, w2_ref, o_ref, *, H, W, C):
    """xp_ref: (1, H+2, W+2, C)  zero-padded NHWC input image (f32)
       w1_ref: (9*C, C)          conv1 weight, rows ordered (ky, kx, ci)
       w2_ref: (9*C, C)          conv2 weight, same ordering
       o_ref : (1, H*W, C)       output (NHWC flattened over space, f32)
    """
    HW = H * W
    mm_dtype = w1_ref.dtype          # f32 by default; bf16 if wrapper casts
    xp = xp_ref[0]                   # (H+2, W+2, C)

    def im2col(padded):
        # (H+2, W+2, C) -> (H*W, 9*C); built from in-VMEM values only,
        # so the 9x "amplification" never hits HBM.
        taps = [padded[ky:ky + H, kx:kx + W, :]
                for ky in range(3) for kx in range(3)]
        return jnp.concatenate(taps, axis=-1).reshape(HW, 9 * C)

    # conv1 + ReLU : single MXU matmul, K = 9*C, f32 accumulate
    h = jnp.dot(im2col(xp).astype(mm_dtype), w1_ref[...],
                preferred_element_type=jnp.float32)
    h = jnp.maximum(h, 0.0)                                   # (HW, C) f32

    # zero-pad the intermediate in registers (no scratch, no HBM round trip)
    hp = h.reshape(H, W, C)
    zr = jnp.zeros((1, W, C), jnp.float32)
    zc = jnp.zeros((H + 2, 1, C), jnp.float32)
    hp = jnp.concatenate([zr, hp, zr], axis=0)                # (H+2, W,   C)
    hp = jnp.concatenate([zc, hp, zc], axis=1)                # (H+2, W+2, C)

    # conv2 + residual add + ReLU, fused epilogue
    y = jnp.dot(im2col(hp).astype(mm_dtype), w2_ref[...],
                preferred_element_type=jnp.float32)           # (HW, C)
    res = xp[1:1 + H, 1:1 + W, :].reshape(HW, C).astype(jnp.float32)
    o_ref[0] = jnp.maximum(y + res, 0.0)


# ----------------------------------------------------------------------------
# Wrapper: PyTorch NCHW / OIHW boundary, NHWC (channels-on-lanes) inside
# ----------------------------------------------------------------------------
def residual_block(x_nchw, w1_oihw, w2_oihw, *, matmul_dtype=jnp.float32):
    """Forward pass of ResidualBlock(in_channels=C, features=C).

    x_nchw : (N, C, H, W) f32
    w1/w2  : (C, C, 3, 3) f32  (PyTorch OIHW, bias=False)
    returns: (N, C, H, W) f32
    """
    N, C, H, W = x_nchw.shape
    F = w1_oihw.shape[0]
    assert w1_oihw.shape == (F, C, 3, 3) and w2_oihw.shape == (F, F, 3, 3)
    # The reference `out += residual` only type-checks when in_channels == features.
    assert F == C, "ResidualBlock's residual add requires in_channels == features"
    HW = H * W

    # Cheap layout glue: NCHW -> NHWC (channels on the 128-lane axis),
    # zero-pad the spatial dims ONCE; no im2col is materialized in HBM.
    x = jnp.transpose(x_nchw, (0, 2, 3, 1)).astype(jnp.float32)
    xp = jnp.pad(x, ((0, 0), (1, 1), (1, 1), (0, 0)))          # (N, H+2, W+2, C)
    # OIHW -> (ky, kx, ci, co) -> (9*C, C): rows ordered exactly like the
    # in-kernel im2col taps ((ky, kx) major, ci minor).
    w1 = jnp.transpose(w1_oihw, (2, 3, 1, 0)).reshape(9 * C, C).astype(matmul_dtype)
    w2 = jnp.transpose(w2_oihw, (2, 3, 1, 0)).reshape(9 * C, C).astype(matmul_dtype)
    # TODO(synk): pass matmul_dtype=jnp.bfloat16 on v6e/v7x to use the
    # bf16-native MXU and halve weight DMA; accumulation stays f32 in-kernel.

    kernel = functools.partial(_residual_block_kernel, H=H, W=W, C=C)
    out = pl.pallas_call(
        kernel,
        out_shape=jax.ShapeDtypeStruct((N, HW, C), jnp.float32),
        grid=(N,),
        in_specs=[
            pl.BlockSpec((1, H + 2, W + 2, C), lambda n: (n, 0, 0, 0)),
            pl.BlockSpec((9 * C, C), lambda n: (0, 0)),
            pl.BlockSpec((9 * C, C), lambda n: (0, 0)),
        ],
        out_specs=pl.BlockSpec((1, HW, C), lambda n: (n, 0, 0)),
        compiler_params=pltpu.CompilerParams(
            # v7x: batch sharded across the 2 TensorCores; serial loop elsewhere.
            dimension_semantics=("parallel",)),
    )(xp, w1, w2)

    return jnp.transpose(out.reshape(N, H, W, C), (0, 3, 1, 2))   # back to NCHW


# ----------------------------------------------------------------------------
# Pure-JAX reference (mirrors the PyTorch module exactly)
# ----------------------------------------------------------------------------
def _reference(x_nchw, w1, w2):
    dn = jax.lax.conv_dimension_numbers(x_nchw.shape, w1.shape,
                                        ('NCHW', 'OIHW', 'NCHW'))
    conv = lambda x, w: jax.lax.conv_general_dilated(
        x, w, window_strides=(1, 1), padding=((1, 1), (1, 1)),
        dimension_numbers=dn, precision=jax.lax.Precision.HIGHEST)
    out = jax.nn.relu(conv(x_nchw, w1))
    out = conv(out, w2) + x_nchw
    return jax.nn.relu(out)


# ----------------------------------------------------------------------------
if __name__ == "__main__":
    key = jax.random.PRNGKey(0)
    kx, k1, k2 = jax.random.split(key, 3)

    # Small shapes; C = 128 so the channel dim exactly fills the 128-lane axis
    # (lane-dense loads and stores), and in_channels == features as required
    # by the residual add in the reference module.
    N, C, H, W = 2, 128, 16, 16
    fan = 9 * C
    x = jax.random.normal(kx, (N, C, H, W), jnp.float32)
    w1 = jax.random.normal(k1, (C, C, 3, 3), jnp.float32) / jnp.sqrt(float(fan))
    w2 = jax.random.normal(k2, (C, C, 3, 3), jnp.float32) / jnp.sqrt(float(fan))

    fwd = jax.jit(residual_block)
    out = fwd(x, w1, w2)
    jax.block_until_ready(out)

    assert out.shape == (N, C, H, W), out.shape
    assert bool(jnp.all(jnp.isfinite(out)))
    assert bool(jnp.all(out >= 0.0))               # ReLU output

    ref = _reference(x, w1, w2)
    max_err = float(jnp.max(jnp.abs(out - ref)))
    assert max_err < 2e-2, f"max abs error vs reference: {max_err}"

    print("KERNEL_OK")
</pallas_src>

<mosaic_0001>
module attributes {stable_mosaic.version = 11 : i64} {
  func.func @_residual_block_kernel(%arg0: i32, %arg1: memref<1x18x18x128xf32, #tpu.memory_space<vmem>>, %arg2: memref<1152x128xf32, #tpu.memory_space<vmem>>, %arg3: memref<1152x128xf32, #tpu.memory_space<vmem>>, %arg4: memref<1x256x128xf32, #tpu.memory_space<vmem>>) attributes {dimension_semantics = [#tpu.dimension_semantics<parallel>], iteration_bounds = array<i64: 2>, scalar_prefetch = 0 : i64, scratch_operands = 0 : i64, tpu.core_type = #tpu.core_type<tc>, window_params = [{transform_indices = @transform_0, window_bounds = array<i64: 1, 18, 18, 128>}, {pipeline_mode = #tpu.pipeline_mode<synchronous>, transform_indices = @transform_1, window_bounds = array<i64: 1152, 128>}, {pipeline_mode = #tpu.pipeline_mode<synchronous>, transform_indices = @transform_2, window_bounds = array<i64: 1152, 128>}, {transform_indices = @transform_3, window_bounds = array<i64: 1, 256, 128>}]} {
    %c0 = arith.constant 0 : index
    %c0_0 = arith.constant 0 : index
    %c0_1 = arith.constant 0 : index
    %c0_2 = arith.constant 0 : index
    %0 = vector.load %arg1[%c0, %c0_0, %c0_1, %c0_2] : memref<1x18x18x128xf32, #tpu.memory_space<vmem>>, vector<1x18x18x128xf32>
    %1 = vector.shape_cast %0 : vector<1x18x18x128xf32> to vector<18x18x128xf32>
    %2 = vector.extract_strided_slice %1 {offsets = [0, 0, 0], sizes = [16, 16, 128], strides = [1, 1, 1]} : vector<18x18x128xf32> to vector<16x16x128xf32>
    %3 = vector.extract_strided_slice %1 {offsets = [0, 1, 0], sizes = [16, 16, 128], strides = [1, 1, 1]} : vector<18x18x128xf32> to vector<16x16x128xf32>
    %4 = vector.extract_strided_slice %1 {offsets = [0, 2, 0], sizes = [16, 16, 128], strides = [1, 1, 1]} : vector<18x18x128xf32> to vector<16x16x128xf32>
    %5 = vector.extract_strided_slice %1 {offsets = [1, 0, 0], sizes = [16, 16, 128], strides = [1, 1, 1]} : vector<18x18x128xf32> to vector<16x16x128xf32>
    %6 = vector.extract_strided_slice %1 {offsets = [1, 1, 0], sizes = [16, 16, 128], strides = [1, 1, 1]} : vector<18x18x128xf32> to vector<16x16x128xf32>
    %7 = vector.extract_strided_slice %1 {offsets = [1, 2, 0], sizes = [16, 16, 128], strides = [1, 1, 1]} : vector<18x18x128xf32> to vector<16x16x128xf32>
    %8 = vector.extract_strided_slice %1 {offsets = [2, 0, 0], sizes = [16, 16, 128], strides = [1, 1, 1]} : vector<18x18x128xf32> to vector<16x16x128xf32>
    %9 = vector.extract_strided_slice %1 {offsets = [2, 1, 0], sizes = [16, 16, 128], strides = [1, 1, 1]} : vector<18x18x128xf32> to vector<16x16x128xf32>
    %10 = vector.extract_strided_slice %1 {offsets = [2, 2, 0], sizes = [16, 16, 128], strides = [1, 1, 1]} : vector<18x18x128xf32> to vector<16x16x128xf32>
    %11 = tpu.concatenate %2, %3, %4, %5, %6, %7, %8, %9, %10 in 2 : vector<16x16x128xf32>, vector<16x16x128xf32>, vector<16x16x128xf32>, vector<16x16x128xf32>, vector<16x16x128xf32>, vector<16x16x128xf32>, vector<16x16x128xf32>, vector<16x16x128xf32>, vector<16x16x128xf32> -> vector<16x16x1152xf32>
    %12 = vector.shape_cast %11 : vector<16x16x1152xf32> to vector<256x1152xf32>
    %c0_3 = arith.constant 0 : index
    %c0_4 = arith.constant 0 : index
    %13 = vector.load %arg2[%c0_3, %c0_4] : memref<1152x128xf32, #tpu.memory_space<vmem>>, vector<1152x128xf32>
    %cst = arith.constant dense<0.000000e+00> : vector<256x128xf32>
    %14 = tpu.matmul %12, %13, %cst {dimension_numbers = #tpu.dot_dimension_numbers<[1], [0], [0], [1], [0, 0, 1, 1], [], []>} : vector<256x1152xf32>, vector<1152x128xf32>, vector<256x128xf32> -> vector<256x128xf32>
    %cst_5 = arith.constant 0.000000e+00 : f32
    %15 = vector.broadcast %cst_5 : f32 to vector<256x128xf32>
    %16 = arith.maximumf %14, %15 : vector<256x128xf32>
    %17 = vector.shape_cast %16 : vector<256x128xf32> to vector<16x16x128xf32>
    %cst_6 = arith.constant 0.000000e+00 : f32
    %18 = vector.broadcast %cst_6 : f32 to vector<1x16x128xf32>
    %cst_7 = arith.constant 0.000000e+00 : f32
    %19 = vector.broadcast %cst_7 : f32 to vector<18x1x128xf32>
    %20 = tpu.concatenate %18, %17, %18 in 0 : vector<1x16x128xf32>, vector<16x16x128xf32>, vector<1x16x128xf32> -> vector<18x16x128xf32>
    %21 = tpu.concatenate %19, %20, %19 in 1 : vector<18x1x128xf32>, vector<18x16x128xf32>, vector<18x1x128xf32> -> vector<18x18x128xf32>
    %22 = vector.extract_strided_slice %21 {offsets = [0, 0, 0], sizes = [16, 16, 128], strides = [1, 1, 1]} : vector<18x18x128xf32> to vector<16x16x128xf32>
    %23 = vector.extract_strided_slice %21 {offsets = [0, 1, 0], sizes = [16, 16, 128], strides = [1, 1, 1]} : vector<18x18x128xf32> to vector<16x16x128xf32>
    %24 = vector.extract_strided_slice %21 {offsets = [0, 2, 0], sizes = [16, 16, 128], strides = [1, 1, 1]} : vector<18x18x128xf32> to vector<16x16x128xf32>
    %25 = vector.extract_strided_slice %21 {offsets = [1, 0, 0], sizes = [16, 16, 128], strides = [1, 1, 1]} : vector<18x18x128xf32> to vector<16x16x128xf32>
    %26 = vector.extract_strided_slice %21 {offsets = [1, 1, 0], sizes = [16, 16, 128], strides = [1, 1, 1]} : vector<18x18x128xf32> to vector<16x16x128xf32>
    %27 = vector.extract_strided_slice %21 {offsets = [1, 2, 0], sizes = [16, 16, 128], strides = [1, 1, 1]} : vector<18x18x128xf32> to vector<16x16x128xf32>
    %28 = vector.extract_strided_slice %21 {offsets = [2, 0, 0], sizes = [16, 16, 128], strides = [1, 1, 1]} : vector<18x18x128xf32> to vector<16x16x128xf32>
    %29 = vector.extract_strided_slice %21 {offsets = [2, 1, 0], sizes = [16, 16, 128], strides = [1, 1, 1]} : vector<18x18x128xf32> to vector<16x16x128xf32>
    %30 = vector.extract_strided_slice %21 {offsets = [2, 2, 0], sizes = [16, 16, 128], strides = [1, 1, 1]} : vector<18x18x128xf32> to vector<16x16x128xf32>
    %31 = tpu.concatenate %22, %23, %24, %25, %26, %27, %28, %29, %30 in 2 : vector<16x16x128xf32>, vector<16x16x128xf32>, vector<16x16x128xf32>, vector<16x16x128xf32>, vector<16x16x128xf32>, vector<16x16x128xf32>, vector<16x16x128xf32>, vector<16x16x128xf32>, vector<16x16x128xf32> -> vector<16x16x1152xf32>
    %32 = vector.shape_cast %31 : vector<16x16x1152xf32> to vector<256x1152xf32>
    %c0_8 = arith.constant 0 : index
    %c0_9 = arith.constant 0 : index
    %33 = vector.load %arg3[%c0_8, %c0_9] : memref<1152x128xf32, #tpu.memory_space<vmem>>, vector<1152x128xf32>
    %cst_10 = arith.constant dense<0.000000e+00> : vector<256x128xf32>
    %34 = tpu.matmul %32, %33, %cst_10 {dimension_numbers = #tpu.dot_dimension_numbers<[1], [0], [0], [1], [0, 0, 1, 1], [], []>} : vector<256x1152xf32>, vector<1152x128xf32>, vector<256x128xf32> -> vector<256x128xf32>
    %35 = vector.extract_strided_slice %1 {offsets = [1, 1, 0], sizes = [16, 16, 128], strides = [1, 1, 1]} : vector<18x18x128xf32> to vector<16x16x128xf32>
    %36 = vector.shape_cast %35 : vector<16x16x128xf32> to vector<256x128xf32>
    %37 = arith.addf %34, %36 : vector<256x128xf32>
    %cst_11 = arith.constant 0.000000e+00 : f32
    %38 = vector.broadcast %cst_11 : f32 to vector<256x128xf32>
    %39 = arith.maximumf %37, %38 : vector<256x128xf32>
    %c0_12 = arith.constant 0 : index
    %c0_13 = arith.constant 0 : index
    %c0_14 = arith.constant 0 : index
    %40 = vector.load %arg4[%c0_12, %c0_13, %c0_14] : memref<1x256x128xf32, #tpu.memory_space<vmem>>, vector<1x256x128xf32>
    %41 = vector.shape_cast %40 : vector<1x256x128xf32> to vector<256x128xf32>
    %42 = vector.shape_cast %39 : vector<256x128xf32> to vector<1x256x128xf32>
    tpu.vector_store %arg4[%c0_12, %c0_13, %c0_14], %42 {strides = array<i32>} : memref<1x256x128xf32, #tpu.memory_space<vmem>>, vector<1x256x128xf32>,
    return
  }
  func.func @transform_0(%arg0: i32) -> (i32, i32, i32, i32) {
    %c0_i32 = arith.constant 0 : i32
    %c0_i32_0 = arith.constant 0 : i32
    %c0_i32_1 = arith.constant 0 : i32
    %c0_i32_2 = arith.constant 0 : i32
    return %arg0, %c0_i32, %c0_i32_0, %c0_i32_1 : i32, i32, i32, i32
  }
  func.func @transform_1(%arg0: i32) -> (i32, i32) {
    %c0_i32 = arith.constant 0 : i32
    %c0_i32_0 = arith.constant 0 : i32
    %c0_i32_1 = arith.constant 0 : i32
    return %c0_i32, %c0_i32_0 : i32, i32
  }
  func.func @transform_2(%arg0: i32) -> (i32, i32) {
    %c0_i32 = arith.constant 0 : i32
    %c0_i32_0 = arith.constant 0 : i32
    %c0_i32_1 = arith.constant 0 : i32
    return %c0_i32, %c0_i32_0 : i32, i32
  }
  func.func @transform_3(%arg0: i32) -> (i32, i32, i32) {
    %c0_i32 = arith.constant 0 : i32
    %c0_i32_0 = arith.constant 0 : i32
    %c0_i32_1 = arith.constant 0 : i32
    return %arg0, %c0_i32, %c0_i32_0 : i32, i32, i32
  }
}

</mosaic_0001>

<llo_original>
// kernel: residual_block.1
$region0: #{residual_block.1}
  #allocation0 [shape = 'u32[]', space=smem, size = 0x4, offset = 0x4, fixed_abs, tag = 'smem constant byte address 0x4 - core index']
  #allocation1 [shape = 'u32[72,128]{1,0:T(1,128)}', space=vmem, size = 0x9000, scoped, tag = 'internal scratch']
  %s0 = inlined_call_operand.vmem [shape: f32[2,18,18,128], index: 0, kind: input, shape index: {}]
  %s1 = inlined_call_operand.vmem [shape: f32[1152,128], index: 1, kind: input, shape index: {}]
  %s2 = inlined_call_operand.vmem [shape: f32[1152,128], index: 2, kind: input, shape index: {}]
  %s3 = inlined_call_operand.hbm [shape: f32[2,256,128], index: 3, kind: output, shape index: {}]
  %s4 = sld [smem:[#allocation0]]
  $region45: #{residual_block.1} parent=0
    _
  %s6 = ssub.s32 1, %s4
  %s7 = scalar_select 0, %s6, %s4
  $region1: #{residual_block.1} parent=0
    #allocation2 [shape = 'u8[262144]{0}', space=vmem, size = 0x40000, scoped, tag = 'output window, operand 0']
    #allocation3 [shape = 's32[2]{0}', space=sflag, size = 0x8, scoped, tag = 'scoped memory for residual_block.1']
    %8 = vsyncpa [#allocation3], 0
    %s9 = scalar_lea.sflag [#allocation3], 1
    %10 = vsyncpa %s9, 0
    loop: start=0, step=1, limit=4
    $region2: #{residual_block.1} parent=1 // loop_pre_header
      _
    $region3: #{residual_block.1} parent=1 // loop_header
      %s12 = sphi 0, %s16
      %p13 = scmp.ge.s32.totalorder %s12, 4
      %s22 = sphi 0, %s24
      %s25 = sphi 0, %s22
      %s26 = sphi 0, %s25
      %s42 = sphi 0, %s26
      %s46 = sphi 0, %s46
      %s48 = sphi 0, %s46
      %s49 = sphi 0, %s48
      %s63 = sphi 0, %s49
      %s67 = sphi 0, %s67
      %s69 = sphi 0, %s67
      %s70 = sphi 0, %s69
      %s84 = sphi 0, %s70
      %s90 = sphi 0, %s92
      %s93 = sphi 0, %s90
      %s94 = sphi 0, %s93
      %s110 = sphi 0, %s94
    $region4: #{residual_block.1} parent=1 // loop_header_branch
      %15 = sbr.rel (%p13) target = $region8
    $region5: #{residual_block.1} parent=1 // loop_body
      %s17 = ssub.s32 %s12, 1
      %s18 = ssub.s32 %s12, 2
      %s19 = sadd.s32 %s12, 1
      %s20 = ssub.s32 %s12, %s19
      %p21 = scmp.eq.s32.totalorder %s20, 0
      %s23 = sadd.s32 %s22, 1
      %s24 = scalar_select %p21, %s22, %s23
      %p27 = pneg %p21
      %p28 = scmp.eq.s32.totalorder %s12, 1
      %p29 = por %p27, %p28
      %p30 = scmp.ne.s32.totalorder %s22, %s25
      %p31 = scmp.eq.s32.totalorder %s12, 0
      %p32 = por %p30, %p31
      %p33 = scmp.ne.s32.totalorder %s22, %s25
      %p34 = scmp.eq.s32.totalorder %s17, 1
      %p35 = por %p33, %p34
      %p36 = scmp.ne.s32.totalorder %s25, %s26
      %p37 = scmp.eq.s32.totalorder %s17, 0
      %p38 = por %p36, %p37
      %p39 = scmp.ne.s32.totalorder %s25, %s26
      %p40 = scmp.eq.s32.totalorder %s18, 1
      %p41 = por %p39, %p40
      %p43 = scmp.ne.s32.totalorder %s26, %s42
      %p44 = scmp.eq.s32.totalorder %s18, 0
      %p45 = por %p43, %p44
      %s47 = sadd.s32 %s46, 1
      %p50 = scmp.eq.s32.totalorder %s12, 1
      %p51 = scmp.ne.s32.totalorder %s46, %s48
      %p52 = scmp.eq.s32.totalorder %s12, 0
      %p53 = por %p51, %p52
      %p54 = scmp.ne.s32.totalorder %s46, %s48
      %p55 = scmp.eq.s32.totalorder %s17, 1
      %p56 = por %p54, %p55
      %p57 = scmp.ne.s32.totalorder %s48, %s49
      %p58 = scmp.eq.s32.totalorder %s17, 0
      %p59 = por %p57, %p58
      %p60 = scmp.ne.s32.totalorder %s48, %s49
      %p61 = scmp.eq.s32.totalorder %s18, 1
      %p62 = por %p60, %p61
      %p64 = scmp.ne.s32.totalorder %s49, %s63
      %p65 = scmp.eq.s32.totalorder %s18, 0
      %p66 = por %p64, %p65
      %s68 = sadd.s32 %s67, 1
      %p71 = scmp.eq.s32.totalorder %s12, 1
      %p72 = scmp.ne.s32.totalorder %s67, %s69
      %p73 = scmp.eq.s32.totalorder %s12, 0
      %p74 = por %p72, %p73
      %p75 = scmp.ne.s32.totalorder %s67, %s69
      %p76 = scmp.eq.s32.totalorder %s17, 1
      %p77 = por %p75, %p76
      %p78 = scmp.ne.s32.totalorder %s69, %s70
      %p79 = scmp.eq.s32.totalorder %s17, 0
      %p80 = por %p78, %p79
      %p81 = scmp.ne.s32.totalorder %s69, %s70
      %p82 = scmp.eq.s32.totalorder %s18, 1
      %p83 = por %p81, %p82
      %p85 = scmp.ne.s32.totalorder %s70, %s84
      %p86 = scmp.eq.s32.totalorder %s18, 0
      %p87 = por %p85, %p86
      %s88 = ssub.s32 %s12, %s19
      %p89 = scmp.eq.s32.totalorder %s88, 0
      %s91 = sadd.s32 %s90, 1
      %s92 = scalar_select %p89, %s90, %s91
      %p95 = pneg %p89
      %p96 = scmp.eq.s32.totalorder %s12, 1
      %p97 = por %p95, %p96
      %p98 = scmp.ne.s32.totalorder %s90, %s93
      %p99 = scmp.eq.s32.totalorder %s12, 0
      %p100 = por %p98, %p99
      %p101 = scmp.ne.s32.totalorder %s90, %s93
      %p102 = scmp.eq.s32.totalorder %s17, 1
      %p103 = por %p101, %p102
      %p104 = scmp.ne.s32.totalorder %s93, %s94
      %p105 = scmp.eq.s32.totalorder %s17, 0
      %p106 = por %p104, %p105
      %p107 = scmp.ne.s32.totalorder %s93, %s94
      %p108 = scmp.eq.s32.totalorder %s18, 1
      %p109 = por %p107, %p108
      %p111 = scmp.ne.s32.totalorder %s94, %s110
      %p112 = scmp.eq.s32.totalorder %s18, 0
      %p113 = por %p111, %p112
      %p114 = scmp.le.s32.totalorder 1, %s12
      %p115 = scmp.lt.s32.totalorder %s12, 3
      %p116 = pnand %p114, %p115
      %p117 = pneg %p116
      // Predicated region
      $region9: #{residual_block.1} parent=5 // pred_check
        _
      $region10: #{residual_block.1} parent=5 // pred_check_branch
        %119 = sbr.rel (%p116) target = $region12
      $region11: #{residual_block.1} parent=5 // pred_region
        %s120 = ssub.s32 %s12, 1
        // Predicated region
        $region13: #{residual_block.1} parent=11 // pred_check
          %p121 = pneg %p59
        $region14: #{residual_block.1} parent=11 // pred_check_branch
          %123 = sbr.rel (%p121) target = $region16
        $region15: #{residual_block.1} parent=11 // pred_region
          _
        $region16: #{residual_block.1} parent=11 // pred_fallthru
          _
        // Predicated region
        $region17: #{residual_block.1} parent=11 // pred_check
          %p124 = pneg %p80
        $region18: #{residual_block.1} parent=11 // pred_check_branch
          %126 = sbr.rel (%p124) target = $region20
        $region19: #{residual_block.1} parent=11 // pred_region
          _
        $region20: #{residual_block.1} parent=11 // pred_fallthru
          _
      $region12: #{residual_block.1} parent=5 // pred_fallthru
        _
      %p127 = scmp.lt.s32.totalorder %s12, 2
      // Predicated region
      $region21: #{residual_block.1} parent=5 // pred_check
        %p128 = pneg %p127
      $region22: #{residual_block.1} parent=5 // pred_check_branch
        %130 = sbr.rel (%p128) target = $region24
      $region23: #{residual_block.1} parent=5 // pred_region
        // Predicated region
        $region25: #{residual_block.1} parent=23 // pred_check
          %p131 = pneg %p32
        $region26: #{residual_block.1} parent=23 // pred_check_branch
          %133 = sbr.rel (%p131) target = $region28
        $region27: #{residual_block.1} parent=23 // pred_region
          %p134 = scmp.lt.s32.totalorder %s12, 1
          %s135 = scalar_select %p134, %s12, 1
          %s136 = smul.addr %s135, 54
          %s137 = smul.addr %s136, 8
          %s138 = scalar_lea.vmem %s0, %s137
        $region28: #{residual_block.1} parent=23 // pred_fallthru
          _
      $region24: #{residual_block.1} parent=5 // pred_fallthru
        _
      %p139 = scmp.le.s32.totalorder 1, %s12
      %p140 = scmp.lt.s32.totalorder %s12, 3
      %p141 = pnand %p139, %p140
      %p142 = pneg %p141
      // Predicated region
      $region29: #{residual_block.1} parent=5 // pred_check
        _
      $region30: #{residual_block.1} parent=5 // pred_check_branch
        %144 = sbr.rel (%p141) target = $region32
      $region31: #{residual_block.1} parent=5 // pred_region
        %s145 = ssub.s32 %s12, 1
        %p146 = scmp.lt.s32.totalorder %s17, 1
        %s147 = scalar_select %p146, %s17, 1
        %s148 = smul.addr %s147, 54
        %s149 = smul.addr %s148, 8
        %s150 = scalar_lea.vmem %s0, %s149
        %p151 = pneg %p38
        %p152 = pneg %p35
        %p153 = pneg %p59
        %p154 = pneg %p56
        %p155 = pneg %p80
        %p156 = pneg %p77
        %p157 = pneg %p106
        %p158 = pneg %p103
        %s159 = sand.u32 %s93, 1
        %s160 = scalar_lea.sflag [#allocation3], %s159
        %s161 = sand.u32 %s93, 1
        %s162 = smul.addr %s161, 256
        %s163 = scalar_lea.vmem [#allocation2], %s162
        %p164 = scmp.lt.s32.totalorder %s17, 1
        %s165 = scalar_select %p164, %s17, 1
        %s166 = smul.addr %s165, 54
        %s167 = smul.addr %s166, 8
        %s168 = scalar_lea.vmem %s0, %s167
        %v169 = vld [vmem:[%s168] sm:$0xff]
        %v170 = vld [vmem:[%s168 + $0x8] sm:$0xff]
        %v171 = vld [vmem:[%s168 + $0x10] sm:$0x3]
        %v172 = vld [vmem:[%s168 + $0x18] sm:$0xff]
        %v173 = vld [vmem:[%s168 + $0x20] sm:$0xff]
        %v174 = vld [vmem:[%s168 + $0x28] sm:$0x3]
        %v175 = vld [vmem:[%s168 + $0x30] sm:$0xff]
        %v176 = vld [vmem:[%s168 + $0x38] sm:$0xff]
        %v177 = vld [vmem:[%s168 + $0x40] sm:$0x3]
        %v178 = vld [vmem:[%s168 + $0x48] sm:$0xff]
        %v179 = vld [vmem:[%s168 + $0x50] sm:$0xff]
        %v180 = vld [vmem:[%s168 + $0x58] sm:$0x3]
        %v181 = vld [vmem:[%s168 + $0x60] sm:$0xff]
        %v182 = vld [vmem:[%s168 + $0x68] sm:$0xff]
        %v183 = vld [vmem:[%s168 + $0x70] sm:$0x3]
        %v184 = vld [vmem:[%s168 + $0x78] sm:$0xff]
        %v185 = vld [vmem:[%s168 + $0x80] sm:$0xff]
        %v186 = vld [vmem:[%s168 + $0x88] sm:$0x3]
        %v187 = vld [vmem:[%s168 + $0x90] sm:$0xff]
        %v188 = vld [vmem:[%s168 + $0x98] sm:$0xff]
        %v189 = vld [vmem:[%s168 + $0xa0] sm:$0x3]
        %v190 = vld [vmem:[%s168 + $0xa8] sm:$0xff]
        %v191 = vld [vmem:[%s168 + $0xb0] sm:$0xff]
        %v192 = vld [vmem:[%s168 + $0xb8] sm:$0x3]
        %v193 = vld [vmem:[%s168 + $0xc0] sm:$0xff]
        %v194 = vld [vmem:[%s168 + $0xc8] sm:$0xff]
        %v195 = vld [vmem:[%s168 + $0xd0] sm:$0x3]
        %v196 = vld [vmem:[%s168 + $0xd8] sm:$0xff]
        %v197 = vld [vmem:[%s168 + $0xe0] sm:$0xff]
        %v198 = vld [vmem:[%s168 + $0xe8] sm:$0x3]
        %v199 = vld [vmem:[%s168 + $0xf0] sm:$0xff]
        %v200 = vld [vmem:[%s168 + $0xf8] sm:$0xff]
        %v201 = vld [vmem:[%s168 + $0x100] sm:$0x3]
        %v202 = vld [vmem:[%s168 + $0x108] sm:$0xff]
        %v203 = vld [vmem:[%s168 + $0x110] sm:$0xff]
        %v204 = vld [vmem:[%s168 + $0x118] sm:$0x3]
        %v205 = vld [vmem:[%s168 + $0x120] sm:$0xff]
        %v206 = vld [vmem:[%s168 + $0x128] sm:$0xff]
        %v207 = vld [vmem:[%s168 + $0x130] sm:$0x3]
        %v208 = vld [vmem:[%s168 + $0x138] sm:$0xff]
        %v209 = vld [vmem:[%s168 + $0x140] sm:$0xff]
        %v210 = vld [vmem:[%s168 + $0x148] sm:$0x3]
        %v211 = vld [vmem:[%s168 + $0x150] sm:$0xff]
        %v212 = vld [vmem:[%s168 + $0x158] sm:$0xff]
        %v213 = vld [vmem:[%s168 + $0x160] sm:$0x3]
        %v214 = vld [vmem:[%s168 + $0x168] sm:$0xff]
        %v215 = vld [vmem:[%s168 + $0x170] sm:$0xff]
        %v216 = vld [vmem:[%s168 + $0x178] sm:$0x3]
        %v217 = vld [vmem:[%s168 + $0x180] sm:$0xff]
        %v218 = vld [vmem:[%s168 + $0x188] sm:$0xff]
        %v219 = vld [vmem:[%s168 + $0x190] sm:$0x3]
        %v220 = vld [vmem:[%s168 + $0x198] sm:$0xff]
        %v221 = vld [vmem:[%s168 + $0x1a0] sm:$0xff]
        %v222 = vld [vmem:[%s168 + $0x1a8] sm:$0x3]
        %vm271 = vcmask 1046528
        %v272 = vrot.slane %v169, 1
        %v273 = vrot.slane %v170, 1
        %v274 = vsel %vm271, %v272, %v273
        %v275 = vrot.slane %v171, 1
        %v276 = vsel %vm271, %v273, %v275
        %v277 = vrot.slane %v172, 1
        %v278 = vrot.slane %v173, 1
        %v279 = vsel %vm271, %v277, %v278
        %v280 = vrot.slane %v174, 1
        %v281 = vsel %vm271, %v278, %v280
        %v282 = vrot.slane %v175, 1
        %v283 = vrot.slane %v176, 1
        %v284 = vsel %vm271, %v282, %v283
        %v285 = vrot.slane %v177, 1
        %v286 = vsel %vm271, %v283, %v285
        %v287 = vrot.slane %v178, 1
        %v288 = vrot.slane %v179, 1
        %v289 = vsel %vm271, %v287, %v288
        %v290 = vrot.slane %v180, 1
        %v291 = vsel %vm271, %v288, %v290
        %v292 = vrot.slane %v181, 1
        %v293 = vrot.slane %v182, 1
        %v294 = vsel %vm271, %v292, %v293
        %v295 = vrot.slane %v183, 1
        %v296 = vsel %vm271, %v293, %v295
        %v297 = vrot.slane %v184, 1
        %v298 = vrot.slane %v185, 1
        %v299 = vsel %vm271, %v297, %v298
        %v300 = vrot.slane %v186, 1
        %v301 = vsel %vm271, %v298, %v300
        %v302 = vrot.slane %v187, 1
        %v303 = vrot.slane %v188, 1
        %v304 = vsel %vm271, %v302, %v303
        %v305 = vrot.slane %v189, 1
        %v306 = vsel %vm271, %v303, %v305
        %v307 = vrot.slane %v190, 1
        %v308 = vrot.slane %v191, 1
        %v309 = vsel %vm271, %v307, %v308
        %v310 = vrot.slane %v192, 1
        %v311 = vsel %vm271, %v308, %v310
        %v312 = vrot.slane %v193, 1
        %v313 = vrot.slane %v194, 1
        %v314 = vsel %vm271, %v312, %v313
        %v315 = vrot.slane %v195, 1
        %v316 = vsel %vm271, %v313, %v315
        %v317 = vrot.slane %v196, 1
        %v318 = vrot.slane %v197, 1
        %v319 = vsel %vm271, %v317, %v318
        %v320 = vrot.slane %v198, 1
        %v321 = vsel %vm271, %v318, %v320
        %v322 = vrot.slane %v199, 1
        %v323 = vrot.slane %v200, 1
        %v324 = vsel %vm271, %v322, %v323
        %v325 = vrot.slane %v201, 1
        %v326 = vsel %vm271, %v323, %v325
        %v327 = vrot.slane %v202, 1
        %v328 = vrot.slane %v203, 1
        %v329 = vsel %vm271, %v327, %v328
        %v330 = vrot.slane %v204, 1
        %v331 = vsel %vm271, %v328, %v330
        %v332 = vrot.slane %v205, 1
        %v333 = vrot.slane %v206, 1
        %v334 = vsel %vm271, %v332, %v333
        %v335 = vrot.slane %v207, 1
        %v336 = vsel %vm271, %v333, %v335
        %v337 = vrot.slane %v208, 1
        %v338 = vrot.slane %v209, 1
        %v339 = vsel %vm271, %v337, %v338
        %v340 = vrot.slane %v210, 1
        %v341 = vsel %vm271, %v338, %v340
        %v342 = vrot.slane %v211, 1
        %v343 = vrot.slane %v212, 1
        %v344 = vsel %vm271, %v342, %v343
        %v345 = vrot.slane %v213, 1
        %v346 = vsel %vm271, %v343, %v345
        %v347 = vrot.slane %v214, 1
        %v348 = vrot.slane %v215, 1
        %v349 = vsel %vm271, %v347, %v348
        %v350 = vrot.slane %v216, 1
        %v351 = vsel %vm271, %v348, %v350
        %vm384 = vcmask 1045504
        %v385 = vrot.slane %v169, 2
        %v386 = vrot.slane %v170, 2
        %v387 = vsel %vm384, %v385, %v386
        %v388 = vrot.slane %v171, 2
        %v389 = vsel %vm384, %v386, %v388
        %v390 = vrot.slane %v172, 2
        %v391 = vrot.slane %v173, 2
        %v392 = vsel %vm384, %v390, %v391
        %v393 = vrot.slane %v174, 2
        %v394 = vsel %vm384, %v391, %v393
        %v395 = vrot.slane %v175, 2
        %v396 = vrot.slane %v176, 2
        %v397 = vsel %vm384, %v395, %v396
        %v398 = vrot.slane %v177, 2
        %v399 = vsel %vm384, %v396, %v398
        %v400 = vrot.slane %v178, 2
        %v401 = vrot.slane %v179, 2
        %v402 = vsel %vm384, %v400, %v401
        %v403 = vrot.slane %v180, 2
        %v404 = vsel %vm384, %v401, %v403
        %v405 = vrot.slane %v181, 2
        %v406 = vrot.slane %v182, 2
        %v407 = vsel %vm384, %v405, %v406
        %v408 = vrot.slane %v183, 2
        %v409 = vsel %vm384, %v406, %v408
        %v410 = vrot.slane %v184, 2
        %v411 = vrot.slane %v185, 2
        %v412 = vsel %vm384, %v410, %v411
        %v413 = vrot.slane %v186, 2
        %v414 = vsel %vm384, %v411, %v413
        %v415 = vrot.slane %v187, 2
        %v416 = vrot.slane %v188, 2
        %v417 = vsel %vm384, %v415, %v416
        %v418 = vrot.slane %v189, 2
        %v419 = vsel %vm384, %v416, %v418
        %v420 = vrot.slane %v190, 2
        %v421 = vrot.slane %v191, 2
        %v422 = vsel %vm384, %v420, %v421
        %v423 = vrot.slane %v192, 2
        %v424 = vsel %vm384, %v421, %v423
        %v425 = vrot.slane %v193, 2
        %v426 = vrot.slane %v194, 2
        %v427 = vsel %vm384, %v425, %v426
        %v428 = vrot.slane %v195, 2
        %v429 = vsel %vm384, %v426, %v428
        %v430 = vrot.slane %v196, 2
        %v431 = vrot.slane %v197, 2
        %v432 = vsel %vm384, %v430, %v431
        %v433 = vrot.slane %v198, 2
        %v434 = vsel %vm384, %v431, %v433
        %v435 = vrot.slane %v199, 2
        %v436 = vrot.slane %v200, 2
        %v437 = vsel %vm384, %v435, %v436
        %v438 = vrot.slane %v201, 2
        %v439 = vsel %vm384, %v436, %v438
        %v440 = vrot.slane %v202, 2
        %v441 = vrot.slane %v203, 2
        %v442 = vsel %vm384, %v440, %v441
        %v443 = vrot.slane %v204, 2
        %v444 = vsel %vm384, %v441, %v443
        %v445 = vrot.slane %v205, 2
        %v446 = vrot.slane %v206, 2
        %v447 = vsel %vm384, %v445, %v446
        %v448 = vrot.slane %v207, 2
        %v449 = vsel %vm384, %v446, %v448
        %v450 = vrot.slane %v208, 2
        %v451 = vrot.slane %v209, 2
        %v452 = vsel %vm384, %v450, %v451
        %v453 = vrot.slane %v210, 2
        %v454 = vsel %vm384, %v451, %v453
        %v455 = vrot.slane %v211, 2
        %v456 = vrot.slane %v212, 2
        %v457 = vsel %vm384, %v455, %v456
        %v458 = vrot.slane %v213, 2
        %v459 = vsel %vm384, %v456, %v458
        %v460 = vrot.slane %v214, 2
        %v461 = vrot.slane %v215, 2
        %v462 = vsel %vm384, %v460, %v461
        %v463 = vrot.slane %v216, 2
        %v464 = vsel %vm384, %v461, %v463
        %v500 = vrot.slane %v217, 1
        %v501 = vrot.slane %v218, 1
        %v502 = vsel %vm271, %v500, %v501
        %v503 = vrot.slane %v219, 1
        %v504 = vsel %vm271, %v501, %v503
        %v507 = vrot.slane %v217, 2
        %v508 = vrot.slane %v218, 2
        %v509 = vsel %vm384, %v507, %v508
        %v510 = vrot.slane %v219, 2
        %v511 = vsel %vm384, %v508, %v510
        %v517 = vrot.slane %v220, 1
        %v518 = vrot.slane %v221, 1
        %v519 = vsel %vm271, %v517, %v518
        %v520 = vrot.slane %v222, 1
        %v521 = vsel %vm271, %v518, %v520
        %v524 = vrot.slane %v220, 2
        %v525 = vrot.slane %v221, 2
        %v526 = vsel %vm384, %v524, %v525
        %v527 = vrot.slane %v222, 2
        %v528 = vsel %vm384, %v525, %v527
        %v531 = vld [vmem:[%s1] sm:$0xff]
        %v532 = vld [vmem:[%s1 + $0x8] sm:$0xff]
        %v533 = vld [vmem:[%s1 + $0x10] sm:$0xff]
        %v534 = vld [vmem:[%s1 + $0x18] sm:$0xff]
        %v535 = vld [vmem:[%s1 + $0x20] sm:$0xff]
        %v536 = vld [vmem:[%s1 + $0x28] sm:$0xff]
        %v537 = vld [vmem:[%s1 + $0x30] sm:$0xff]
        %v538 = vld [vmem:[%s1 + $0x38] sm:$0xff]
        %v539 = vld [vmem:[%s1 + $0x40] sm:$0xff]
        %v540 = vld [vmem:[%s1 + $0x48] sm:$0xff]
        %v541 = vld [vmem:[%s1 + $0x50] sm:$0xff]
        %v542 = vld [vmem:[%s1 + $0x58] sm:$0xff]
        %v543 = vld [vmem:[%s1 + $0x60] sm:$0xff]
        %v544 = vld [vmem:[%s1 + $0x68] sm:$0xff]
        %v545 = vld [vmem:[%s1 + $0x70] sm:$0xff]
        %v546 = vld [vmem:[%s1 + $0x78] sm:$0xff]
        %v547 = vld [vmem:[%s1 + $0x80] sm:$0xff]
        %v548 = vld [vmem:[%s1 + $0x88] sm:$0xff]
        %v549 = vld [vmem:[%s1 + $0x90] sm:$0xff]
        %v550 = vld [vmem:[%s1 + $0x98] sm:$0xff]
        %v551 = vld [vmem:[%s1 + $0xa0] sm:$0xff]
        %v552 = vld [vmem:[%s1 + $0xa8] sm:$0xff]
        %v553 = vld [vmem:[%s1 + $0xb0] sm:$0xff]
        %v554 = vld [vmem:[%s1 + $0xb8] sm:$0xff]
        %v555 = vld [vmem:[%s1 + $0xc0] sm:$0xff]
        %v556 = vld [vmem:[%s1 + $0xc8] sm:$0xff]
        %v557 = vld [vmem:[%s1 + $0xd0] sm:$0xff]
        %v558 = vld [vmem:[%s1 + $0xd8] sm:$0xff]
        %v559 = vld [vmem:[%s1 + $0xe0] sm:$0xff]
        %v560 = vld [vmem:[%s1 + $0xe8] sm:$0xff]
        %v561 = vld [vmem:[%s1 + $0xf0] sm:$0xff]
        %v562 = vld [vmem:[%s1 + $0xf8] sm:$0xff]
        %v563 = vld [vmem:[%s1 + $0x100] sm:$0xff]
        %v564 = vld [vmem:[%s1 + $0x108] sm:$0xff]
        %v565 = vld [vmem:[%s1 + $0x110] sm:$0xff]
        %v566 = vld [vmem:[%s1 + $0x118] sm:$0xff]
        %v567 = vld [vmem:[%s1 + $0x120] sm:$0xff]
        %v568 = vld [vmem:[%s1 + $0x128] sm:$0xff]
        %v569 = vld [vmem:[%s1 + $0x130] sm:$0xff]
        %v570 = vld [vmem:[%s1 + $0x138] sm:$0xff]
        %v571 = vld [vmem:[%s1 + $0x140] sm:$0xff]
        %v572 = vld [vmem:[%s1 + $0x148] sm:$0xff]
        %v573 = vld [vmem:[%s1 + $0x150] sm:$0xff]
        %v574 = vld [vmem:[%s1 + $0x158] sm:$0xff]
        %v575 = vld [vmem:[%s1 + $0x160] sm:$0xff]
        %v576 = vld [vmem:[%s1 + $0x168] sm:$0xff]
        %v577 = vld [vmem:[%s1 + $0x170] sm:$0xff]
        %v578 = vld [vmem:[%s1 + $0x178] sm:$0xff]
        %v579 = vld [vmem:[%s1 + $0x180] sm:$0xff]
        %v580 = vld [vmem:[%s1 + $0x188] sm:$0xff]
        %v581 = vld [vmem:[%s1 + $0x190] sm:$0xff]
        %v582 = vld [vmem:[%s1 + $0x198] sm:$0xff]
        %v583 = vld [vmem:[%s1 + $0x1a0] sm:$0xff]
        %v584 = vld [vmem:[%s1 + $0x1a8] sm:$0xff]
        %v585 = vld [vmem:[%s1 + $0x1b0] sm:$0xff]
        %v586 = vld [vmem:[%s1 + $0x1b8] sm:$0xff]
        %v587 = vld [vmem:[%s1 + $0x1c0] sm:$0xff]
        %v588 = vld [vmem:[%s1 + $0x1c8] sm:$0xff]
        %v589 = vld [vmem:[%s1 + $0x1d0] sm:$0xff]
        %v590 = vld [vmem:[%s1 + $0x1d8] sm:$0xff]
        %v591 = vld [vmem:[%s1 + $0x1e0] sm:$0xff]
        %v592 = vld [vmem:[%s1 + $0x1e8] sm:$0xff]
        %v593 = vld [vmem:[%s1 + $0x1f0] sm:$0xff]
        %v594 = vld [vmem:[%s1 + $0x1f8] sm:$0xff]
        %v595 = vld [vmem:[%s1 + $0x200] sm:$0xff]
        %v596 = vld [vmem:[%s1 + $0x208] sm:$0xff]
        %v597 = vld [vmem:[%s1 + $0x210] sm:$0xff]
        %v598 = vld [vmem:[%s1 + $0x218] sm:$0xff]
        %v599 = vld [vmem:[%s1 + $0x220] sm:$0xff]
        %v600 = vld [vmem:[%s1 + $0x228] sm:$0xff]
        %v601 = vld [vmem:[%s1 + $0x230] sm:$0xff]
        %v602 = vld [vmem:[%s1 + $0x238] sm:$0xff]
        %v603 = vld [vmem:[%s1 + $0x240] sm:$0xff]
        %v604 = vld [vmem:[%s1 + $0x248] sm:$0xff]
        %v605 = vld [vmem:[%s1 + $0x250] sm:$0xff]
        %v606 = vld [vmem:[%s1 + $0x258] sm:$0xff]
        %v607 = vld [vmem:[%s1 + $0x260] sm:$0xff]
        %v608 = vld [vmem:[%s1 + $0x268] sm:$0xff]
        %v609 = vld [vmem:[%s1 + $0x270] sm:$0xff]
        %v610 = vld [vmem:[%s1 + $0x278] sm:$0xff]
        %v611 = vld [vmem:[%s1 + $0x280] sm:$0xff]
        %v612 = vld [vmem:[%s1 + $0x288] sm:$0xff]
        %v613 = vld [vmem:[%s1 + $0x290] sm:$0xff]
        %v614 = vld [vmem:[%s1 + $0x298] sm:$0xff]
        %v615 = vld [vmem:[%s1 + $0x2a0] sm:$0xff]
        %v616 = vld [vmem:[%s1 + $0x2a8] sm:$0xff]
        %v617 = vld [vmem:[%s1 + $0x2b0] sm:$0xff]
        %v618 = vld [vmem:[%s1 + $0x2b8] sm:$0xff]
        %v619 = vld [vmem:[%s1 + $0x2c0] sm:$0xff]
        %v620 = vld [vmem:[%s1 + $0x2c8] sm:$0xff]
        %v621 = vld [vmem:[%s1 + $0x2d0] sm:$0xff]
        %v622 = vld [vmem:[%s1 + $0x2d8] sm:$0xff]
        %v623 = vld [vmem:[%s1 + $0x2e0] sm:$0xff]
        %v624 = vld [vmem:[%s1 + $0x2e8] sm:$0xff]
        %v625 = vld [vmem:[%s1 + $0x2f0] sm:$0xff]
        %v626 = vld [vmem:[%s1 + $0x2f8] sm:$0xff]
        %v627 = vld [vmem:[%s1 + $0x300] sm:$0xff]
        %v628 = vld [vmem:[%s1 + $0x308] sm:$0xff]
        %v629 = vld [vmem:[%s1 + $0x310] sm:$0xff]
        %v630 = vld [vmem:[%s1 + $0x318] sm:$0xff]
        %v631 = vld [vmem:[%s1 + $0x320] sm:$0xff]
        %v632 = vld [vmem:[%s1 + $0x328] sm:$0xff]
        %v633 = vld [vmem:[%s1 + $0x330] sm:$0xff]
        %v634 = vld [vmem:[%s1 + $0x338] sm:$0xff]
        %v635 = vld [vmem:[%s1 + $0x340] sm:$0xff]
        %v636 = vld [vmem:[%s1 + $0x348] sm:$0xff]
        %v637 = vld [vmem:[%s1 + $0x350] sm:$0xff]
        %v638 = vld [vmem:[%s1 + $0x358] sm:$0xff]
        %v639 = vld [vmem:[%s1 + $0x360] sm:$0xff]
        %v640 = vld [vmem:[%s1 + $0x368] sm:$0xff]
        %v641 = vld [vmem:[%s1 + $0x370] sm:$0xff]
        %v642 = vld [vmem:[%s1 + $0x378] sm:$0xff]
        %v643 = vld [vmem:[%s1 + $0x380] sm:$0xff]
        %v644 = vld [vmem:[%s1 + $0x388] sm:$0xff]
        %v645 = vld [vmem:[%s1 + $0x390] sm:$0xff]
        %v646 = vld [vmem:[%s1 + $0x398] sm:$0xff]
        %v647 = vld [vmem:[%s1 + $0x3a0] sm:$0xff]
        %v648 = vld [vmem:[%s1 + $0x3a8] sm:$0xff]
        %v649 = vld [vmem:[%s1 + $0x3b0] sm:$0xff]
        %v650 = vld [vmem:[%s1 + $0x3b8] sm:$0xff]
        %v651 = vld [vmem:[%s1 + $0x3c0] sm:$0xff]
        %v652 = vld [vmem:[%s1 + $0x3c8] sm:$0xff]
        %v653 = vld [vmem:[%s1 + $0x3d0] sm:$0xff]
        %v654 = vld [vmem:[%s1 + $0x3d8] sm:$0xff]
        %v655 = vld [vmem:[%s1 + $0x3e0] sm:$0xff]
        %v656 = vld [vmem:[%s1 + $0x3e8] sm:$0xff]
        %v657 = vld [vmem:[%s1 + $0x3f0] sm:$0xff]
        %v658 = vld [vmem:[%s1 + $0x3f8] sm:$0xff]
        %v659 = vld [vmem:[%s1 + $0x400] sm:$0xff]
        %v660 = vld [vmem:[%s1 + $0x408] sm:$0xff]
        %v661 = vld [vmem:[%s1 + $0x410] sm:$0xff]
        %v662 = vld [vmem:[%s1 + $0x418] sm:$0xff]
        %v663 = vld [vmem:[%s1 + $0x420] sm:$0xff]
        %v664 = vld [vmem:[%s1 + $0x428] sm:$0xff]
        %v665 = vld [vmem:[%s1 + $0x430] sm:$0xff]
        %v666 = vld [vmem:[%s1 + $0x438] sm:$0xff]
        %v667 = vld [vmem:[%s1 + $0x440] sm:$0xff]
        %v668 = vld [vmem:[%s1 + $0x448] sm:$0xff]
        %v669 = vld [vmem:[%s1 + $0x450] sm:$0xff]
        %v670 = vld [vmem:[%s1 + $0x458] sm:$0xff]
        %v671 = vld [vmem:[%s1 + $0x460] sm:$0xff]
        %v672 = vld [vmem:[%s1 + $0x468] sm:$0xff]
        %v673 = vld [vmem:[%s1 + $0x470] sm:$0xff]
        %v674 = vld [vmem:[%s1 + $0x478] sm:$0xff]
        %675 = vmatpush.msra.mxu0 %v546
        %676 = vmatpush.msra.mxu0 %v545
        %677 = vmatpush.msra.mxu0 %v544
        %678 = vmatpush.msra.mxu0 %v543
        %679 = vmatpush.msra.mxu0 %v542
        %680 = vmatpush.msra.mxu0 %v541
        %681 = vmatpush.msra.mxu0 %v540
        %682 = vmatpush.msra.mxu0 %v539
        %683 = vmatpush.msra.mxu0 %v538
        %684 = vmatpush.msra.mxu0 %v537
        %685 = vmatpush.msra.mxu0 %v536
        %686 = vmatpush.msra.mxu0 %v535
        %687 = vmatpush.msra.mxu0 %v534
        %688 = vmatpush.msra.mxu0 %v533
        %689 = vmatpush.msra.mxu0 %v532
        %690 = vmatpush.msra.mxu0 %v531
        %691 = vmatmul.f32.gmra.mxu0 %v169
        %v692 = vpop.f32.mrf.mxu0
        %v693 = vadd.f32 0.0, %v692
        %694 = vmatmul.f32.gmra.mxu0 %v170
        %v695 = vpop.f32.mrf.mxu0
        %v696 = vadd.f32 0.0, %v695
        %697 = vmatmul.f32.gmra.mxu0 %v172
        %v698 = vpop.f32.mrf.mxu0
        %v699 = vadd.f32 0.0, %v698
        %700 = vmatmul.f32.gmra.mxu0 %v173
        %v701 = vpop.f32.mrf.mxu0
        %v702 = vadd.f32 0.0, %v701
        %703 = vmatmul.f32.gmra.mxu0 %v175
        %v704 = vpop.f32.mrf.mxu0
        %v705 = vadd.f32 0.0, %v704
        %706 = vmatmul.f32.gmra.mxu0 %v176
        %v707 = vpop.f32.mrf.mxu0
        %v708 = vadd.f32 0.0, %v707
        %709 = vmatmul.f32.gmra.mxu0 %v178
        %v710 = vpop.f32.mrf.mxu0
        %v711 = vadd.f32 0.0, %v710
        %712 = vmatmul.f32.gmra.mxu0 %v179
        %v713 = vpop.f32.mrf.mxu0
        %v714 = vadd.f32 0.0, %v713
        %715 = vmatmul.f32.gmra.mxu0 %v181
        %v716 = vpop.f32.mrf.mxu0
        %v717 = vadd.f32 0.0, %v716
        %718 = vmatmul.f32.gmra.mxu0 %v182
        %v719 = vpop.f32.mrf.mxu0
        %v720 = vadd.f32 0.0, %v719
        %721 = vmatmul.f32.gmra.mxu0 %v184
        %v722 = vpop.f32.mrf.mxu0
        %v723 = vadd.f32 0.0, %v722
        %724 = vmatmul.f32.gmra.mxu0 %v185
        %v725 = vpop.f32.mrf.mxu0
        %v726 = vadd.f32 0.0, %v725
        %727 = vmatmul.f32.gmra.mxu0 %v187
        %v728 = vpop.f32.mrf.mxu0
        %v729 = vadd.f32 0.0, %v728
        %730 = vmatmul.f32.gmra.mxu0 %v188
        %v731 = vpop.f32.mrf.mxu0
        %v732 = vadd.f32 0.0, %v731
        %733 = vmatmul.f32.gmra.mxu0 %v190
        %v734 = vpop.f32.mrf.mxu0
        %v735 = vadd.f32 0.0, %v734
        %736 = vmatmul.f32.gmra.mxu0 %v191
        %v737 = vpop.f32.mrf.mxu0
        %v738 = vadd.f32 0.0, %v737
        %739 = vmatmul.f32.gmra.mxu0 %v193
        %v740 = vpop.f32.mrf.mxu0
        %v741 = vadd.f32 0.0, %v740
        %742 = vmatmul.f32.gmra.mxu0 %v194
        %v743 = vpop.f32.mrf.mxu0
        %v744 = vadd.f32 0.0, %v743
        %745 = vmatmul.f32.gmra.mxu0 %v196
        %v746 = vpop.f32.mrf.mxu0
        %v747 = vadd.f32 0.0, %v746
        %748 = vmatmul.f32.gmra.mxu0 %v197
        %v749 = vpop.f32.mrf.mxu0
        %v750 = vadd.f32 0.0, %v749
        %751 = vmatmul.f32.gmra.mxu0 %v199
        %v752 = vpop.f32.mrf.mxu0
        %v753 = vadd.f32 0.0, %v752
        %754 = vmatmul.f32.gmra.mxu0 %v200
        %v755 = vpop.f32.mrf.mxu0
        %v756 = vadd.f32 0.0, %v755
        %757 = vmatmul.f32.gmra.mxu0 %v202
        %v758 = vpop.f32.mrf.mxu0
        %v759 = vadd.f32 0.0, %v758
        %760 = vmatmul.f32.gmra.mxu0 %v203
        %v761 = vpop.f32.mrf.mxu0
        %v762 = vadd.f32 0.0, %v761
        %763 = vmatmul.f32.gmra.mxu0 %v205
        %v764 = vpop.f32.mrf.mxu0
        %v765 = vadd.f32 0.0, %v764
        %766 = vmatmul.f32.gmra.mxu0 %v206
        %v767 = vpop.f32.mrf.mxu0
        %v768 = vadd.f32 0.0, %v767
        %769 = vmatmul.f32.gmra.mxu0 %v208
        %v770 = vpop.f32.mrf.mxu0
        %v771 = vadd.f32 0.0, %v770
        %772 = vmatmul.f32.gmra.mxu0 %v209
        %v773 = vpop.f32.mrf.mxu0
        %v774 = vadd.f32 0.0, %v773
        %775 = vmatmul.f32.gmra.mxu0 %v211
        %v776 = vpop.f32.mrf.mxu0
        %v777 = vadd.f32 0.0, %v776
        %778 = vmatmul.f32.gmra.mxu0 %v212
        %v779 = vpop.f32.mrf.mxu0
        %v780 = vadd.f32 0.0, %v779
        %781 = vmatmul.f32.gmra.mxu0 %v214
        %v782 = vpop.f32.mrf.mxu0
        %v783 = vadd.f32 0.0, %v782
        %784 = vmatmul.f32.gmra.mxu0 %v215
        %v785 = vpop.f32.mrf.mxu0
        %v786 = vadd.f32 0.0, %v785
        %787 = vdwg.mxu0
        %788 = vmatpush.msra.mxu0 %v562
        %789 = vmatpush.msra.mxu0 %v561
        %790 = vmatpush.msra.mxu0 %v560
        %791 = vmatpush.msra.mxu0 %v559
        %792 = vmatpush.msra.mxu0 %v558
        %793 = vmatpush.msra.mxu0 %v557
        %794 = vmatpush.msra.mxu0 %v556
        %795 = vmatpush.msra.mxu0 %v555
        %796 = vmatpush.msra.mxu0 %v554
        %797 = vmatpush.msra.mxu0 %v553
        %798 = vmatpush.msra.mxu0 %v552
        %799 = vmatpush.msra.mxu0 %v551
        %800 = vmatpush.msra.mxu0 %v550
        %801 = vmatpush.msra.mxu0 %v549
        %802 = vmatpush.msra.mxu0 %v548
        %803 = vmatpush.msra.mxu0 %v547
        %804 = vmatmul.f32.gmra.mxu0 %v274
        %v805 = vpop.f32.mrf.mxu0
        %v806 = vadd.f32 %v693, %v805
        %807 = vmatmul.f32.gmra.mxu0 %v276
        %v808 = vpop.f32.mrf.mxu0
        %v809 = vadd.f32 %v696, %v808
        %810 = vmatmul.f32.gmra.mxu0 %v279
        %v811 = vpop.f32.mrf.mxu0
        %v812 = vadd.f32 %v699, %v811
        %813 = vmatmul.f32.gmra.mxu0 %v281
        %v814 = vpop.f32.mrf.mxu0
        %v815 = vadd.f32 %v702, %v814
        %816 = vmatmul.f32.gmra.mxu0 %v284
        %v817 = vpop.f32.mrf.mxu0
        %v818 = vadd.f32 %v705, %v817
        %819 = vmatmul.f32.gmra.mxu0 %v286
        %v820 = vpop.f32.mrf.mxu0
        %v821 = vadd.f32 %v708, %v820
        %822 = vmatmul.f32.gmra.mxu0 %v289
        %v823 = vpop.f32.mrf.mxu0
        %v824 = vadd.f32 %v711, %v823
        %825 = vmatmul.f32.gmra.mxu0 %v291
        %v826 = vpop.f32.mrf.mxu0
        %v827 = vadd.f32 %v714, %v826
        %828 = vmatmul.f32.gmra.mxu0 %v294
        %v829 = vpop.f32.mrf.mxu0
        %v830 = vadd.f32 %v717, %v829
        %831 = vmatmul.f32.gmra.mxu0 %v296
        %v832 = vpop.f32.mrf.mxu0
        %v833 = vadd.f32 %v720, %v832
        %834 = vmatmul.f32.gmra.mxu0 %v299
        %v835 = vpop.f32.mrf.mxu0
        %v836 = vadd.f32 %v723, %v835
        %837 = vmatmul.f32.gmra.mxu0 %v301
        %v838 = vpop.f32.mrf.mxu0
        %v839 = vadd.f32 %v726, %v838
        %840 = vmatmul.f32.gmra.mxu0 %v304
        %v841 = vpop.f32.mrf.mxu0
        %v842 = vadd.f32 %v729, %v841
        %843 = vmatmul.f32.gmra.mxu0 %v306
        %v844 = vpop.f32.mrf.mxu0
        %v845 = vadd.f32 %v732, %v844
        %846 = vmatmul.f32.gmra.mxu0 %v309
        %v847 = vpop.f32.mrf.mxu0
        %v848 = vadd.f32 %v735, %v847
        %849 = vmatmul.f32.gmra.mxu0 %v311
        %v850 = vpop.f32.mrf.mxu0
        %v851 = vadd.f32 %v738, %v850
        %852 = vmatmul.f32.gmra.mxu0 %v314
        %v853 = vpop.f32.mrf.mxu0
        %v854 = vadd.f32 %v741, %v853
        %855 = vmatmul.f32.gmra.mxu0 %v316
        %v856 = vpop.f32.mrf.mxu0
        %v857 = vadd.f32 %v744, %v856
        %858 = vmatmul.f32.gmra.mxu0 %v319
        %v859 = vpop.f32.mrf.mxu0
        %v860 = vadd.f32 %v747, %v859
        %861 = vmatmul.f32.gmra.mxu0 %v321
        %v862 = vpop.f32.mrf.mxu0
        %v863 = vadd.f32 %v750, %v862
        %864 = vmatmul.f32.gmra.mxu0 %v324
        %v865 = vpop.f32.mrf.mxu0
        %v866 = vadd.f32 %v753, %v865
        %867 = vmatmul.f32.gmra.mxu0 %v326
        %v868 = vpop.f32.mrf.mxu0
        %v869 = vadd.f32 %v756, %v868
        %870 = vmatmul.f32.gmra.mxu0 %v329
        %v871 = vpop.f32.mrf.mxu0
        %v872 = vadd.f32 %v759, %v871
        %873 = vmatmul.f32.gmra.mxu0 %v331
        %v874 = vpop.f32.mrf.mxu0
        %v875 = vadd.f32 %v762, %v874
        %876 = vmatmul.f32.gmra.mxu0 %v334
        %v877 = vpop.f32.mrf.mxu0
        %v878 = vadd.f32 %v765, %v877
        %879 = vmatmul.f32.gmra.mxu0 %v336
        %v880 = vpop.f32.mrf.mxu0
        %v881 = vadd.f32 %v768, %v880
        %882 = vmatmul.f32.gmra.mxu0 %v339
        %v883 = vpop.f32.mrf.mxu0
        %v884 = vadd.f32 %v771, %v883
        %885 = vmatmul.f32.gmra.mxu0 %v341
        %v886 = vpop.f32.mrf.mxu0
        %v887 = vadd.f32 %v774, %v886
        %888 = vmatmul.f32.gmra.mxu0 %v344
        %v889 = vpop.f32.mrf.mxu0
        %v890 = vadd.f32 %v777, %v889
        %891 = vmatmul.f32.gmra.mxu0 %v346
        %v892 = vpop.f32.mrf.mxu0
        %v893 = vadd.f32 %v780, %v892
        %894 = vmatmul.f32.gmra.mxu0 %v349
        %v895 = vpop.f32.mrf.mxu0
        %v896 = vadd.f32 %v783, %v895
        %897 = vmatmul.f32.gmra.mxu0 %v351
        %v898 = vpop.f32.mrf.mxu0
        %v899 = vadd.f32 %v786, %v898
        %900 = vdwg.mxu0
        %901 = vmatpush.msra.mxu0 %v578
        %902 = vmatpush.msra.mxu0 %v577
        %903 = vmatpush.msra.mxu0 %v576
        %904 = vmatpush.msra.mxu0 %v575
        %905 = vmatpush.msra.mxu0 %v574
        %906 = vmatpush.msra.mxu0 %v573
        %907 = vmatpush.msra.mxu0 %v572
        %908 = vmatpush.msra.mxu0 %v571
        %909 = vmatpush.msra.mxu0 %v570
        %910 = vmatpush.msra.mxu0 %v569
        %911 = vmatpush.msra.mxu0 %v568
        %912 = vmatpush.msra.mxu0 %v567
        %913 = vmatpush.msra.mxu0 %v566
        %914 = vmatpush.msra.mxu0 %v565
        %915 = vmatpush.msra.mxu0 %v564
        %916 = vmatpush.msra.mxu0 %v563
        %917 = vmatmul.f32.gmra.mxu0 %v387
        %v918 = vpop.f32.mrf.mxu0
        %v919 = vadd.f32 %v806, %v918
        %920 = vmatmul.f32.gmra.mxu0 %v389
        %v921 = vpop.f32.mrf.mxu0
        %v922 = vadd.f32 %v809, %v921
        %923 = vmatmul.f32.gmra.mxu0 %v392
        %v924 = vpop.f32.mrf.mxu0
        %v925 = vadd.f32 %v812, %v924
        %926 = vmatmul.f32.gmra.mxu0 %v394
        %v927 = vpop.f32.mrf.mxu0
        %v928 = vadd.f32 %v815, %v927
        %929 = vmatmul.f32.gmra.mxu0 %v397
        %v930 = vpop.f32.mrf.mxu0
        %v931 = vadd.f32 %v818, %v930
        %932 = vmatmul.f32.gmra.mxu0 %v399
        %v933 = vpop.f32.mrf.mxu0
        %v934 = vadd.f32 %v821, %v933
        %935 = vmatmul.f32.gmra.mxu0 %v402
        %v936 = vpop.f32.mrf.mxu0
        %v937 = vadd.f32 %v824, %v936
        %938 = vmatmul.f32.gmra.mxu0 %v404
        %v939 = vpop.f32.mrf.mxu0
        %v940 = vadd.f32 %v827, %v939
        %941 = vmatmul.f32.gmra.mxu0 %v407
        %v942 = vpop.f32.mrf.mxu0
        %v943 = vadd.f32 %v830, %v942
        %944 = vmatmul.f32.gmra.mxu0 %v409
        %v945 = vpop.f32.mrf.mxu0
        %v946 = vadd.f32 %v833, %v945
        %947 = vmatmul.f32.gmra.mxu0 %v412
        %v948 = vpop.f32.mrf.mxu0
        %v949 = vadd.f32 %v836, %v948
        %950 = vmatmul.f32.gmra.mxu0 %v414
        %v951 = vpop.f32.mrf.mxu0
        %v952 = vadd.f32 %v839, %v951
        %953 = vmatmul.f32.gmra.mxu0 %v417
        %v954 = vpop.f32.mrf.mxu0
        %v955 = vadd.f32 %v842, %v954
        %956 = vmatmul.f32.gmra.mxu0 %v419
        %v957 = vpop.f32.mrf.mxu0
        %v958 = vadd.f32 %v845, %v957
        %959 = vmatmul.f32.gmra.mxu0 %v422
        %v960 = vpop.f32.mrf.mxu0
        %v961 = vadd.f32 %v848, %v960
        %962 = vmatmul.f32.gmra.mxu0 %v424
        %v963 = vpop.f32.mrf.mxu0
        %v964 = vadd.f32 %v851, %v963
        %965 = vmatmul.f32.gmra.mxu0 %v427
        %v966 = vpop.f32.mrf.mxu0
        %v967 = vadd.f32 %v854, %v966
        %968 = vmatmul.f32.gmra.mxu0 %v429
        %v969 = vpop.f32.mrf.mxu0
        %v970 = vadd.f32 %v857, %v969
        %971 = vmatmul.f32.gmra.mxu0 %v432
        %v972 = vpop.f32.mrf.mxu0
        %v973 = vadd.f32 %v860, %v972
        %974 = vmatmul.f32.gmra.mxu0 %v434
        %v975 = vpop.f32.mrf.mxu0
        %v976 = vadd.f32 %v863, %v975
        %977 = vmatmul.f32.gmra.mxu0 %v437
        %v978 = vpop.f32.mrf.mxu0
        %v979 = vadd.f32 %v866, %v978
        %980 = vmatmul.f32.gmra.mxu0 %v439
        %v981 = vpop.f32.mrf.mxu0
        %v982 = vadd.f32 %v869, %v981
        %983 = vmatmul.f32.gmra.mxu0 %v442
        %v984 = vpop.f32.mrf.mxu0
        %v985 = vadd.f32 %v872, %v984
        %986 = vmatmul.f32.gmra.mxu0 %v444
        %v987 = vpop.f32.mrf.mxu0
        %v988 = vadd.f32 %v875, %v987
        %989 = vmatmul.f32.gmra.mxu0 %v447
        %v990 = vpop.f32.mrf.mxu0
        %v991 = vadd.f32 %v878, %v990
        %992 = vmatmul.f32.gmra.mxu0 %v449
        %v993 = vpop.f32.mrf.mxu0
        %v994 = vadd.f32 %v881, %v993
        %995 = vmatmul.f32.gmra.mxu0 %v452
        %v996 = vpop.f32.mrf.mxu0
        %v997 = vadd.f32 %v884, %v996
        %998 = vmatmul.f32.gmra.mxu0 %v454
        %v999 = vpop.f32.mrf.mxu0
        %v1000 = vadd.f32 %v887, %v999
        %1001 = vmatmul.f32.gmra.mxu0 %v457
        %v1002 = vpop.f32.mrf.mxu0
        %v1003 = vadd.f32 %v890, %v1002
        %1004 = vmatmul.f32.gmra.mxu0 %v459
        %v1005 = vpop.f32.mrf.mxu0
        %v1006 = vadd.f32 %v893, %v1005
        %1007 = vmatmul.f32.gmra.mxu0 %v462
        %v1008 = vpop.f32.mrf.mxu0
        %v1009 = vadd.f32 %v896, %v1008
        %1010 = vmatmul.f32.gmra.mxu0 %v464
        %v1011 = vpop.f32.mrf.mxu0
        %v1012 = vadd.f32 %v899, %v1011
        %1013 = vdwg.mxu0
        %1014 = vmatpush.msra.mxu0 %v594
        %1015 = vmatpush.msra.mxu0 %v593
        %1016 = vmatpush.msra.mxu0 %v592
        %1017 = vmatpush.msra.mxu0 %v591
        %1018 = vmatpush.msra.mxu0 %v590
        %1019 = vmatpush.msra.mxu0 %v589
        %1020 = vmatpush.msra.mxu0 %v588
        %1021 = vmatpush.msra.mxu0 %v587
        %1022 = vmatpush.msra.mxu0 %v586
        %1023 = vmatpush.msra.mxu0 %v585
        %1024 = vmatpush.msra.mxu0 %v584
        %1025 = vmatpush.msra.mxu0 %v583
        %1026 = vmatpush.msra.mxu0 %v582
        %1027 = vmatpush.msra.mxu0 %v581
        %1028 = vmatpush.msra.mxu0 %v580
        %1029 = vmatpush.msra.mxu0 %v579
        %1030 = vmatmul.f32.gmra.mxu0 %v172
        %v1031 = vpop.f32.mrf.mxu0
        %v1032 = vadd.f32 %v919, %v1031
        %1033 = vmatmul.f32.gmra.mxu0 %v173
        %v1034 = vpop.f32.mrf.mxu0
        %v1035 = vadd.f32 %v922, %v1034
        %1036 = vmatmul.f32.gmra.mxu0 %v175
        %v1037 = vpop.f32.mrf.mxu0
        %v1038 = vadd.f32 %v925, %v1037
        %1039 = vmatmul.f32.gmra.mxu0 %v176
        %v1040 = vpop.f32.mrf.mxu0
        %v1041 = vadd.f32 %v928, %v1040
        %1042 = vmatmul.f32.gmra.mxu0 %v178
        %v1043 = vpop.f32.mrf.mxu0
        %v1044 = vadd.f32 %v931, %v1043
        %1045 = vmatmul.f32.gmra.mxu0 %v179
        %v1046 = vpop.f32.mrf.mxu0
        %v1047 = vadd.f32 %v934, %v1046
        %1048 = vmatmul.f32.gmra.mxu0 %v181
        %v1049 = vpop.f32.mrf.mxu0
        %v1050 = vadd.f32 %v937, %v1049
        %1051 = vmatmul.f32.gmra.mxu0 %v182
        %v1052 = vpop.f32.mrf.mxu0
        %v1053 = vadd.f32 %v940, %v1052
        %1054 = vmatmul.f32.gmra.mxu0 %v184
        %v1055 = vpop.f32.mrf.mxu0
        %v1056 = vadd.f32 %v943, %v1055
        %1057 = vmatmul.f32.gmra.mxu0 %v185
        %v1058 = vpop.f32.mrf.mxu0
        %v1059 = vadd.f32 %v946, %v1058
        %1060 = vmatmul.f32.gmra.mxu0 %v187
        %v1061 = vpop.f32.mrf.mxu0
        %v1062 = vadd.f32 %v949, %v1061
        %1063 = vmatmul.f32.gmra.mxu0 %v188
        %v1064 = vpop.f32.mrf.mxu0
        %v1065 = vadd.f32 %v952, %v1064
        %1066 = vmatmul.f32.gmra.mxu0 %v190
        %v1067 = vpop.f32.mrf.mxu0
        %v1068 = vadd.f32 %v955, %v1067
        %1069 = vmatmul.f32.gmra.mxu0 %v191
        %v1070 = vpop.f32.mrf.mxu0
        %v1071 = vadd.f32 %v958, %v1070
        %1072 = vmatmul.f32.gmra.mxu0 %v193
        %v1073 = vpop.f32.mrf.mxu0
        %v1074 = vadd.f32 %v961, %v1073
        %1075 = vmatmul.f32.gmra.mxu0 %v194
        %v1076 = vpop.f32.mrf.mxu0
        %v1077 = vadd.f32 %v964, %v1076
        %1078 = vmatmul.f32.gmra.mxu0 %v196
        %v1079 = vpop.f32.mrf.mxu0
        %v1080 = vadd.f32 %v967, %v1079
        %1081 = vmatmul.f32.gmra.mxu0 %v197
        %v1082 = vpop.f32.mrf.mxu0
        %v1083 = vadd.f32 %v970, %v1082
        %1084 = vmatmul.f32.gmra.mxu0 %v199
        %v1085 = vpop.f32.mrf.mxu0
        %v1086 = vadd.f32 %v973, %v1085
        %1087 = vmatmul.f32.gmra.mxu0 %v200
        %v1088 = vpop.f32.mrf.mxu0
        %v1089 = vadd.f32 %v976, %v1088
        %1090 = vmatmul.f32.gmra.mxu0 %v202
        %v1091 = vpop.f32.mrf.mxu0
        %v1092 = vadd.f32 %v979, %v1091
        %1093 = vmatmul.f32.gmra.mxu0 %v203
        %v1094 = vpop.f32.mrf.mxu0
        %v1095 = vadd.f32 %v982, %v1094
        %1096 = vmatmul.f32.gmra.mxu0 %v205
        %v1097 = vpop.f32.mrf.mxu0
        %v1098 = vadd.f32 %v985, %v1097
        %1099 = vmatmul.f32.gmra.mxu0 %v206
        %v1100 = vpop.f32.mrf.mxu0
        %v1101 = vadd.f32 %v988, %v1100
        %1102 = vmatmul.f32.gmra.mxu0 %v208
        %v1103 = vpop.f32.mrf.mxu0
        %v1104 = vadd.f32 %v991, %v1103
        %1105 = vmatmul.f32.gmra.mxu0 %v209
        %v1106 = vpop.f32.mrf.mxu0
        %v1107 = vadd.f32 %v994, %v1106
        %1108 = vmatmul.f32.gmra.mxu0 %v211
        %v1109 = vpop.f32.mrf.mxu0
        %v1110 = vadd.f32 %v997, %v1109
        %1111 = vmatmul.f32.gmra.mxu0 %v212
        %v1112 = vpop.f32.mrf.mxu0
        %v1113 = vadd.f32 %v1000, %v1112
        %1114 = vmatmul.f32.gmra.mxu0 %v214
        %v1115 = vpop.f32.mrf.mxu0
        %v1116 = vadd.f32 %v1003, %v1115
        %1117 = vmatmul.f32.gmra.mxu0 %v215
        %v1118 = vpop.f32.mrf.mxu0
        %v1119 = vadd.f32 %v1006, %v1118
        %1120 = vmatmul.f32.gmra.mxu0 %v217
        %v1121 = vpop.f32.mrf.mxu0
        %v1122 = vadd.f32 %v1009, %v1121
        %1123 = vmatmul.f32.gmra.mxu0 %v218
        %v1124 = vpop.f32.mrf.mxu0
        %v1125 = vadd.f32 %v1012, %v1124
        %1126 = vdwg.mxu0
        %1127 = vmatpush.msra.mxu0 %v610
        %1128 = vmatpush.msra.mxu0 %v609
        %1129 = vmatpush.msra.mxu0 %v608
        %1130 = vmatpush.msra.mxu0 %v607
        %1131 = vmatpush.msra.mxu0 %v606
        %1132 = vmatpush.msra.mxu0 %v605
        %1133 = vmatpush.msra.mxu0 %v604
        %1134 = vmatpush.msra.mxu0 %v603
        %1135 = vmatpush.msra.mxu0 %v602
        %1136 = vmatpush.msra.mxu0 %v601
        %1137 = vmatpush.msra.mxu0 %v600
        %1138 = vmatpush.msra.mxu0 %v599
        %1139 = vmatpush.msra.mxu0 %v598
        %1140 = vmatpush.msra.mxu0 %v597
        %1141 = vmatpush.msra.mxu0 %v596
        %1142 = vmatpush.msra.mxu0 %v595
        %1143 = vmatmul.f32.gmra.mxu0 %v279
        %v1144 = vpop.f32.mrf.mxu0
        %v1145 = vadd.f32 %v1032, %v1144
        %1146 = vmatmul.f32.gmra.mxu0 %v281
        %v1147 = vpop.f32.mrf.mxu0
        %v1148 = vadd.f32 %v1035, %v1147
        %1149 = vmatmul.f32.gmra.mxu0 %v284
        %v1150 = vpop.f32.mrf.mxu0
        %v1151 = vadd.f32 %v1038, %v1150
        %1152 = vmatmul.f32.gmra.mxu0 %v286
        %v1153 = vpop.f32.mrf.mxu0
        %v1154 = vadd.f32 %v1041, %v1153
        %1155 = vmatmul.f32.gmra.mxu0 %v289
        %v1156 = vpop.f32.mrf.mxu0
        %v1157 = vadd.f32 %v1044, %v1156
        %1158 = vmatmul.f32.gmra.mxu0 %v291
        %v1159 = vpop.f32.mrf.mxu0
        %v1160 = vadd.f32 %v1047, %v1159
        %1161 = vmatmul.f32.gmra.mxu0 %v294
        %v1162 = vpop.f32.mrf.mxu0
        %v1163 = vadd.f32 %v1050, %v1162
        %1164 = vmatmul.f32.gmra.mxu0 %v296
        %v1165 = vpop.f32.mrf.mxu0
        %v1166 = vadd.f32 %v1053, %v1165
        %1167 = vmatmul.f32.gmra.mxu0 %v299
        %v1168 = vpop.f32.mrf.mxu0
        %v1169 = vadd.f32 %v1056, %v1168
        %1170 = vmatmul.f32.gmra.mxu0 %v301
        %v1171 = vpop.f32.mrf.mxu0
        %v1172 = vadd.f32 %v1059, %v1171
        %1173 = vmatmul.f32.gmra.mxu0 %v304
        %v1174 = vpop.f32.mrf.mxu0
        %v1175 = vadd.f32 %v1062, %v1174
        %1176 = vmatmul.f32.gmra.mxu0 %v306
        %v1177 = vpop.f32.mrf.mxu0
        %v1178 = vadd.f32 %v1065, %v1177
        %1179 = vmatmul.f32.gmra.mxu0 %v309
        %v1180 = vpop.f32.mrf.mxu0
        %v1181 = vadd.f32 %v1068, %v1180
        %1182 = vmatmul.f32.gmra.mxu0 %v311
        %v1183 = vpop.f32.mrf.mxu0
        %v1184 = vadd.f32 %v1071, %v1183
        %1185 = vmatmul.f32.gmra.mxu0 %v314
        %v1186 = vpop.f32.mrf.mxu0
        %v1187 = vadd.f32 %v1074, %v1186
        %1188 = vmatmul.f32.gmra.mxu0 %v316
        %v1189 = vpop.f32.mrf.mxu0
        %v1190 = vadd.f32 %v1077, %v1189
        %1191 = vmatmul.f32.gmra.mxu0 %v319
        %v1192 = vpop.f32.mrf.mxu0
        %v1193 = vadd.f32 %v1080, %v1192
        %1194 = vmatmul.f32.gmra.mxu0 %v321
        %v1195 = vpop.f32.mrf.mxu0
        %v1196 = vadd.f32 %v1083, %v1195
        %1197 = vmatmul.f32.gmra.mxu0 %v324
        %v1198 = vpop.f32.mrf.mxu0
        %v1199 = vadd.f32 %v1086, %v1198
        %1200 = vmatmul.f32.gmra.mxu0 %v326
        %v1201 = vpop.f32.mrf.mxu0
        %v1202 = vadd.f32 %v1089, %v1201
        %1203 = vmatmul.f32.gmra.mxu0 %v329
        %v1204 = vpop.f32.mrf.mxu0
        %v1205 = vadd.f32 %v1092, %v1204
        %1206 = vmatmul.f32.gmra.mxu0 %v331
        %v1207 = vpop.f32.mrf.mxu0
        %v1208 = vadd.f32 %v1095, %v1207
        %1209 = vmatmul.f32.gmra.mxu0 %v334
        %v1210 = vpop.f32.mrf.mxu0
        %v1211 = vadd.f32 %v1098, %v1210
        %1212 = vmatmul.f32.gmra.mxu0 %v336
        %v1213 = vpop.f32.mrf.mxu0
        %v1214 = vadd.f32 %v1101, %v1213
        %1215 = vmatmul.f32.gmra.mxu0 %v339
        %v1216 = vpop.f32.mrf.mxu0
        %v1217 = vadd.f32 %v1104, %v1216
        %1218 = vmatmul.f32.gmra.mxu0 %v341
        %v1219 = vpop.f32.mrf.mxu0
        %v1220 = vadd.f32 %v1107, %v1219
        %1221 = vmatmul.f32.gmra.mxu0 %v344
        %v1222 = vpop.f32.mrf.mxu0
        %v1223 = vadd.f32 %v1110, %v1222
        %1224 = vmatmul.f32.gmra.mxu0 %v346
        %v1225 = vpop.f32.mrf.mxu0
        %v1226 = vadd.f32 %v1113, %v1225
        %1227 = vmatmul.f32.gmra.mxu0 %v349
        %v1228 = vpop.f32.mrf.mxu0
        %v1229 = vadd.f32 %v1116, %v1228
        %1230 = vmatmul.f32.gmra.mxu0 %v351
        %v1231 = vpop.f32.mrf.mxu0
        %v1232 = vadd.f32 %v1119, %v1231
        %1233 = vmatmul.f32.gmra.mxu0 %v502
        %v1234 = vpop.f32.mrf.mxu0
        %v1235 = vadd.f32 %v1122, %v1234
        %1236 = vmatmul.f32.gmra.mxu0 %v504
        %v1237 = vpop.f32.mrf.mxu0
        %v1238 = vadd.f32 %v1125, %v1237
        %1239 = vdwg.mxu0
        %1240 = vmatpush.msra.mxu0 %v626
        %1241 = vmatpush.msra.mxu0 %v625
        %1242 = vmatpush.msra.mxu0 %v624
        %1243 = vmatpush.msra.mxu0 %v623
        %1244 = vmatpush.msra.mxu0 %v622
        %1245 = vmatpush.msra.mxu0 %v621
        %1246 = vmatpush.msra.mxu0 %v620
        %1247 = vmatpush.msra.mxu0 %v619
        %1248 = vmatpush.msra.mxu0 %v618
        %1249 = vmatpush.msra.mxu0 %v617
        %1250 = vmatpush.msra.mxu0 %v616
        %1251 = vmatpush.msra.mxu0 %v615
        %1252 = vmatpush.msra.mxu0 %v614
        %1253 = vmatpush.msra.mxu0 %v613
        %1254 = vmatpush.msra.mxu0 %v612
        %1255 = vmatpush.msra.mxu0 %v611
        %1256 = vmatmul.f32.gmra.mxu0 %v392
        %v1257 = vpop.f32.mrf.mxu0
        %v1258 = vadd.f32 %v1145, %v1257
        %1259 = vmatmul.f32.gmra.mxu0 %v394
        %v1260 = vpop.f32.mrf.mxu0
        %v1261 = vadd.f32 %v1148, %v1260
        %1262 = vmatmul.f32.gmra.mxu0 %v397
        %v1263 = vpop.f32.mrf.mxu0
        %v1264 = vadd.f32 %v1151, %v1263
        %1265 = vmatmul.f32.gmra.mxu0 %v399
        %v1266 = vpop.f32.mrf.mxu0
        %v1267 = vadd.f32 %v1154, %v1266
        %1268 = vmatmul.f32.gmra.mxu0 %v402
        %v1269 = vpop.f32.mrf.mxu0
        %v1270 = vadd.f32 %v1157, %v1269
        %1271 = vmatmul.f32.gmra.mxu0 %v404
        %v1272 = vpop.f32.mrf.mxu0
        %v1273 = vadd.f32 %v1160, %v1272
        %1274 = vmatmul.f32.gmra.mxu0 %v407
        %v1275 = vpop.f32.mrf.mxu0
        %v1276 = vadd.f32 %v1163, %v1275
        %1277 = vmatmul.f32.gmra.mxu0 %v409
        %v1278 = vpop.f32.mrf.mxu0
        %v1279 = vadd.f32 %v1166, %v1278
        %1280 = vmatmul.f32.gmra.mxu0 %v412
        %v1281 = vpop.f32.mrf.mxu0
        %v1282 = vadd.f32 %v1169, %v1281
        %1283 = vmatmul.f32.gmra.mxu0 %v414
        %v1284 = vpop.f32.mrf.mxu0
        %v1285 = vadd.f32 %v1172, %v1284
        %1286 = vmatmul.f32.gmra.mxu0 %v417
        %v1287 = vpop.f32.mrf.mxu0
        %v1288 = vadd.f32 %v1175, %v1287
        %1289 = vmatmul.f32.gmra.mxu0 %v419
        %v1290 = vpop.f32.mrf.mxu0
        %v1291 = vadd.f32 %v1178, %v1290
        %1292 = vmatmul.f32.gmra.mxu0 %v422
        %v1293 = vpop.f32.mrf.mxu0
        %v1294 = vadd.f32 %v1181, %v1293
        %1295 = vmatmul.f32.gmra.mxu0 %v424
        %v1296 = vpop.f32.mrf.mxu0
        %v1297 = vadd.f32 %v1184, %v1296
        %1298 = vmatmul.f32.gmra.mxu0 %v427
        %v1299 = vpop.f32.mrf.mxu0
        %v1300 = vadd.f32 %v1187, %v1299
        %1301 = vmatmul.f32.gmra.mxu0 %v429
        %v1302 = vpop.f32.mrf.mxu0
        %v1303 = vadd.f32 %v1190, %v1302
        %1304 = vmatmul.f32.gmra.mxu0 %v432
        %v1305 = vpop.f32.mrf.mxu0
        %v1306 = vadd.f32 %v1193, %v1305
        %1307 = vmatmul.f32.gmra.mxu0 %v434
        %v1308 = vpop.f32.mrf.mxu0
        %v1309 = vadd.f32 %v1196, %v1308
        %1310 = vmatmul.f32.gmra.mxu0 %v437
        %v1311 = vpop.f32.mrf.mxu0
        %v1312 = vadd.f32 %v1199, %v1311
        %1313 = vmatmul.f32.gmra.mxu0 %v439
        %v1314 = vpop.f32.mrf.mxu0
        %v1315 = vadd.f32 %v1202, %v1314
        %1316 = vmatmul.f32.gmra.mxu0 %v442
        %v1317 = vpop.f32.mrf.mxu0
        %v1318 = vadd.f32 %v1205, %v1317
        %1319 = vmatmul.f32.gmra.mxu0 %v444
        %v1320 = vpop.f32.mrf.mxu0
        %v1321 = vadd.f32 %v1208, %v1320
        %1322 = vmatmul.f32.gmra.mxu0 %v447
        %v1323 = vpop.f32.mrf.mxu0
        %v1324 = vadd.f32 %v1211, %v1323
        %1325 = vmatmul.f32.gmra.mxu0 %v449
        %v1326 = vpop.f32.mrf.mxu0
        %v1327 = vadd.f32 %v1214, %v1326
        %1328 = vmatmul.f32.gmra.mxu0 %v452
        %v1329 = vpop.f32.mrf.mxu0
        %v1330 = vadd.f32 %v1217, %v1329
        %1331 = vmatmul.f32.gmra.mxu0 %v454
        %v1332 = vpop.f32.mrf.mxu0
        %v1333 = vadd.f32 %v1220, %v1332
        %1334 = vmatmul.f32.gmra.mxu0 %v457
        %v1335 = vpop.f32.mrf.mxu0
        %v1336 = vadd.f32 %v1223, %v1335
        %1337 = vmatmul.f32.gmra.mxu0 %v459
        %v1338 = vpop.f32.mrf.mxu0
        %v1339 = vadd.f32 %v1226, %v1338
        %1340 = vmatmul.f32.gmra.mxu0 %v462
        %v1341 = vpop.f32.mrf.mxu0
        %v1342 = vadd.f32 %v1229, %v1341
        %1343 = vmatmul.f32.gmra.mxu0 %v464
        %v1344 = vpop.f32.mrf.mxu0
        %v1345 = vadd.f32 %v1232, %v1344
        %1346 = vmatmul.f32.gmra.mxu0 %v509
        %v1347 = vpop.f32.mrf.mxu0
        %v1348 = vadd.f32 %v1235, %v1347
        %1349 = vmatmul.f32.gmra.mxu0 %v511
        %v1350 = vpop.f32.mrf.mxu0
        %v1351 = vadd.f32 %v1238, %v1350
        %1352 = vdwg.mxu0
        %1353 = vmatpush.msra.mxu0 %v642
        %1354 = vmatpush.msra.mxu0 %v641
        %1355 = vmatpush.msra.mxu0 %v640
        %1356 = vmatpush.msra.mxu0 %v639
        %1357 = vmatpush.msra.mxu0 %v638
        %1358 = vmatpush.msra.mxu0 %v637
        %1359 = vmatpush.msra.mxu0 %v636
        %1360 = vmatpush.msra.mxu0 %v635
        %1361 = vmatpush.msra.mxu0 %v634
        %1362 = vmatpush.msra.mxu0 %v633
        %1363 = vmatpush.msra.mxu0 %v632
        %1364 = vmatpush.msra.mxu0 %v631
        %1365 = vmatpush.msra.mxu0 %v630
        %1366 = vmatpush.msra.mxu0 %v629
        %1367 = vmatpush.msra.mxu0 %v628
        %1368 = vmatpush.msra.mxu0 %v627
        %1369 = vmatmul.f32.gmra.mxu0 %v175
        %v1370 = vpop.f32.mrf.mxu0
        %v1371 = vadd.f32 %v1258, %v1370
        %1372 = vmatmul.f32.gmra.mxu0 %v176
        %v1373 = vpop.f32.mrf.mxu0
        %v1374 = vadd.f32 %v1261, %v1373
        %1375 = vmatmul.f32.gmra.mxu0 %v178
        %v1376 = vpop.f32.mrf.mxu0
        %v1377 = vadd.f32 %v1264, %v1376
        %1378 = vmatmul.f32.gmra.mxu0 %v179
        %v1379 = vpop.f32.mrf.mxu0
        %v1380 = vadd.f32 %v1267, %v1379
        %1381 = vmatmul.f32.gmra.mxu0 %v181
        %v1382 = vpop.f32.mrf.mxu0
        %v1383 = vadd.f32 %v1270, %v1382
        %1384 = vmatmul.f32.gmra.mxu0 %v182
        %v1385 = vpop.f32.mrf.mxu0
        %v1386 = vadd.f32 %v1273, %v1385
        %1387 = vmatmul.f32.gmra.mxu0 %v184
        %v1388 = vpop.f32.mrf.mxu0
        %v1389 = vadd.f32 %v1276, %v1388
        %1390 = vmatmul.f32.gmra.mxu0 %v185
        %v1391 = vpop.f32.mrf.mxu0
        %v1392 = vadd.f32 %v1279, %v1391
        %1393 = vmatmul.f32.gmra.mxu0 %v187
        %v1394 = vpop.f32.mrf.mxu0
        %v1395 = vadd.f32 %v1282, %v1394
        %1396 = vmatmul.f32.gmra.mxu0 %v188
        %v1397 = vpop.f32.mrf.mxu0
        %v1398 = vadd.f32 %v1285, %v1397
        %1399 = vmatmul.f32.gmra.mxu0 %v190
        %v1400 = vpop.f32.mrf.mxu0
        %v1401 = vadd.f32 %v1288, %v1400
        %1402 = vmatmul.f32.gmra.mxu0 %v191
        %v1403 = vpop.f32.mrf.mxu0
        %v1404 = vadd.f32 %v1291, %v1403
        %1405 = vmatmul.f32.gmra.mxu0 %v193
        %v1406 = vpop.f32.mrf.mxu0
        %v1407 = vadd.f32 %v1294, %v1406
        %1408 = vmatmul.f32.gmra.mxu0 %v194
        %v1409 = vpop.f32.mrf.mxu0
        %v1410 = vadd.f32 %v1297, %v1409
        %1411 = vmatmul.f32.gmra.mxu0 %v196
        %v1412 = vpop.f32.mrf.mxu0
        %v1413 = vadd.f32 %v1300, %v1412
        %1414 = vmatmul.f32.gmra.mxu0 %v197
        %v1415 = vpop.f32.mrf.mxu0
        %v1416 = vadd.f32 %v1303, %v1415
        %1417 = vmatmul.f32.gmra.mxu0 %v199
        %v1418 = vpop.f32.mrf.mxu0
        %v1419 = vadd.f32 %v1306, %v1418
        %1420 = vmatmul.f32.gmra.mxu0 %v200
        %v1421 = vpop.f32.mrf.mxu0
        %v1422 = vadd.f32 %v1309, %v1421
        %1423 = vmatmul.f32.gmra.mxu0 %v202
        %v1424 = vpop.f32.mrf.mxu0
        %v1425 = vadd.f32 %v1312, %v1424
        %1426 = vmatmul.f32.gmra.mxu0 %v203
        %v1427 = vpop.f32.mrf.mxu0
        %v1428 = vadd.f32 %v1315, %v1427
        %1429 = vmatmul.f32.gmra.mxu0 %v205
        %v1430 = vpop.f32.mrf.mxu0
        %v1431 = vadd.f32 %v1318, %v1430
        %1432 = vmatmul.f32.gmra.mxu0 %v206
        %v1433 = vpop.f32.mrf.mxu0
        %v1434 = vadd.f32 %v1321, %v1433
        %1435 = vmatmul.f32.gmra.mxu0 %v208
        %v1436 = vpop.f32.mrf.mxu0
        %v1437 = vadd.f32 %v1324, %v1436
        %1438 = vmatmul.f32.gmra.mxu0 %v209
        %v1439 = vpop.f32.mrf.mxu0
        %v1440 = vadd.f32 %v1327, %v1439
        %1441 = vmatmul.f32.gmra.mxu0 %v211
        %v1442 = vpop.f32.mrf.mxu0
        %v1443 = vadd.f32 %v1330, %v1442
        %1444 = vmatmul.f32.gmra.mxu0 %v212
        %v1445 = vpop.f32.mrf.mxu0
        %v1446 = vadd.f32 %v1333, %v1445
        %1447 = vmatmul.f32.gmra.mxu0 %v214
        %v1448 = vpop.f32.mrf.mxu0
        %v1449 = vadd.f32 %v1336, %v1448
        %1450 = vmatmul.f32.gmra.mxu0 %v215
        %v1451 = vpop.f32.mrf.mxu0
        %v1452 = vadd.f32 %v1339, %v1451
        %1453 = vmatmul.f32.gmra.mxu0 %v217
        %v1454 = vpop.f32.mrf.mxu0
        %v1455 = vadd.f32 %v1342, %v1454
        %1456 = vmatmul.f32.gmra.mxu0 %v218
        %v1457 = vpop.f32.mrf.mxu0
        %v1458 = vadd.f32 %v1345, %v1457
        %1459 = vmatmul.f32.gmra.mxu0 %v220
        %v1460 = vpop.f32.mrf.mxu0
        %v1461 = vadd.f32 %v1348, %v1460
        %1462 = vmatmul.f32.gmra.mxu0 %v221
        %v1463 = vpop.f32.mrf.mxu0
        %v1464 = vadd.f32 %v1351, %v1463
        %1465 = vdwg.mxu0
        %1466 = vmatpush.msra.mxu0 %v658
        %1467 = vmatpush.msra.mxu0 %v657
        %1468 = vmatpush.msra.mxu0 %v656
        %1469 = vmatpush.msra.mxu0 %v655
        %1470 = vmatpush.msra.mxu0 %v654
        %1471 = vmatpush.msra.mxu0 %v653
        %1472 = vmatpush.msra.mxu0 %v652
        %1473 = vmatpush.msra.mxu0 %v651
        %1474 = vmatpush.msra.mxu0 %v650
        %1475 = vmatpush.msra.mxu0 %v649
        %1476 = vmatpush.msra.mxu0 %v648
        %1477 = vmatpush.msra.mxu0 %v647
        %1478 = vmatpush.msra.mxu0 %v646
        %1479 = vmatpush.msra.mxu0 %v645
        %1480 = vmatpush.msra.mxu0 %v644
        %1481 = vmatpush.msra.mxu0 %v643
        %1482 = vmatmul.f32.gmra.mxu0 %v284
        %v1483 = vpop.f32.mrf.mxu0
        %v1484 = vadd.f32 %v1371, %v1483
        %1485 = vmatmul.f32.gmra.mxu0 %v286
        %v1486 = vpop.f32.mrf.mxu0
        %v1487 = vadd.f32 %v1374, %v1486
        %1488 = vmatmul.f32.gmra.mxu0 %v289
        %v1489 = vpop.f32.mrf.mxu0
        %v1490 = vadd.f32 %v1377, %v1489
        %1491 = vmatmul.f32.gmra.mxu0 %v291
        %v1492 = vpop.f32.mrf.mxu0
        %v1493 = vadd.f32 %v1380, %v1492
        %1494 = vmatmul.f32.gmra.mxu0 %v294
        %v1495 = vpop.f32.mrf.mxu0
        %v1496 = vadd.f32 %v1383, %v1495
        %1497 = vmatmul.f32.gmra.mxu0 %v296
        %v1498 = vpop.f32.mrf.mxu0
        %v1499 = vadd.f32 %v1386, %v1498
        %1500 = vmatmul.f32.gmra.mxu0 %v299
        %v1501 = vpop.f32.mrf.mxu0
        %v1502 = vadd.f32 %v1389, %v1501
        %1503 = vmatmul.f32.gmra.mxu0 %v301
        %v1504 = vpop.f32.mrf.mxu0
        %v1505 = vadd.f32 %v1392, %v1504
        %1506 = vmatmul.f32.gmra.mxu0 %v304
        %v1507 = vpop.f32.mrf.mxu0
        %v1508 = vadd.f32 %v1395, %v1507
        %1509 = vmatmul.f32.gmra.mxu0 %v306
        %v1510 = vpop.f32.mrf.mxu0
        %v1511 = vadd.f32 %v1398, %v1510
        %1512 = vmatmul.f32.gmra.mxu0 %v309
        %v1513 = vpop.f32.mrf.mxu0
        %v1514 = vadd.f32 %v1401, %v1513
        %1515 = vmatmul.f32.gmra.mxu0 %v311
        %v1516 = vpop.f32.mrf.mxu0
        %v1517 = vadd.f32 %v1404, %v1516
        %1518 = vmatmul.f32.gmra.mxu0 %v314
        %v1519 = vpop.f32.mrf.mxu0
        %v1520 = vadd.f32 %v1407, %v1519
        %1521 = vmatmul.f32.gmra.mxu0 %v316
        %v1522 = vpop.f32.mrf.mxu0
        %v1523 = vadd.f32 %v1410, %v1522
        %1524 = vmatmul.f32.gmra.mxu0 %v319
        %v1525 = vpop.f32.mrf.mxu0
        %v1526 = vadd.f32 %v1413, %v1525
        %1527 = vmatmul.f32.gmra.mxu0 %v321
        %v1528 = vpop.f32.mrf.mxu0
        %v1529 = vadd.f32 %v1416, %v1528
        %1530 = vmatmul.f32.gmra.mxu0 %v324
        %v1531 = vpop.f32.mrf.mxu0
        %v1532 = vadd.f32 %v1419, %v1531
        %1533 = vmatmul.f32.gmra.mxu0 %v326
        %v1534 = vpop.f32.mrf.mxu0
        %v1535 = vadd.f32 %v1422, %v1534
        %1536 = vmatmul.f32.gmra.mxu0 %v329
        %v1537 = vpop.f32.mrf.mxu0
        %v1538 = vadd.f32 %v1425, %v1537
        %1539 = vmatmul.f32.gmra.mxu0 %v331
        %v1540 = vpop.f32.mrf.mxu0
        %v1541 = vadd.f32 %v1428, %v1540
        %1542 = vmatmul.f32.gmra.mxu0 %v334
        %v1543 = vpop.f32.mrf.mxu0
        %v1544 = vadd.f32 %v1431, %v1543
        %1545 = vmatmul.f32.gmra.mxu0 %v336
        %v1546 = vpop.f32.mrf.mxu0
        %v1547 = vadd.f32 %v1434, %v1546
        %1548 = vmatmul.f32.gmra.mxu0 %v339
        %v1549 = vpop.f32.mrf.mxu0
        %v1550 = vadd.f32 %v1437, %v1549
        %1551 = vmatmul.f32.gmra.mxu0 %v341
        %v1552 = vpop.f32.mrf.mxu0
        %v1553 = vadd.f32 %v1440, %v1552
        %1554 = vmatmul.f32.gmra.mxu0 %v344
        %v1555 = vpop.f32.mrf.mxu0
        %v1556 = vadd.f32 %v1443, %v1555
        %1557 = vmatmul.f32.gmra.mxu0 %v346
        %v1558 = vpop.f32.mrf.mxu0
        %v1559 = vadd.f32 %v1446, %v1558
        %1560 = vmatmul.f32.gmra.mxu0 %v349
        %v1561 = vpop.f32.mrf.mxu0
        %v1562 = vadd.f32 %v1449, %v1561
        %1563 = vmatmul.f32.gmra.mxu0 %v351
        %v1564 = vpop.f32.mrf.mxu0
        %v1565 = vadd.f32 %v1452, %v1564
        %1566 = vmatmul.f32.gmra.mxu0 %v502
        %v1567 = vpop.f32.mrf.mxu0
        %v1568 = vadd.f32 %v1455, %v1567
        %1569 = vmatmul.f32.gmra.mxu0 %v504
        %v1570 = vpop.f32.mrf.mxu0
        %v1571 = vadd.f32 %v1458, %v1570
        %1572 = vmatmul.f32.gmra.mxu0 %v519
        %v1573 = vpop.f32.mrf.mxu0
        %v1574 = vadd.f32 %v1461, %v1573
        %1575 = vmatmul.f32.gmra.mxu0 %v521
        %v1576 = vpop.f32.mrf.mxu0
        %v1577 = vadd.f32 %v1464, %v1576
        %1578 = vdwg.mxu0
        %1579 = vmatpush.msra.mxu0 %v674
        %1580 = vmatpush.msra.mxu0 %v673
        %1581 = vmatpush.msra.mxu0 %v672
        %1582 = vmatpush.msra.mxu0 %v671
        %1583 = vmatpush.msra.mxu0 %v670
        %1584 = vmatpush.msra.mxu0 %v669
        %1585 = vmatpush.msra.mxu0 %v668
        %1586 = vmatpush.msra.mxu0 %v667
        %1587 = vmatpush.msra.mxu0 %v666
        %1588 = vmatpush.msra.mxu0 %v665
        %1589 = vmatpush.msra.mxu0 %v664
        %1590 = vmatpush.msra.mxu0 %v663
        %1591 = vmatpush.msra.mxu0 %v662
        %1592 = vmatpush.msra.mxu0 %v661
        %1593 = vmatpush.msra.mxu0 %v660
        %1594 = vmatpush.msra.mxu0 %v659
        %1595 = vmatmul.f32.gmra.mxu0 %v397
        %v1596 = vpop.f32.mrf.mxu0
        %v1597 = vadd.f32 %v1484, %v1596
        %1598 = vmatmul.f32.gmra.mxu0 %v399
        %v1599 = vpop.f32.mrf.mxu0
        %v1600 = vadd.f32 %v1487, %v1599
        %1601 = vmatmul.f32.gmra.mxu0 %v402
        %v1602 = vpop.f32.mrf.mxu0
        %v1603 = vadd.f32 %v1490, %v1602
        %1604 = vmatmul.f32.gmra.mxu0 %v404
        %v1605 = vpop.f32.mrf.mxu0
        %v1606 = vadd.f32 %v1493, %v1605
        %1607 = vmatmul.f32.gmra.mxu0 %v407
        %v1608 = vpop.f32.mrf.mxu0
        %v1609 = vadd.f32 %v1496, %v1608
        %1610 = vmatmul.f32.gmra.mxu0 %v409
        %v1611 = vpop.f32.mrf.mxu0
        %v1612 = vadd.f32 %v1499, %v1611
        %1613 = vmatmul.f32.gmra.mxu0 %v412
        %v1614 = vpop.f32.mrf.mxu0
        %v1615 = vadd.f32 %v1502, %v1614
        %1616 = vmatmul.f32.gmra.mxu0 %v414
        %v1617 = vpop.f32.mrf.mxu0
        %v1618 = vadd.f32 %v1505, %v1617
        %1619 = vmatmul.f32.gmra.mxu0 %v417
        %v1620 = vpop.f32.mrf.mxu0
        %v1621 = vadd.f32 %v1508, %v1620
        %1622 = vmatmul.f32.gmra.mxu0 %v419
        %v1623 = vpop.f32.mrf.mxu0
        %v1624 = vadd.f32 %v1511, %v1623
        %1625 = vmatmul.f32.gmra.mxu0 %v422
        %v1626 = vpop.f32.mrf.mxu0
        %v1627 = vadd.f32 %v1514, %v1626
        %1628 = vmatmul.f32.gmra.mxu0 %v424
        %v1629 = vpop.f32.mrf.mxu0
        %v1630 = vadd.f32 %v1517, %v1629
        %1631 = vmatmul.f32.gmra.mxu0 %v427
        %v1632 = vpop.f32.mrf.mxu0
        %v1633 = vadd.f32 %v1520, %v1632
        %1634 = vmatmul.f32.gmra.mxu0 %v429
        %v1635 = vpop.f32.mrf.mxu0
        %v1636 = vadd.f32 %v1523, %v1635
        %1637 = vmatmul.f32.gmra.mxu0 %v432
        %v1638 = vpop.f32.mrf.mxu0
        %v1639 = vadd.f32 %v1526, %v1638
        %1640 = vmatmul.f32.gmra.mxu0 %v434
        %v1641 = vpop.f32.mrf.mxu0
        %v1642 = vadd.f32 %v1529, %v1641
        %1643 = vmatmul.f32.gmra.mxu0 %v437
        %v1644 = vpop.f32.mrf.mxu0
        %v1645 = vadd.f32 %v1532, %v1644
        %1646 = vmatmul.f32.gmra.mxu0 %v439
        %v1647 = vpop.f32.mrf.mxu0
        %v1648 = vadd.f32 %v1535, %v1647
        %1649 = vmatmul.f32.gmra.mxu0 %v442
        %v1650 = vpop.f32.mrf.mxu0
        %v1651 = vadd.f32 %v1538, %v1650
        %1652 = vmatmul.f32.gmra.mxu0 %v444
        %v1653 = vpop.f32.mrf.mxu0
        %v1654 = vadd.f32 %v1541, %v1653
        %1655 = vmatmul.f32.gmra.mxu0 %v447
        %v1656 = vpop.f32.mrf.mxu0
        %v1657 = vadd.f32 %v1544, %v1656
        %1658 = vmatmul.f32.gmra.mxu0 %v449
        %v1659 = vpop.f32.mrf.mxu0
        %v1660 = vadd.f32 %v1547, %v1659
        %1661 = vmatmul.f32.gmra.mxu0 %v452
        %v1662 = vpop.f32.mrf.mxu0
        %v1663 = vadd.f32 %v1550, %v1662
        %1664 = vmatmul.f32.gmra.mxu0 %v454
        %v1665 = vpop.f32.mrf.mxu0
        %v1666 = vadd.f32 %v1553, %v1665
        %1667 = vmatmul.f32.gmra.mxu0 %v457
        %v1668 = vpop.f32.mrf.mxu0
        %v1669 = vadd.f32 %v1556, %v1668
        %1670 = vmatmul.f32.gmra.mxu0 %v459
        %v1671 = vpop.f32.mrf.mxu0
        %v1672 = vadd.f32 %v1559, %v1671
        %1673 = vmatmul.f32.gmra.mxu0 %v462
        %v1674 = vpop.f32.mrf.mxu0
        %v1675 = vadd.f32 %v1562, %v1674
        %1676 = vmatmul.f32.gmra.mxu0 %v464
        %v1677 = vpop.f32.mrf.mxu0
        %v1678 = vadd.f32 %v1565, %v1677
        %1679 = vmatmul.f32.gmra.mxu0 %v509
        %v1680 = vpop.f32.mrf.mxu0
        %v1681 = vadd.f32 %v1568, %v1680
        %1682 = vmatmul.f32.gmra.mxu0 %v511
        %v1683 = vpop.f32.mrf.mxu0
        %v1684 = vadd.f32 %v1571, %v1683
        %1685 = vmatmul.f32.gmra.mxu0 %v526
        %v1686 = vpop.f32.mrf.mxu0
        %v1687 = vadd.f32 %v1574, %v1686
        %1688 = vmatmul.f32.gmra.mxu0 %v528
        %v1689 = vpop.f32.mrf.mxu0
        %v1690 = vadd.f32 %v1577, %v1689
        %1691 = vdwg.mxu0
        %v1692 = vmax.f32 %v1597, 0.0
        %v1693 = vmax.f32 %v1600, 0.0
        %v1694 = vmax.f32 %v1603, 0.0
        %v1695 = vmax.f32 %v1606, 0.0
        %v1696 = vmax.f32 %v1609, 0.0
        %v1697 = vmax.f32 %v1612, 0.0
        %v1698 = vmax.f32 %v1615, 0.0
        %v1699 = vmax.f32 %v1618, 0.0
        %v1700 = vmax.f32 %v1621, 0.0
        %v1701 = vmax.f32 %v1624, 0.0
        %v1702 = vmax.f32 %v1627, 0.0
        %v1703 = vmax.f32 %v1630, 0.0
        %v1704 = vmax.f32 %v1633, 0.0
        %v1705 = vmax.f32 %v1636, 0.0
        %v1706 = vmax.f32 %v1639, 0.0
        %v1707 = vmax.f32 %v1642, 0.0
        %v1708 = vmax.f32 %v1645, 0.0
        %v1709 = vmax.f32 %v1648, 0.0
        %v1710 = vmax.f32 %v1651, 0.0
        %v1711 = vmax.f32 %v1654, 0.0
        %v1712 = vmax.f32 %v1657, 0.0
        %v1713 = vmax.f32 %v1660, 0.0
        %v1714 = vmax.f32 %v1663, 0.0
        %v1715 = vmax.f32 %v1666, 0.0
        %v1716 = vmax.f32 %v1669, 0.0
        %v1717 = vmax.f32 %v1672, 0.0
        %v1718 = vmax.f32 %v1675, 0.0
        %v1719 = vmax.f32 %v1678, 0.0
        %v1720 = vmax.f32 %v1681, 0.0
        %v1721 = vmax.f32 %v1684, 0.0
        %v1722 = vmax.f32 %v1687, 0.0
        %v1723 = vmax.f32 %v1690, 0.0
        %vm1757 = vcmask 1040384
        %v1758 = vrot.slane 0.0, 7
        %v1759 = vsel %vm1757, %v1758, %v1758
        %v1760 = vrot.slane %v1692, 7
        %v1761 = vrot.slane %v1693, 7
        %v1762 = vsel %vm1757, %v1760, %v1761
        %v1763 = vrot.slane %v1694, 7
        %v1764 = vrot.slane %v1695, 7
        %v1765 = vsel %vm1757, %v1763, %v1764
        %v1766 = vrot.slane %v1696, 7
        %v1767 = vrot.slane %v1697, 7
        %v1768 = vsel %vm1757, %v1766, %v1767
        %v1769 = vrot.slane %v1698, 7
        %v1770 = vrot.slane %v1699, 7
        %v1771 = vsel %vm1757, %v1769, %v1770
        %v1772 = vrot.slane %v1700, 7
        %v1773 = vrot.slane %v1701, 7
        %v1774 = vsel %vm1757, %v1772, %v1773
        %v1775 = vrot.slane %v1702, 7
        %v1776 = vrot.slane %v1703, 7
        %v1777 = vsel %vm1757, %v1775, %v1776
        %v1778 = vrot.slane %v1704, 7
        %v1779 = vrot.slane %v1705, 7
        %v1780 = vsel %vm1757, %v1778, %v1779
        %v1781 = vrot.slane %v1706, 7
        %v1782 = vrot.slane %v1707, 7
        %v1783 = vsel %vm1757, %v1781, %v1782
        %v1784 = vrot.slane %v1708, 7
        %v1785 = vrot.slane %v1709, 7
        %v1786 = vsel %vm1757, %v1784, %v1785
        %v1787 = vrot.slane %v1710, 7
        %v1788 = vrot.slane %v1711, 7
        %v1789 = vsel %vm1757, %v1787, %v1788
        %v1790 = vrot.slane %v1712, 7
        %v1791 = vrot.slane %v1713, 7
        %v1792 = vsel %vm1757, %v1790, %v1791
        %v1793 = vrot.slane %v1714, 7
        %v1794 = vrot.slane %v1715, 7
        %v1795 = vsel %vm1757, %v1793, %v1794
        %v1796 = vrot.slane %v1716, 7
        %v1797 = vrot.slane %v1717, 7
        %v1798 = vsel %vm1757, %v1796, %v1797
        %v1799 = vrot.slane %v1718, 7
        %v1800 = vrot.slane %v1719, 7
        %v1801 = vsel %vm1757, %v1799, %v1800
        %v1802 = vrot.slane %v1720, 7
        %v1803 = vrot.slane %v1721, 7
        %v1804 = vsel %vm1757, %v1802, %v1803
        %v1805 = vrot.slane %v1722, 7
        %v1806 = vrot.slane %v1723, 7
        %v1807 = vsel %vm1757, %v1805, %v1806
        %v1858 = vsel %vm1757, 0.0, %v1758
        %v1859 = vsel %vm1757, 0.0, %v1760
        %v1860 = vsel %vm1757, 0.0, %v1763
        %v1861 = vsel %vm1757, 0.0, %v1766
        %v1862 = vsel %vm1757, 0.0, %v1769
        %v1863 = vsel %vm1757, 0.0, %v1772
        %v1864 = vsel %vm1757, 0.0, %v1775
        %v1865 = vsel %vm1757, 0.0, %v1778
        %v1866 = vsel %vm1757, 0.0, %v1781
        %v1867 = vsel %vm1757, 0.0, %v1784
        %v1868 = vsel %vm1757, 0.0, %v1787
        %v1869 = vsel %vm1757, 0.0, %v1790
        %v1870 = vsel %vm1757, 0.0, %v1793
        %v1871 = vsel %vm1757, 0.0, %v1796
        %v1872 = vsel %vm1757, 0.0, %v1799
        %v1873 = vsel %vm1757, 0.0, %v1802
        %v1874 = vsel %vm1757, 0.0, %v1805
        %v1875 = vsel %vm1757, %v1758, 0.0
        %v1876 = vsel %vm1757, %v1761, 0.0
        %v1877 = vsel %vm1757, %v1764, 0.0
        %v1878 = vsel %vm1757, %v1767, 0.0
        %v1879 = vsel %vm1757, %v1770, 0.0
        %v1880 = vsel %vm1757, %v1773, 0.0
        %v1881 = vsel %vm1757, %v1776, 0.0
        %v1882 = vsel %vm1757, %v1779, 0.0
        %v1883 = vsel %vm1757, %v1782, 0.0
        %v1884 = vsel %vm1757, %v1785, 0.0
        %v1885 = vsel %vm1757, %v1788, 0.0
        %v1886 = vsel %vm1757, %v1791, 0.0
        %v1887 = vsel %vm1757, %v1794, 0.0
        %v1888 = vsel %vm1757, %v1797, 0.0
        %v1889 = vsel %vm1757, %v1800, 0.0
        %v1890 = vsel %vm1757, %v1803, 0.0
        %v1891 = vsel %vm1757, %v1806, 0.0
        %v1924 = vrot.slane %v1858, 1
        %v1925 = vrot.slane %v1759, 1
        %v1926 = vsel %vm271, %v1924, %v1925
        %v1927 = vrot.slane %v1875, 1
        %v1928 = vsel %vm271, %v1925, %v1927
        %v1929 = vrot.slane %v1859, 1
        %v1930 = vrot.slane %v1762, 1
        %v1931 = vsel %vm271, %v1929, %v1930
        %v1932 = vrot.slane %v1876, 1
        %v1933 = vsel %vm271, %v1930, %v1932
        %v1934 = vrot.slane %v1860, 1
        %v1935 = vrot.slane %v1765, 1
        %v1936 = vsel %vm271, %v1934, %v1935
        %v1937 = vrot.slane %v1877, 1
        %v1938 = vsel %vm271, %v1935, %v1937
        %v1939 = vrot.slane %v1861, 1
        %v1940 = vrot.slane %v1768, 1
        %v1941 = vsel %vm271, %v1939, %v1940
        %v1942 = vrot.slane %v1878, 1
        %v1943 = vsel %vm271, %v1940, %v1942
        %v1944 = vrot.slane %v1862, 1
        %v1945 = vrot.slane %v1771, 1
        %v1946 = vsel %vm271, %v1944, %v1945
        %v1947 = vrot.slane %v1879, 1
        %v1948 = vsel %vm271, %v1945, %v1947
        %v1949 = vrot.slane %v1863, 1
        %v1950 = vrot.slane %v1774, 1
        %v1951 = vsel %vm271, %v1949, %v1950
        %v1952 = vrot.slane %v1880, 1
        %v1953 = vsel %vm271, %v1950, %v1952
        %v1954 = vrot.slane %v1864, 1
        %v1955 = vrot.slane %v1777, 1
        %v1956 = vsel %vm271, %v1954, %v1955
        %v1957 = vrot.slane %v1881, 1
        %v1958 = vsel %vm271, %v1955, %v1957
        %v1959 = vrot.slane %v1865, 1
        %v1960 = vrot.slane %v1780, 1
        %v1961 = vsel %vm271, %v1959, %v1960
        %v1962 = vrot.slane %v1882, 1
        %v1963 = vsel %vm271, %v1960, %v1962
        %v1964 = vrot.slane %v1866, 1
        %v1965 = vrot.slane %v1783, 1
        %v1966 = vsel %vm271, %v1964, %v1965
        %v1967 = vrot.slane %v1883, 1
        %v1968 = vsel %vm271, %v1965, %v1967
        %v1969 = vrot.slane %v1867, 1
        %v1970 = vrot.slane %v1786, 1
        %v1971 = vsel %vm271, %v1969, %v1970
        %v1972 = vrot.slane %v1884, 1
        %v1973 = vsel %vm271, %v1970, %v1972
        %v1974 = vrot.slane %v1868, 1
        %v1975 = vrot.slane %v1789, 1
        %v1976 = vsel %vm271, %v1974, %v1975
        %v1977 = vrot.slane %v1885, 1
        %v1978 = vsel %vm271, %v1975, %v1977
        %v1979 = vrot.slane %v1869, 1
        %v1980 = vrot.slane %v1792, 1
        %v1981 = vsel %vm271, %v1979, %v1980
        %v1982 = vrot.slane %v1886, 1
        %v1983 = vsel %vm271, %v1980, %v1982
        %v1984 = vrot.slane %v1870, 1
        %v1985 = vrot.slane %v1795, 1
        %v1986 = vsel %vm271, %v1984, %v1985
        %v1987 = vrot.slane %v1887, 1
        %v1988 = vsel %vm271, %v1985, %v1987
        %v1989 = vrot.slane %v1871, 1
        %v1990 = vrot.slane %v1798, 1
        %v1991 = vsel %vm271, %v1989, %v1990
        %v1992 = vrot.slane %v1888, 1
        %v1993 = vsel %vm271, %v1990, %v1992
        %v1994 = vrot.slane %v1872, 1
        %v1995 = vrot.slane %v1801, 1
        %v1996 = vsel %vm271, %v1994, %v1995
        %v1997 = vrot.slane %v1889, 1
        %v1998 = vsel %vm271, %v1995, %v1997
        %v1999 = vrot.slane %v1873, 1
        %v2000 = vrot.slane %v1804, 1
        %v2001 = vsel %vm271, %v1999, %v2000
        %v2002 = vrot.slane %v1890, 1
        %v2003 = vsel %vm271, %v2000, %v2002
        %v2036 = vrot.slane %v1858, 2
        %v2037 = vrot.slane %v1759, 2
        %v2038 = vsel %vm384, %v2036, %v2037
        %v2039 = vrot.slane %v1875, 2
        %v2040 = vsel %vm384, %v2037, %v2039
        %v2041 = vrot.slane %v1859, 2
        %v2042 = vrot.slane %v1762, 2
        %v2043 = vsel %vm384, %v2041, %v2042
        %v2044 = vrot.slane %v1876, 2
        %v2045 = vsel %vm384, %v2042, %v2044
        %v2046 = vrot.slane %v1860, 2
        %v2047 = vrot.slane %v1765, 2
        %v2048 = vsel %vm384, %v2046, %v2047
        %v2049 = vrot.slane %v1877, 2
        %v2050 = vsel %vm384, %v2047, %v2049
        %v2051 = vrot.slane %v1861, 2
        %v2052 = vrot.slane %v1768, 2
        %v2053 = vsel %vm384, %v2051, %v2052
        %v2054 = vrot.slane %v1878, 2
        %v2055 = vsel %vm384, %v2052, %v2054
        %v2056 = vrot.slane %v1862, 2
        %v2057 = vrot.slane %v1771, 2
        %v2058 = vsel %vm384, %v2056, %v2057
        %v2059 = vrot.slane %v1879, 2
        %v2060 = vsel %vm384, %v2057, %v2059
        %v2061 = vrot.slane %v1863, 2
        %v2062 = vrot.slane %v1774, 2
        %v2063 = vsel %vm384, %v2061, %v2062
        %v2064 = vrot.slane %v1880, 2
        %v2065 = vsel %vm384, %v2062, %v2064
        %v2066 = vrot.slane %v1864, 2
        %v2067 = vrot.slane %v1777, 2
        %v2068 = vsel %vm384, %v2066, %v2067
        %v2069 = vrot.slane %v1881, 2
        %v2070 = vsel %vm384, %v2067, %v2069
        %v2071 = vrot.slane %v1865, 2
        %v2072 = vrot.slane %v1780, 2
        %v2073 = vsel %vm384, %v2071, %v2072
        %v2074 = vrot.slane %v1882, 2
        %v2075 = vsel %vm384, %v2072, %v2074
        %v2076 = vrot.slane %v1866, 2
        %v2077 = vrot.slane %v1783, 2
        %v2078 = vsel %vm384, %v2076, %v2077
        %v2079 = vrot.slane %v1883, 2
        %v2080 = vsel %vm384, %v2077, %v2079
        %v2081 = vrot.slane %v1867, 2
        %v2082 = vrot.slane %v1786, 2
        %v2083 = vsel %vm384, %v2081, %v2082
        %v2084 = vrot.slane %v1884, 2
        %v2085 = vsel %vm384, %v2082, %v2084
        %v2086 = vrot.slane %v1868, 2
        %v2087 = vrot.slane %v1789, 2
        %v2088 = vsel %vm384, %v2086, %v2087
        %v2089 = vrot.slane %v1885, 2
        %v2090 = vsel %vm384, %v2087, %v2089
        %v2091 = vrot.slane %v1869, 2
        %v2092 = vrot.slane %v1792, 2
        %v2093 = vsel %vm384, %v2091, %v2092
        %v2094 = vrot.slane %v1886, 2
        %v2095 = vsel %vm384, %v2092, %v2094
        %v2096 = vrot.slane %v1870, 2
        %v2097 = vrot.slane %v1795, 2
        %v2098 = vsel %vm384, %v2096, %v2097
        %v2099 = vrot.slane %v1887, 2
        %v2100 = vsel %vm384, %v2097, %v2099
        %v2101 = vrot.slane %v1871, 2
        %v2102 = vrot.slane %v1798, 2
        %v2103 = vsel %vm384, %v2101, %v2102
        %v2104 = vrot.slane %v1888, 2
        %v2105 = vsel %vm384, %v2102, %v2104
        %v2106 = vrot.slane %v1872, 2
        %v2107 = vrot.slane %v1801, 2
        %v2108 = vsel %vm384, %v2106, %v2107
        %v2109 = vrot.slane %v1889, 2
        %v2110 = vsel %vm384, %v2107, %v2109
        %v2111 = vrot.slane %v1873, 2
        %v2112 = vrot.slane %v1804, 2
        %v2113 = vsel %vm384, %v2111, %v2112
        %v2114 = vrot.slane %v1890, 2
        %v2115 = vsel %vm384, %v2112, %v2114
        %v2150 = vrot.slane %v1874, 1
        %v2151 = vrot.slane %v1807, 1
        %v2152 = vsel %vm271, %v2150, %v2151
        %v2153 = vrot.slane %v1891, 1
        %v2154 = vsel %vm271, %v2151, %v2153
        %v2157 = vrot.slane %v1874, 2
        %v2158 = vrot.slane %v1807, 2
        %v2159 = vsel %vm384, %v2157, %v2158
        %v2160 = vrot.slane %v1891, 2
        %v2161 = vsel %vm384, %v2158, %v2160
        %v2164 = vld [vmem:[%s2] sm:$0xff]
        %v2165 = vld [vmem:[%s2 + $0x8] sm:$0xff]
        %v2166 = vld [vmem:[%s2 + $0x10] sm:$0xff]
        %v2167 = vld [vmem:[%s2 + $0x18] sm:$0xff]
        %v2168 = vld [vmem:[%s2 + $0x20] sm:$0xff]
        %v2169 = vld [vmem:[%s2 + $0x28] sm:$0xff]
        %v2170 = vld [vmem:[%s2 + $0x30] sm:$0xff]
        %v2171 = vld [vmem:[%s2 + $0x38] sm:$0xff]
        %v2172 = vld [vmem:[%s2 + $0x40] sm:$0xff]
        %v2173 = vld [vmem:[%s2 + $0x48] sm:$0xff]
        %v2174 = vld [vmem:[%s2 + $0x50] sm:$0xff]
        %v2175 = vld [vmem:[%s2 + $0x58] sm:$0xff]
        %v2176 = vld [vmem:[%s2 + $0x60] sm:$0xff]
        %v2177 = vld [vmem:[%s2 + $0x68] sm:$0xff]
        %v2178 = vld [vmem:[%s2 + $0x70] sm:$0xff]
        %v2179 = vld [vmem:[%s2 + $0x78] sm:$0xff]
        %v2180 = vld [vmem:[%s2 + $0x80] sm:$0xff]
        %v2181 = vld [vmem:[%s2 + $0x88] sm:$0xff]
        %v2182 = vld [vmem:[%s2 + $0x90] sm:$0xff]
        %v2183 = vld [vmem:[%s2 + $0x98] sm:$0xff]
        %v2184 = vld [vmem:[%s2 + $0xa0] sm:$0xff]
        %v2185 = vld [vmem:[%s2 + $0xa8] sm:$0xff]
        %v2186 = vld [vmem:[%s2 + $0xb0] sm:$0xff]
        %v2187 = vld [vmem:[%s2 + $0xb8] sm:$0xff]
        %v2188 = vld [vmem:[%s2 + $0xc0] sm:$0xff]
        %v2189 = vld [vmem:[%s2 + $0xc8] sm:$0xff]
        %v2190 = vld [vmem:[%s2 + $0xd0] sm:$0xff]
        %v2191 = vld [vmem:[%s2 + $0xd8] sm:$0xff]
        %v2192 = vld [vmem:[%s2 + $0xe0] sm:$0xff]
        %v2193 = vld [vmem:[%s2 + $0xe8] sm:$0xff]
        %v2194 = vld [vmem:[%s2 + $0xf0] sm:$0xff]
        %v2195 = vld [vmem:[%s2 + $0xf8] sm:$0xff]
        %v2196 = vld [vmem:[%s2 + $0x100] sm:$0xff]
        %v2197 = vld [vmem:[%s2 + $0x108] sm:$0xff]
        %v2198 = vld [vmem:[%s2 + $0x110] sm:$0xff]
        %v2199 = vld [vmem:[%s2 + $0x118] sm:$0xff]
        %v2200 = vld [vmem:[%s2 + $0x120] sm:$0xff]
        %v2201 = vld [vmem:[%s2 + $0x128] sm:$0xff]
        %v2202 = vld [vmem:[%s2 + $0x130] sm:$0xff]
        %v2203 = vld [vmem:[%s2 + $0x138] sm:$0xff]
        %v2204 = vld [vmem:[%s2 + $0x140] sm:$0xff]
        %v2205 = vld [vmem:[%s2 + $0x148] sm:$0xff]
        %v2206 = vld [vmem:[%s2 + $0x150] sm:$0xff]
        %v2207 = vld [vmem:[%s2 + $0x158] sm:$0xff]
        %v2208 = vld [vmem:[%s2 + $0x160] sm:$0xff]
        %v2209 = vld [vmem:[%s2 + $0x168] sm:$0xff]
        %v2210 = vld [vmem:[%s2 + $0x170] sm:$0xff]
        %v2211 = vld [vmem:[%s2 + $0x178] sm:$0xff]
        %v2212 = vld [vmem:[%s2 + $0x180] sm:$0xff]
        %v2213 = vld [vmem:[%s2 + $0x188] sm:$0xff]
        %v2214 = vld [vmem:[%s2 + $0x190] sm:$0xff]
        %v2215 = vld [vmem:[%s2 + $0x198] sm:$0xff]
        %v2216 = vld [vmem:[%s2 + $0x1a0] sm:$0xff]
        %v2217 = vld [vmem:[%s2 + $0x1a8] sm:$0xff]
        %v2218 = vld [vmem:[%s2 + $0x1b0] sm:$0xff]
        %v2219 = vld [vmem:[%s2 + $0x1b8] sm:$0xff]
        %v2220 = vld [vmem:[%s2 + $0x1c0] sm:$0xff]
        %v2221 = vld [vmem:[%s2 + $0x1c8] sm:$0xff]
        %v2222 = vld [vmem:[%s2 + $0x1d0] sm:$0xff]
        %v2223 = vld [vmem:[%s2 + $0x1d8] sm:$0xff]
        %v2224 = vld [vmem:[%s2 + $0x1e0] sm:$0xff]
        %v2225 = vld [vmem:[%s2 + $0x1e8] sm:$0xff]
        %v2226 = vld [vmem:[%s2 + $0x1f0] sm:$0xff]
        %v2227 = vld [vmem:[%s2 + $0x1f8] sm:$0xff]
        %v2228 = vld [vmem:[%s2 + $0x200] sm:$0xff]
        %v2229 = vld [vmem:[%s2 + $0x208] sm:$0xff]
        %v2230 = vld [vmem:[%s2 + $0x210] sm:$0xff]
        %v2231 = vld [vmem:[%s2 + $0x218] sm:$0xff]
        %v2232 = vld [vmem:[%s2 + $0x220] sm:$0xff]
        %v2233 = vld [vmem:[%s2 + $0x228] sm:$0xff]
        %v2234 = vld [vmem:[%s2 + $0x230] sm:$0xff]
        %v2235 = vld [vmem:[%s2 + $0x238] sm:$0xff]
        %v2236 = vld [vmem:[%s2 + $0x240] sm:$0xff]
        %v2237 = vld [vmem:[%s2 + $0x248] sm:$0xff]
        %v2238 = vld [vmem:[%s2 + $0x250] sm:$0xff]
        %v2239 = vld [vmem:[%s2 + $0x258] sm:$0xff]
        %v2240 = vld [vmem:[%s2 + $0x260] sm:$0xff]
        %v2241 = vld [vmem:[%s2 + $0x268] sm:$0xff]
        %v2242 = vld [vmem:[%s2 + $0x270] sm:$0xff]
        %v2243 = vld [vmem:[%s2 + $0x278] sm:$0xff]
        %v2244 = vld [vmem:[%s2 + $0x280] sm:$0xff]
        %v2245 = vld [vmem:[%s2 + $0x288] sm:$0xff]
        %v2246 = vld [vmem:[%s2 + $0x290] sm:$0xff]
        %v2247 = vld [vmem:[%s2 + $0x298] sm:$0xff]
        %v2248 = vld [vmem:[%s2 + $0x2a0] sm:$0xff]
        %v2249 = vld [vmem:[%s2 + $0x2a8] sm:$0xff]
        %v2250 = vld [vmem:[%s2 + $0x2b0] sm:$0xff]
        %v2251 = vld [vmem:[%s2 + $0x2b8] sm:$0xff]
        %v2252 = vld [vmem:[%s2 + $0x2c0] sm:$0xff]
        %v2253 = vld [vmem:[%s2 + $0x2c8] sm:$0xff]
        %v2254 = vld [vmem:[%s2 + $0x2d0] sm:$0xff]
        %v2255 = vld [vmem:[%s2 + $0x2d8] sm:$0xff]
        %v2256 = vld [vmem:[%s2 + $0x2e0] sm:$0xff]
        %v2257 = vld [vmem:[%s2 + $0x2e8] sm:$0xff]
        %v2258 = vld [vmem:[%s2 + $0x2f0] sm:$0xff]
        %v2259 = vld [vmem:[%s2 + $0x2f8] sm:$0xff]
        %v2260 = vld [vmem:[%s2 + $0x300] sm:$0xff]
        %v2261 = vld [vmem:[%s2 + $0x308] sm:$0xff]
        %v2262 = vld [vmem:[%s2 + $0x310] sm:$0xff]
        %v2263 = vld [vmem:[%s2 + $0x318] sm:$0xff]
        %v2264 = vld [vmem:[%s2 + $0x320] sm:$0xff]
        %v2265 = vld [vmem:[%s2 + $0x328] sm:$0xff]
        %v2266 = vld [vmem:[%s2 + $0x330] sm:$0xff]
        %v2267 = vld [vmem:[%s2 + $0x338] sm:$0xff]
        %v2268 = vld [vmem:[%s2 + $0x340] sm:$0xff]
        %v2269 = vld [vmem:[%s2 + $0x348] sm:$0xff]
        %v2270 = vld [vmem:[%s2 + $0x350] sm:$0xff]
        %v2271 = vld [vmem:[%s2 + $0x358] sm:$0xff]
        %v2272 = vld [vmem:[%s2 + $0x360] sm:$0xff]
        %v2273 = vld [vmem:[%s2 + $0x368] sm:$0xff]
        %v2274 = vld [vmem:[%s2 + $0x370] sm:$0xff]
        %v2275 = vld [vmem:[%s2 + $0x378] sm:$0xff]
        %v2276 = vld [vmem:[%s2 + $0x380] sm:$0xff]
        %v2277 = vld [vmem:[%s2 + $0x388] sm:$0xff]
        %v2278 = vld [vmem:[%s2 + $0x390] sm:$0xff]
        %v2279 = vld [vmem:[%s2 + $0x398] sm:$0xff]
        %v2280 = vld [vmem:[%s2 + $0x3a0] sm:$0xff]
        %v2281 = vld [vmem:[%s2 + $0x3a8] sm:$0xff]
        %v2282 = vld [vmem:[%s2 + $0x3b0] sm:$0xff]
        %v2283 = vld [vmem:[%s2 + $0x3b8] sm:$0xff]
        %v2284 = vld [vmem:[%s2 + $0x3c0] sm:$0xff]
        %v2285 = vld [vmem:[%s2 + $0x3c8] sm:$0xff]
        %v2286 = vld [vmem:[%s2 + $0x3d0] sm:$0xff]
        %v2287 = vld [vmem:[%s2 + $0x3d8] sm:$0xff]
        %v2288 = vld [vmem:[%s2 + $0x3e0] sm:$0xff]
        %v2289 = vld [vmem:[%s2 + $0x3e8] sm:$0xff]
        %v2290 = vld [vmem:[%s2 + $0x3f0] sm:$0xff]
        %v2291 = vld [vmem:[%s2 + $0x3f8] sm:$0xff]
        %v2292 = vld [vmem:[%s2 + $0x400] sm:$0xff]
        %v2293 = vld [vmem:[%s2 + $0x408] sm:$0xff]
        %v2294 = vld [vmem:[%s2 + $0x410] sm:$0xff]
        %v2295 = vld [vmem:[%s2 + $0x418] sm:$0xff]
        %v2296 = vld [vmem:[%s2 + $0x420] sm:$0xff]
        %v2297 = vld [vmem:[%s2 + $0x428] sm:$0xff]
        %v2298 = vld [vmem:[%s2 + $0x430] sm:$0xff]
        %v2299 = vld [vmem:[%s2 + $0x438] sm:$0xff]
        %v2300 = vld [vmem:[%s2 + $0x440] sm:$0xff]
        %v2301 = vld [vmem:[%s2 + $0x448] sm:$0xff]
        %v2302 = vld [vmem:[%s2 + $0x450] sm:$0xff]
        %v2303 = vld [vmem:[%s2 + $0x458] sm:$0xff]
        %v2304 = vld [vmem:[%s2 + $0x460] sm:$0xff]
        %v2305 = vld [vmem:[%s2 + $0x468] sm:$0xff]
        %v2306 = vld [vmem:[%s2 + $0x470] sm:$0xff]
        %v2307 = vld [vmem:[%s2 + $0x478] sm:$0xff]
        %2308 = vmatpush.msra.mxu0 %v2179
        %2309 = vmatpush.msra.mxu0 %v2178
        %2310 = vmatpush.msra.mxu0 %v2177
        %2311 = vmatpush.msra.mxu0 %v2176
        %2312 = vmatpush.msra.mxu0 %v2175
        %2313 = vmatpush.msra.mxu0 %v2174
        %2314 = vmatpush.msra.mxu0 %v2173
        %2315 = vmatpush.msra.mxu0 %v2172
        %2316 = vmatpush.msra.mxu0 %v2171
        %2317 = vmatpush.msra.mxu0 %v2170
        %2318 = vmatpush.msra.mxu0 %v2169
        %2319 = vmatpush.msra.mxu0 %v2168
        %2320 = vmatpush.msra.mxu0 %v2167
        %2321 = vmatpush.msra.mxu0 %v2166
        %2322 = vmatpush.msra.mxu0 %v2165
        %2323 = vmatpush.msra.mxu0 %v2164
        %2324 = vmatmul.f32.gmra.mxu0 %v1858
        %v2325 = vpop.f32.mrf.mxu0
        %v2326 = vadd.f32 %v279, %v2325
        %2327 = vmatmul.f32.gmra.mxu0 %v1759
        %v2328 = vpop.f32.mrf.mxu0
        %v2329 = vadd.f32 %v281, %v2328
        %2330 = vmatmul.f32.gmra.mxu0 %v1859
        %v2331 = vpop.f32.mrf.mxu0
        %v2332 = vadd.f32 %v284, %v2331
        %2333 = vmatmul.f32.gmra.mxu0 %v1762
        %v2334 = vpop.f32.mrf.mxu0
        %v2335 = vadd.f32 %v286, %v2334
        %2336 = vmatmul.f32.gmra.mxu0 %v1860
        %v2337 = vpop.f32.mrf.mxu0
        %v2338 = vadd.f32 %v289, %v2337
        %2339 = vmatmul.f32.gmra.mxu0 %v1765
        %v2340 = vpop.f32.mrf.mxu0
        %v2341 = vadd.f32 %v291, %v2340
        %2342 = vmatmul.f32.gmra.mxu0 %v1861
        %v2343 = vpop.f32.mrf.mxu0
        %v2344 = vadd.f32 %v294, %v2343
        %2345 = vmatmul.f32.gmra.mxu0 %v1768
        %v2346 = vpop.f32.mrf.mxu0
        %v2347 = vadd.f32 %v296, %v2346
        %2348 = vmatmul.f32.gmra.mxu0 %v1862
        %v2349 = vpop.f32.mrf.mxu0
        %v2350 = vadd.f32 %v299, %v2349
        %2351 = vmatmul.f32.gmra.mxu0 %v1771
        %v2352 = vpop.f32.mrf.mxu0
        %v2353 = vadd.f32 %v301, %v2352
        %2354 = vmatmul.f32.gmra.mxu0 %v1863
        %v2355 = vpop.f32.mrf.mxu0
        %v2356 = vadd.f32 %v304, %v2355
        %2357 = vmatmul.f32.gmra.mxu0 %v1774
        %v2358 = vpop.f32.mrf.mxu0
        %v2359 = vadd.f32 %v306, %v2358
        %2360 = vmatmul.f32.gmra.mxu0 %v1864
        %v2361 = vpop.f32.mrf.mxu0
        %v2362 = vadd.f32 %v309, %v2361
        %2363 = vmatmul.f32.gmra.mxu0 %v1777
        %v2364 = vpop.f32.mrf.mxu0
        %v2365 = vadd.f32 %v311, %v2364
        %2366 = vmatmul.f32.gmra.mxu0 %v1865
        %v2367 = vpop.f32.mrf.mxu0
        %v2368 = vadd.f32 %v314, %v2367
        %2369 = vmatmul.f32.gmra.mxu0 %v1780
        %v2370 = vpop.f32.mrf.mxu0
        %v2371 = vadd.f32 %v316, %v2370
        %2372 = vmatmul.f32.gmra.mxu0 %v1866
        %v2373 = vpop.f32.mrf.mxu0
        %v2374 = vadd.f32 %v319, %v2373
        %2375 = vmatmul.f32.gmra.mxu0 %v1783
        %v2376 = vpop.f32.mrf.mxu0
        %v2377 = vadd.f32 %v321, %v2376
        %2378 = vmatmul.f32.gmra.mxu0 %v1867
        %v2379 = vpop.f32.mrf.mxu0
        %v2380 = vadd.f32 %v324, %v2379
        %2381 = vmatmul.f32.gmra.mxu0 %v1786
        %v2382 = vpop.f32.mrf.mxu0
        %v2383 = vadd.f32 %v326, %v2382
        %2384 = vmatmul.f32.gmra.mxu0 %v1868
        %v2385 = vpop.f32.mrf.mxu0
        %v2386 = vadd.f32 %v329, %v2385
        %2387 = vmatmul.f32.gmra.mxu0 %v1789
        %v2388 = vpop.f32.mrf.mxu0
        %v2389 = vadd.f32 %v331, %v2388
        %2390 = vmatmul.f32.gmra.mxu0 %v1869
        %v2391 = vpop.f32.mrf.mxu0
        %v2392 = vadd.f32 %v334, %v2391
        %2393 = vmatmul.f32.gmra.mxu0 %v1792
        %v2394 = vpop.f32.mrf.mxu0
        %v2395 = vadd.f32 %v336, %v2394
        %2396 = vmatmul.f32.gmra.mxu0 %v1870
        %v2397 = vpop.f32.mrf.mxu0
        %v2398 = vadd.f32 %v339, %v2397
        %2399 = vmatmul.f32.gmra.mxu0 %v1795
        %v2400 = vpop.f32.mrf.mxu0
        %v2401 = vadd.f32 %v341, %v2400
        %2402 = vmatmul.f32.gmra.mxu0 %v1871
        %v2403 = vpop.f32.mrf.mxu0
        %v2404 = vadd.f32 %v344, %v2403
        %2405 = vmatmul.f32.gmra.mxu0 %v1798
        %v2406 = vpop.f32.mrf.mxu0
        %v2407 = vadd.f32 %v346, %v2406
        %2408 = vmatmul.f32.gmra.mxu0 %v1872
        %v2409 = vpop.f32.mrf.mxu0
        %v2410 = vadd.f32 %v349, %v2409
        %2411 = vmatmul.f32.gmra.mxu0 %v1801
        %v2412 = vpop.f32.mrf.mxu0
        %v2413 = vadd.f32 %v351, %v2412
        %2414 = vmatmul.f32.gmra.mxu0 %v1873
        %v2415 = vpop.f32.mrf.mxu0
        %v2416 = vadd.f32 %v502, %v2415
        %2417 = vmatmul.f32.gmra.mxu0 %v1804
        %v2418 = vpop.f32.mrf.mxu0
        %v2419 = vadd.f32 %v504, %v2418
        %2420 = vdwg.mxu0
        %2421 = vmatpush.msra.mxu0 %v2195
        %2422 = vmatpush.msra.mxu0 %v2194
        %2423 = vmatpush.msra.mxu0 %v2193
        %2424 = vmatpush.msra.mxu0 %v2192
        %2425 = vmatpush.msra.mxu0 %v2191
        %2426 = vmatpush.msra.mxu0 %v2190
        %2427 = vmatpush.msra.mxu0 %v2189
        %2428 = vmatpush.msra.mxu0 %v2188
        %2429 = vmatpush.msra.mxu0 %v2187
        %2430 = vmatpush.msra.mxu0 %v2186
        %2431 = vmatpush.msra.mxu0 %v2185
        %2432 = vmatpush.msra.mxu0 %v2184
        %2433 = vmatpush.msra.mxu0 %v2183
        %2434 = vmatpush.msra.mxu0 %v2182
        %2435 = vmatpush.msra.mxu0 %v2181
        %2436 = vmatpush.msra.mxu0 %v2180
        %2437 = vmatmul.f32.gmra.mxu0 %v1926
        %v2438 = vpop.f32.mrf.mxu0
        %v2439 = vadd.f32 %v2326, %v2438
        %2440 = vmatmul.f32.gmra.mxu0 %v1928
        %v2441 = vpop.f32.mrf.mxu0
        %v2442 = vadd.f32 %v2329, %v2441
        %2443 = vmatmul.f32.gmra.mxu0 %v1931
        %v2444 = vpop.f32.mrf.mxu0
        %v2445 = vadd.f32 %v2332, %v2444
        %2446 = vmatmul.f32.gmra.mxu0 %v1933
        %v2447 = vpop.f32.mrf.mxu0
        %v2448 = vadd.f32 %v2335, %v2447
        %2449 = vmatmul.f32.gmra.mxu0 %v1936
        %v2450 = vpop.f32.mrf.mxu0
        %v2451 = vadd.f32 %v2338, %v2450
        %2452 = vmatmul.f32.gmra.mxu0 %v1938
        %v2453 = vpop.f32.mrf.mxu0
        %v2454 = vadd.f32 %v2341, %v2453
        %2455 = vmatmul.f32.gmra.mxu0 %v1941
        %v2456 = vpop.f32.mrf.mxu0
        %v2457 = vadd.f32 %v2344, %v2456
        %2458 = vmatmul.f32.gmra.mxu0 %v1943
        %v2459 = vpop.f32.mrf.mxu0
        %v2460 = vadd.f32 %v2347, %v2459
        %2461 = vmatmul.f32.gmra.mxu0 %v1946
        %v2462 = vpop.f32.mrf.mxu0
        %v2463 = vadd.f32 %v2350, %v2462
        %2464 = vmatmul.f32.gmra.mxu0 %v1948
        %v2465 = vpop.f32.mrf.mxu0
        %v2466 = vadd.f32 %v2353, %v2465
        %2467 = vmatmul.f32.gmra.mxu0 %v1951
        %v2468 = vpop.f32.mrf.mxu0
        %v2469 = vadd.f32 %v2356, %v2468
        %2470 = vmatmul.f32.gmra.mxu0 %v1953
        %v2471 = vpop.f32.mrf.mxu0
        %v2472 = vadd.f32 %v2359, %v2471
        %2473 = vmatmul.f32.gmra.mxu0 %v1956
        %v2474 = vpop.f32.mrf.mxu0
        %v2475 = vadd.f32 %v2362, %v2474
        %2476 = vmatmul.f32.gmra.mxu0 %v1958
        %v2477 = vpop.f32.mrf.mxu0
        %v2478 = vadd.f32 %v2365, %v2477
        %2479 = vmatmul.f32.gmra.mxu0 %v1961
        %v2480 = vpop.f32.mrf.mxu0
        %v2481 = vadd.f32 %v2368, %v2480
        %2482 = vmatmul.f32.gmra.mxu0 %v1963
        %v2483 = vpop.f32.mrf.mxu0
        %v2484 = vadd.f32 %v2371, %v2483
        %2485 = vmatmul.f32.gmra.mxu0 %v1966
        %v2486 = vpop.f32.mrf.mxu0
        %v2487 = vadd.f32 %v2374, %v2486
        %2488 = vmatmul.f32.gmra.mxu0 %v1968
        %v2489 = vpop.f32.mrf.mxu0
        %v2490 = vadd.f32 %v2377, %v2489
        %2491 = vmatmul.f32.gmra.mxu0 %v1971
        %v2492 = vpop.f32.mrf.mxu0
        %v2493 = vadd.f32 %v2380, %v2492
        %2494 = vmatmul.f32.gmra.mxu0 %v1973
        %v2495 = vpop.f32.mrf.mxu0
        %v2496 = vadd.f32 %v2383, %v2495
        %2497 = vmatmul.f32.gmra.mxu0 %v1976
        %v2498 = vpop.f32.mrf.mxu0
        %v2499 = vadd.f32 %v2386, %v2498
        %2500 = vmatmul.f32.gmra.mxu0 %v1978
        %v2501 = vpop.f32.mrf.mxu0
        %v2502 = vadd.f32 %v2389, %v2501
        %2503 = vmatmul.f32.gmra.mxu0 %v1981
        %v2504 = vpop.f32.mrf.mxu0
        %v2505 = vadd.f32 %v2392, %v2504
        %2506 = vmatmul.f32.gmra.mxu0 %v1983
        %v2507 = vpop.f32.mrf.mxu0
        %v2508 = vadd.f32 %v2395, %v2507
        %2509 = vmatmul.f32.gmra.mxu0 %v1986
        %v2510 = vpop.f32.mrf.mxu0
        %v2511 = vadd.f32 %v2398, %v2510
        %2512 = vmatmul.f32.gmra.mxu0 %v1988
        %v2513 = vpop.f32.mrf.mxu0
        %v2514 = vadd.f32 %v2401, %v2513
        %2515 = vmatmul.f32.gmra.mxu0 %v1991
        %v2516 = vpop.f32.mrf.mxu0
        %v2517 = vadd.f32 %v2404, %v2516
        %2518 = vmatmul.f32.gmra.mxu0 %v1993
        %v2519 = vpop.f32.mrf.mxu0
        %v2520 = vadd.f32 %v2407, %v2519
        %2521 = vmatmul.f32.gmra.mxu0 %v1996
        %v2522 = vpop.f32.mrf.mxu0
        %v2523 = vadd.f32 %v2410, %v2522
        %2524 = vmatmul.f32.gmra.mxu0 %v1998
        %v2525 = vpop.f32.mrf.mxu0
        %v2526 = vadd.f32 %v2413, %v2525
        %2527 = vmatmul.f32.gmra.mxu0 %v2001
        %v2528 = vpop.f32.mrf.mxu0
        %v2529 = vadd.f32 %v2416, %v2528
        %2530 = vmatmul.f32.gmra.mxu0 %v2003
        %v2531 = vpop.f32.mrf.mxu0
        %v2532 = vadd.f32 %v2419, %v2531
        %2533 = vdwg.mxu0
        %2534 = vmatpush.msra.mxu0 %v2211
        %2535 = vmatpush.msra.mxu0 %v2210
        %2536 = vmatpush.msra.mxu0 %v2209
        %2537 = vmatpush.msra.mxu0 %v2208
        %2538 = vmatpush.msra.mxu0 %v2207
        %2539 = vmatpush.msra.mxu0 %v2206
        %2540 = vmatpush.msra.mxu0 %v2205
        %2541 = vmatpush.msra.mxu0 %v2204
        %2542 = vmatpush.msra.mxu0 %v2203
        %2543 = vmatpush.msra.mxu0 %v2202
        %2544 = vmatpush.msra.mxu0 %v2201
        %2545 = vmatpush.msra.mxu0 %v2200
        %2546 = vmatpush.msra.mxu0 %v2199
        %2547 = vmatpush.msra.mxu0 %v2198
        %2548 = vmatpush.msra.mxu0 %v2197
        %2549 = vmatpush.msra.mxu0 %v2196
        %2550 = vmatmul.f32.gmra.mxu0 %v2038
        %v2551 = vpop.f32.mrf.mxu0
        %v2552 = vadd.f32 %v2439, %v2551
        %2553 = vmatmul.f32.gmra.mxu0 %v2040
        %v2554 = vpop.f32.mrf.mxu0
        %v2555 = vadd.f32 %v2442, %v2554
        %2556 = vmatmul.f32.gmra.mxu0 %v2043
        %v2557 = vpop.f32.mrf.mxu0
        %v2558 = vadd.f32 %v2445, %v2557
        %2559 = vmatmul.f32.gmra.mxu0 %v2045
        %v2560 = vpop.f32.mrf.mxu0
        %v2561 = vadd.f32 %v2448, %v2560
        %2562 = vmatmul.f32.gmra.mxu0 %v2048
        %v2563 = vpop.f32.mrf.mxu0
        %v2564 = vadd.f32 %v2451, %v2563
        %2565 = vmatmul.f32.gmra.mxu0 %v2050
        %v2566 = vpop.f32.mrf.mxu0
        %v2567 = vadd.f32 %v2454, %v2566
        %2568 = vmatmul.f32.gmra.mxu0 %v2053
        %v2569 = vpop.f32.mrf.mxu0
        %v2570 = vadd.f32 %v2457, %v2569
        %2571 = vmatmul.f32.gmra.mxu0 %v2055
        %v2572 = vpop.f32.mrf.mxu0
        %v2573 = vadd.f32 %v2460, %v2572
        %2574 = vmatmul.f32.gmra.mxu0 %v2058
        %v2575 = vpop.f32.mrf.mxu0
        %v2576 = vadd.f32 %v2463, %v2575
        %2577 = vmatmul.f32.gmra.mxu0 %v2060
        %v2578 = vpop.f32.mrf.mxu0
        %v2579 = vadd.f32 %v2466, %v2578
        %2580 = vmatmul.f32.gmra.mxu0 %v2063
        %v2581 = vpop.f32.mrf.mxu0
        %v2582 = vadd.f32 %v2469, %v2581
        %2583 = vmatmul.f32.gmra.mxu0 %v2065
        %v2584 = vpop.f32.mrf.mxu0
        %v2585 = vadd.f32 %v2472, %v2584
        %2586 = vmatmul.f32.gmra.mxu0 %v2068
        %v2587 = vpop.f32.mrf.mxu0
        %v2588 = vadd.f32 %v2475, %v2587
        %2589 = vmatmul.f32.gmra.mxu0 %v2070
        %v2590 = vpop.f32.mrf.mxu0
        %v2591 = vadd.f32 %v2478, %v2590
        %2592 = vmatmul.f32.gmra.mxu0 %v2073
        %v2593 = vpop.f32.mrf.mxu0
        %v2594 = vadd.f32 %v2481, %v2593
        %2595 = vmatmul.f32.gmra.mxu0 %v2075
        %v2596 = vpop.f32.mrf.mxu0
        %v2597 = vadd.f32 %v2484, %v2596
        %2598 = vmatmul.f32.gmra.mxu0 %v2078
        %v2599 = vpop.f32.mrf.mxu0
        %v2600 = vadd.f32 %v2487, %v2599
        %2601 = vmatmul.f32.gmra.mxu0 %v2080
        %v2602 = vpop.f32.mrf.mxu0
        %v2603 = vadd.f32 %v2490, %v2602
        %2604 = vmatmul.f32.gmra.mxu0 %v2083
        %v2605 = vpop.f32.mrf.mxu0
        %v2606 = vadd.f32 %v2493, %v2605
        %2607 = vmatmul.f32.gmra.mxu0 %v2085
        %v2608 = vpop.f32.mrf.mxu0
        %v2609 = vadd.f32 %v2496, %v2608
        %2610 = vmatmul.f32.gmra.mxu0 %v2088
        %v2611 = vpop.f32.mrf.mxu0
        %v2612 = vadd.f32 %v2499, %v2611
        %2613 = vmatmul.f32.gmra.mxu0 %v2090
        %v2614 = vpop.f32.mrf.mxu0
        %v2615 = vadd.f32 %v2502, %v2614
        %2616 = vmatmul.f32.gmra.mxu0 %v2093
        %v2617 = vpop.f32.mrf.mxu0
        %v2618 = vadd.f32 %v2505, %v2617
        %2619 = vmatmul.f32.gmra.mxu0 %v2095
        %v2620 = vpop.f32.mrf.mxu0
        %v2621 = vadd.f32 %v2508, %v2620
        %2622 = vmatmul.f32.gmra.mxu0 %v2098
        %v2623 = vpop.f32.mrf.mxu0
        %v2624 = vadd.f32 %v2511, %v2623
        %2625 = vmatmul.f32.gmra.mxu0 %v2100
        %v2626 = vpop.f32.mrf.mxu0
        %v2627 = vadd.f32 %v2514, %v2626
        %2628 = vmatmul.f32.gmra.mxu0 %v2103
        %v2629 = vpop.f32.mrf.mxu0
        %v2630 = vadd.f32 %v2517, %v2629
        %2631 = vmatmul.f32.gmra.mxu0 %v2105
        %v2632 = vpop.f32.mrf.mxu0
        %v2633 = vadd.f32 %v2520, %v2632
        %2634 = vmatmul.f32.gmra.mxu0 %v2108
        %v2635 = vpop.f32.mrf.mxu0
        %v2636 = vadd.f32 %v2523, %v2635
        %2637 = vmatmul.f32.gmra.mxu0 %v2110
        %v2638 = vpop.f32.mrf.mxu0
        %v2639 = vadd.f32 %v2526, %v2638
        %2640 = vmatmul.f32.gmra.mxu0 %v2113
        %v2641 = vpop.f32.mrf.mxu0
        %v2642 = vadd.f32 %v2529, %v2641
        %2643 = vmatmul.f32.gmra.mxu0 %v2115
        %v2644 = vpop.f32.mrf.mxu0
        %v2645 = vadd.f32 %v2532, %v2644
        %2646 = vdwg.mxu0
        %2647 = vmatpush.msra.mxu0 %v2227
        %2648 = vmatpush.msra.mxu0 %v2226
        %2649 = vmatpush.msra.mxu0 %v2225
        %2650 = vmatpush.msra.mxu0 %v2224
        %2651 = vmatpush.msra.mxu0 %v2223
        %2652 = vmatpush.msra.mxu0 %v2222
        %2653 = vmatpush.msra.mxu0 %v2221
        %2654 = vmatpush.msra.mxu0 %v2220
        %2655 = vmatpush.msra.mxu0 %v2219
        %2656 = vmatpush.msra.mxu0 %v2218
        %2657 = vmatpush.msra.mxu0 %v2217
        %2658 = vmatpush.msra.mxu0 %v2216
        %2659 = vmatpush.msra.mxu0 %v2215
        %2660 = vmatpush.msra.mxu0 %v2214
        %2661 = vmatpush.msra.mxu0 %v2213
        %2662 = vmatpush.msra.mxu0 %v2212
        %2663 = vmatmul.f32.gmra.mxu0 %v1859
        %v2664 = vpop.f32.mrf.mxu0
        %v2665 = vadd.f32 %v2552, %v2664
        %2666 = vmatmul.f32.gmra.mxu0 %v1762
        %v2667 = vpop.f32.mrf.mxu0
        %v2668 = vadd.f32 %v2555, %v2667
        %2669 = vmatmul.f32.gmra.mxu0 %v1860
        %v2670 = vpop.f32.mrf.mxu0
        %v2671 = vadd.f32 %v2558, %v2670
        %2672 = vmatmul.f32.gmra.mxu0 %v1765
        %v2673 = vpop.f32.mrf.mxu0
        %v2674 = vadd.f32 %v2561, %v2673
        %2675 = vmatmul.f32.gmra.mxu0 %v1861
        %v2676 = vpop.f32.mrf.mxu0
        %v2677 = vadd.f32 %v2564, %v2676
        %2678 = vmatmul.f32.gmra.mxu0 %v1768
        %v2679 = vpop.f32.mrf.mxu0
        %v2680 = vadd.f32 %v2567, %v2679
        %2681 = vmatmul.f32.gmra.mxu0 %v1862
        %v2682 = vpop.f32.mrf.mxu0
        %v2683 = vadd.f32 %v2570, %v2682
        %2684 = vmatmul.f32.gmra.mxu0 %v1771
        %v2685 = vpop.f32.mrf.mxu0
        %v2686 = vadd.f32 %v2573, %v2685
        %2687 = vmatmul.f32.gmra.mxu0 %v1863
        %v2688 = vpop.f32.mrf.mxu0
        %v2689 = vadd.f32 %v2576, %v2688
        %2690 = vmatmul.f32.gmra.mxu0 %v1774
        %v2691 = vpop.f32.mrf.mxu0
        %v2692 = vadd.f32 %v2579, %v2691
        %2693 = vmatmul.f32.gmra.mxu0 %v1864
        %v2694 = vpop.f32.mrf.mxu0
        %v2695 = vadd.f32 %v2582, %v2694
        %2696 = vmatmul.f32.gmra.mxu0 %v1777
        %v2697 = vpop.f32.mrf.mxu0
        %v2698 = vadd.f32 %v2585, %v2697
        %2699 = vmatmul.f32.gmra.mxu0 %v1865
        %v2700 = vpop.f32.mrf.mxu0
        %v2701 = vadd.f32 %v2588, %v2700
        %2702 = vmatmul.f32.gmra.mxu0 %v1780
        %v2703 = vpop.f32.mrf.mxu0
        %v2704 = vadd.f32 %v2591, %v2703
        %2705 = vmatmul.f32.gmra.mxu0 %v1866
        %v2706 = vpop.f32.mrf.mxu0
        %v2707 = vadd.f32 %v2594, %v2706
        %2708 = vmatmul.f32.gmra.mxu0 %v1783
        %v2709 = vpop.f32.mrf.mxu0
        %v2710 = vadd.f32 %v2597, %v2709
        %2711 = vmatmul.f32.gmra.mxu0 %v1867
        %v2712 = vpop.f32.mrf.mxu0
        %v2713 = vadd.f32 %v2600, %v2712
        %2714 = vmatmul.f32.gmra.mxu0 %v1786
        %v2715 = vpop.f32.mrf.mxu0
        %v2716 = vadd.f32 %v2603, %v2715
        %2717 = vmatmul.f32.gmra.mxu0 %v1868
        %v2718 = vpop.f32.mrf.mxu0
        %v2719 = vadd.f32 %v2606, %v2718
        %2720 = vmatmul.f32.gmra.mxu0 %v1789
        %v2721 = vpop.f32.mrf.mxu0
        %v2722 = vadd.f32 %v2609, %v2721
        %2723 = vmatmul.f32.gmra.mxu0 %v1869
        %v2724 = vpop.f32.mrf.mxu0
        %v2725 = vadd.f32 %v2612, %v2724
        %2726 = vmatmul.f32.gmra.mxu0 %v1792
        %v2727 = vpop.f32.mrf.mxu0
        %v2728 = vadd.f32 %v2615, %v2727
        %2729 = vmatmul.f32.gmra.mxu0 %v1870
        %v2730 = vpop.f32.mrf.mxu0
        %v2731 = vadd.f32 %v2618, %v2730
        %2732 = vmatmul.f32.gmra.mxu0 %v1795
        %v2733 = vpop.f32.mrf.mxu0
        %v2734 = vadd.f32 %v2621, %v2733
        %2735 = vmatmul.f32.gmra.mxu0 %v1871
        %v2736 = vpop.f32.mrf.mxu0
        %v2737 = vadd.f32 %v2624, %v2736
        %2738 = vmatmul.f32.gmra.mxu0 %v1798
        %v2739 = vpop.f32.mrf.mxu0
        %v2740 = vadd.f32 %v2627, %v2739
        %2741 = vmatmul.f32.gmra.mxu0 %v1872
        %v2742 = vpop.f32.mrf.mxu0
        %v2743 = vadd.f32 %v2630, %v2742
        %2744 = vmatmul.f32.gmra.mxu0 %v1801
        %v2745 = vpop.f32.mrf.mxu0
        %v2746 = vadd.f32 %v2633, %v2745
        %2747 = vmatmul.f32.gmra.mxu0 %v1873
        %v2748 = vpop.f32.mrf.mxu0
        %v2749 = vadd.f32 %v2636, %v2748
        %2750 = vmatmul.f32.gmra.mxu0 %v1804
        %v2751 = vpop.f32.mrf.mxu0
        %v2752 = vadd.f32 %v2639, %v2751
        %2753 = vmatmul.f32.gmra.mxu0 %v1874
        %v2754 = vpop.f32.mrf.mxu0
        %v2755 = vadd.f32 %v2642, %v2754
        %2756 = vmatmul.f32.gmra.mxu0 %v1807
        %v2757 = vpop.f32.mrf.mxu0
        %v2758 = vadd.f32 %v2645, %v2757
        %2759 = vdwg.mxu0
        %2760 = vmatpush.msra.mxu0 %v2243
        %2761 = vmatpush.msra.mxu0 %v2242
        %2762 = vmatpush.msra.mxu0 %v2241
        %2763 = vmatpush.msra.mxu0 %v2240
        %2764 = vmatpush.msra.mxu0 %v2239
        %2765 = vmatpush.msra.mxu0 %v2238
        %2766 = vmatpush.msra.mxu0 %v2237
        %2767 = vmatpush.msra.mxu0 %v2236
        %2768 = vmatpush.msra.mxu0 %v2235
        %2769 = vmatpush.msra.mxu0 %v2234
        %2770 = vmatpush.msra.mxu0 %v2233
        %2771 = vmatpush.msra.mxu0 %v2232
        %2772 = vmatpush.msra.mxu0 %v2231
        %2773 = vmatpush.msra.mxu0 %v2230
        %2774 = vmatpush.msra.mxu0 %v2229
        %2775 = vmatpush.msra.mxu0 %v2228
        %2776 = vmatmul.f32.gmra.mxu0 %v1931
        %v2777 = vpop.f32.mrf.mxu0
        %v2778 = vadd.f32 %v2665, %v2777
        %2779 = vmatmul.f32.gmra.mxu0 %v1933
        %v2780 = vpop.f32.mrf.mxu0
        %v2781 = vadd.f32 %v2668, %v2780
        %2782 = vmatmul.f32.gmra.mxu0 %v1936
        %v2783 = vpop.f32.mrf.mxu0
        %v2784 = vadd.f32 %v2671, %v2783
        %2785 = vmatmul.f32.gmra.mxu0 %v1938
        %v2786 = vpop.f32.mrf.mxu0
        %v2787 = vadd.f32 %v2674, %v2786
        %2788 = vmatmul.f32.gmra.mxu0 %v1941
        %v2789 = vpop.f32.mrf.mxu0
        %v2790 = vadd.f32 %v2677, %v2789
        %2791 = vmatmul.f32.gmra.mxu0 %v1943
        %v2792 = vpop.f32.mrf.mxu0
        %v2793 = vadd.f32 %v2680, %v2792
        %2794 = vmatmul.f32.gmra.mxu0 %v1946
        %v2795 = vpop.f32.mrf.mxu0
        %v2796 = vadd.f32 %v2683, %v2795
        %2797 = vmatmul.f32.gmra.mxu0 %v1948
        %v2798 = vpop.f32.mrf.mxu0
        %v2799 = vadd.f32 %v2686, %v2798
        %2800 = vmatmul.f32.gmra.mxu0 %v1951
        %v2801 = vpop.f32.mrf.mxu0
        %v2802 = vadd.f32 %v2689, %v2801
        %2803 = vmatmul.f32.gmra.mxu0 %v1953
        %v2804 = vpop.f32.mrf.mxu0
        %v2805 = vadd.f32 %v2692, %v2804
        %2806 = vmatmul.f32.gmra.mxu0 %v1956
        %v2807 = vpop.f32.mrf.mxu0
        %v2808 = vadd.f32 %v2695, %v2807
        %2809 = vmatmul.f32.gmra.mxu0 %v1958
        %v2810 = vpop.f32.mrf.mxu0
        %v2811 = vadd.f32 %v2698, %v2810
        %2812 = vmatmul.f32.gmra.mxu0 %v1961
        %v2813 = vpop.f32.mrf.mxu0
        %v2814 = vadd.f32 %v2701, %v2813
        %2815 = vmatmul.f32.gmra.mxu0 %v1963
        %v2816 = vpop.f32.mrf.mxu0
        %v2817 = vadd.f32 %v2704, %v2816
        %2818 = vmatmul.f32.gmra.mxu0 %v1966
        %v2819 = vpop.f32.mrf.mxu0
        %v2820 = vadd.f32 %v2707, %v2819
        %2821 = vmatmul.f32.gmra.mxu0 %v1968
        %v2822 = vpop.f32.mrf.mxu0
        %v2823 = vadd.f32 %v2710, %v2822
        %2824 = vmatmul.f32.gmra.mxu0 %v1971
        %v2825 = vpop.f32.mrf.mxu0
        %v2826 = vadd.f32 %v2713, %v2825
        %2827 = vmatmul.f32.gmra.mxu0 %v1973
        %v2828 = vpop.f32.mrf.mxu0
        %v2829 = vadd.f32 %v2716, %v2828
        %2830 = vmatmul.f32.gmra.mxu0 %v1976
        %v2831 = vpop.f32.mrf.mxu0
        %v2832 = vadd.f32 %v2719, %v2831
        %2833 = vmatmul.f32.gmra.mxu0 %v1978
        %v2834 = vpop.f32.mrf.mxu0
        %v2835 = vadd.f32 %v2722, %v2834
        %2836 = vmatmul.f32.gmra.mxu0 %v1981
        %v2837 = vpop.f32.mrf.mxu0
        %v2838 = vadd.f32 %v2725, %v2837
        %2839 = vmatmul.f32.gmra.mxu0 %v1983
        %v2840 = vpop.f32.mrf.mxu0
        %v2841 = vadd.f32 %v2728, %v2840
        %2842 = vmatmul.f32.gmra.mxu0 %v1986
        %v2843 = vpop.f32.mrf.mxu0
        %v2844 = vadd.f32 %v2731, %v2843
        %2845 = vmatmul.f32.gmra.mxu0 %v1988
        %v2846 = vpop.f32.mrf.mxu0
        %v2847 = vadd.f32 %v2734, %v2846
        %2848 = vmatmul.f32.gmra.mxu0 %v1991
        %v2849 = vpop.f32.mrf.mxu0
        %v2850 = vadd.f32 %v2737, %v2849
        %2851 = vmatmul.f32.gmra.mxu0 %v1993
        %v2852 = vpop.f32.mrf.mxu0
        %v2853 = vadd.f32 %v2740, %v2852
        %2854 = vmatmul.f32.gmra.mxu0 %v1996
        %v2855 = vpop.f32.mrf.mxu0
        %v2856 = vadd.f32 %v2743, %v2855
        %2857 = vmatmul.f32.gmra.mxu0 %v1998
        %v2858 = vpop.f32.mrf.mxu0
        %v2859 = vadd.f32 %v2746, %v2858
        %2860 = vmatmul.f32.gmra.mxu0 %v2001
        %v2861 = vpop.f32.mrf.mxu0
        %v2862 = vadd.f32 %v2749, %v2861
        %2863 = vmatmul.f32.gmra.mxu0 %v2003
        %v2864 = vpop.f32.mrf.mxu0
        %v2865 = vadd.f32 %v2752, %v2864
        %2866 = vmatmul.f32.gmra.mxu0 %v2152
        %v2867 = vpop.f32.mrf.mxu0
        %v2868 = vadd.f32 %v2755, %v2867
        %2869 = vmatmul.f32.gmra.mxu0 %v2154
        %v2870 = vpop.f32.mrf.mxu0
        %v2871 = vadd.f32 %v2758, %v2870
        %2872 = vdwg.mxu0
        %2873 = vmatpush.msra.mxu0 %v2259
        %2874 = vmatpush.msra.mxu0 %v2258
        %2875 = vmatpush.msra.mxu0 %v2257
        %2876 = vmatpush.msra.mxu0 %v2256
        %2877 = vmatpush.msra.mxu0 %v2255
        %2878 = vmatpush.msra.mxu0 %v2254
        %2879 = vmatpush.msra.mxu0 %v2253
        %2880 = vmatpush.msra.mxu0 %v2252
        %2881 = vmatpush.msra.mxu0 %v2251
        %2882 = vmatpush.msra.mxu0 %v2250
        %2883 = vmatpush.msra.mxu0 %v2249
        %2884 = vmatpush.msra.mxu0 %v2248
        %2885 = vmatpush.msra.mxu0 %v2247
        %2886 = vmatpush.msra.mxu0 %v2246
        %2887 = vmatpush.msra.mxu0 %v2245
        %2888 = vmatpush.msra.mxu0 %v2244
        %2889 = vmatmul.f32.gmra.mxu0 %v2043
        %v2890 = vpop.f32.mrf.mxu0
        %v2891 = vadd.f32 %v2778, %v2890
        %2892 = vmatmul.f32.gmra.mxu0 %v2045
        %v2893 = vpop.f32.mrf.mxu0
        %v2894 = vadd.f32 %v2781, %v2893
        %2895 = vmatmul.f32.gmra.mxu0 %v2048
        %v2896 = vpop.f32.mrf.mxu0
        %v2897 = vadd.f32 %v2784, %v2896
        %2898 = vmatmul.f32.gmra.mxu0 %v2050
        %v2899 = vpop.f32.mrf.mxu0
        %v2900 = vadd.f32 %v2787, %v2899
        %2901 = vmatmul.f32.gmra.mxu0 %v2053
        %v2902 = vpop.f32.mrf.mxu0
        %v2903 = vadd.f32 %v2790, %v2902
        %2904 = vmatmul.f32.gmra.mxu0 %v2055
        %v2905 = vpop.f32.mrf.mxu0
        %v2906 = vadd.f32 %v2793, %v2905
        %2907 = vmatmul.f32.gmra.mxu0 %v2058
        %v2908 = vpop.f32.mrf.mxu0
        %v2909 = vadd.f32 %v2796, %v2908
        %2910 = vmatmul.f32.gmra.mxu0 %v2060
        %v2911 = vpop.f32.mrf.mxu0
        %v2912 = vadd.f32 %v2799, %v2911
        %2913 = vmatmul.f32.gmra.mxu0 %v2063
        %v2914 = vpop.f32.mrf.mxu0
        %v2915 = vadd.f32 %v2802, %v2914
        %2916 = vmatmul.f32.gmra.mxu0 %v2065
        %v2917 = vpop.f32.mrf.mxu0
        %v2918 = vadd.f32 %v2805, %v2917
        %2919 = vmatmul.f32.gmra.mxu0 %v2068
        %v2920 = vpop.f32.mrf.mxu0
        %v2921 = vadd.f32 %v2808, %v2920
        %2922 = vmatmul.f32.gmra.mxu0 %v2070
        %v2923 = vpop.f32.mrf.mxu0
        %v2924 = vadd.f32 %v2811, %v2923
        %2925 = vmatmul.f32.gmra.mxu0 %v2073
        %v2926 = vpop.f32.mrf.mxu0
        %v2927 = vadd.f32 %v2814, %v2926
        %2928 = vmatmul.f32.gmra.mxu0 %v2075
        %v2929 = vpop.f32.mrf.mxu0
        %v2930 = vadd.f32 %v2817, %v2929
        %2931 = vmatmul.f32.gmra.mxu0 %v2078
        %v2932 = vpop.f32.mrf.mxu0
        %v2933 = vadd.f32 %v2820, %v2932
        %2934 = vmatmul.f32.gmra.mxu0 %v2080
        %v2935 = vpop.f32.mrf.mxu0
        %v2936 = vadd.f32 %v2823, %v2935
        %2937 = vmatmul.f32.gmra.mxu0 %v2083
        %v2938 = vpop.f32.mrf.mxu0
        %v2939 = vadd.f32 %v2826, %v2938
        %2940 = vmatmul.f32.gmra.mxu0 %v2085
        %v2941 = vpop.f32.mrf.mxu0
        %v2942 = vadd.f32 %v2829, %v2941
        %2943 = vmatmul.f32.gmra.mxu0 %v2088
        %v2944 = vpop.f32.mrf.mxu0
        %v2945 = vadd.f32 %v2832, %v2944
        %2946 = vmatmul.f32.gmra.mxu0 %v2090
        %v2947 = vpop.f32.mrf.mxu0
        %v2948 = vadd.f32 %v2835, %v2947
        %2949 = vmatmul.f32.gmra.mxu0 %v2093
        %v2950 = vpop.f32.mrf.mxu0
        %v2951 = vadd.f32 %v2838, %v2950
        %2952 = vmatmul.f32.gmra.mxu0 %v2095
        %v2953 = vpop.f32.mrf.mxu0
        %v2954 = vadd.f32 %v2841, %v2953
        %2955 = vmatmul.f32.gmra.mxu0 %v2098
        %v2956 = vpop.f32.mrf.mxu0
        %v2957 = vadd.f32 %v2844, %v2956
        %2958 = vmatmul.f32.gmra.mxu0 %v2100
        %v2959 = vpop.f32.mrf.mxu0
        %v2960 = vadd.f32 %v2847, %v2959
        %2961 = vmatmul.f32.gmra.mxu0 %v2103
        %v2962 = vpop.f32.mrf.mxu0
        %v2963 = vadd.f32 %v2850, %v2962
        %2964 = vmatmul.f32.gmra.mxu0 %v2105
        %v2965 = vpop.f32.mrf.mxu0
        %v2966 = vadd.f32 %v2853, %v2965
        %2967 = vmatmul.f32.gmra.mxu0 %v2108
        %v2968 = vpop.f32.mrf.mxu0
        %v2969 = vadd.f32 %v2856, %v2968
        %2970 = vmatmul.f32.gmra.mxu0 %v2110
        %v2971 = vpop.f32.mrf.mxu0
        %v2972 = vadd.f32 %v2859, %v2971
        %2973 = vmatmul.f32.gmra.mxu0 %v2113
        %v2974 = vpop.f32.mrf.mxu0
        %v2975 = vadd.f32 %v2862, %v2974
        %2976 = vmatmul.f32.gmra.mxu0 %v2115
        %v2977 = vpop.f32.mrf.mxu0
        %v2978 = vadd.f32 %v2865, %v2977
        %2979 = vmatmul.f32.gmra.mxu0 %v2159
        %v2980 = vpop.f32.mrf.mxu0
        %v2981 = vadd.f32 %v2868, %v2980
        %2982 = vmatmul.f32.gmra.mxu0 %v2161
        %v2983 = vpop.f32.mrf.mxu0
        %v2984 = vadd.f32 %v2871, %v2983
        %2985 = vdwg.mxu0
        %2986 = vmatpush.msra.mxu0 %v2275
        %2987 = vmatpush.msra.mxu0 %v2274
        %2988 = vmatpush.msra.mxu0 %v2273
        %2989 = vmatpush.msra.mxu0 %v2272
        %2990 = vmatpush.msra.mxu0 %v2271
        %2991 = vmatpush.msra.mxu0 %v2270
        %2992 = vmatpush.msra.mxu0 %v2269
        %2993 = vmatpush.msra.mxu0 %v2268
        %2994 = vmatpush.msra.mxu0 %v2267
        %2995 = vmatpush.msra.mxu0 %v2266
        %2996 = vmatpush.msra.mxu0 %v2265
        %2997 = vmatpush.msra.mxu0 %v2264
        %2998 = vmatpush.msra.mxu0 %v2263
        %2999 = vmatpush.msra.mxu0 %v2262
        %3000 = vmatpush.msra.mxu0 %v2261
        %3001 = vmatpush.msra.mxu0 %v2260
        %3002 = vmatmul.f32.gmra.mxu0 %v1860
        %v3003 = vpop.f32.mrf.mxu0
        %v3004 = vadd.f32 %v2891, %v3003
        %3005 = vmatmul.f32.gmra.mxu0 %v1765
        %v3006 = vpop.f32.mrf.mxu0
        %v3007 = vadd.f32 %v2894, %v3006
        %3008 = vmatmul.f32.gmra.mxu0 %v1861
        %v3009 = vpop.f32.mrf.mxu0
        %v3010 = vadd.f32 %v2897, %v3009
        %3011 = vmatmul.f32.gmra.mxu0 %v1768
        %v3012 = vpop.f32.mrf.mxu0
        %v3013 = vadd.f32 %v2900, %v3012
        %3014 = vmatmul.f32.gmra.mxu0 %v1862
        %v3015 = vpop.f32.mrf.mxu0
        %v3016 = vadd.f32 %v2903, %v3015
        %3017 = vmatmul.f32.gmra.mxu0 %v1771
        %v3018 = vpop.f32.mrf.mxu0
        %v3019 = vadd.f32 %v2906, %v3018
        %3020 = vmatmul.f32.gmra.mxu0 %v1863
        %v3021 = vpop.f32.mrf.mxu0
        %v3022 = vadd.f32 %v2909, %v3021
        %3023 = vmatmul.f32.gmra.mxu0 %v1774
        %v3024 = vpop.f32.mrf.mxu0
        %v3025 = vadd.f32 %v2912, %v3024
        %3026 = vmatmul.f32.gmra.mxu0 %v1864
        %v3027 = vpop.f32.mrf.mxu0
        %v3028 = vadd.f32 %v2915, %v3027
        %3029 = vmatmul.f32.gmra.mxu0 %v1777
        %v3030 = vpop.f32.mrf.mxu0
        %v3031 = vadd.f32 %v2918, %v3030
        %3032 = vmatmul.f32.gmra.mxu0 %v1865
        %v3033 = vpop.f32.mrf.mxu0
        %v3034 = vadd.f32 %v2921, %v3033
        %3035 = vmatmul.f32.gmra.mxu0 %v1780
        %v3036 = vpop.f32.mrf.mxu0
        %v3037 = vadd.f32 %v2924, %v3036
        %3038 = vmatmul.f32.gmra.mxu0 %v1866
        %v3039 = vpop.f32.mrf.mxu0
        %v3040 = vadd.f32 %v2927, %v3039
        %3041 = vmatmul.f32.gmra.mxu0 %v1783
        %v3042 = vpop.f32.mrf.mxu0
        %v3043 = vadd.f32 %v2930, %v3042
        %3044 = vmatmul.f32.gmra.mxu0 %v1867
        %v3045 = vpop.f32.mrf.mxu0
        %v3046 = vadd.f32 %v2933, %v3045
        %3047 = vmatmul.f32.gmra.mxu0 %v1786
        %v3048 = vpop.f32.mrf.mxu0
        %v3049 = vadd.f32 %v2936, %v3048
        %3050 = vmatmul.f32.gmra.mxu0 %v1868
        %v3051 = vpop.f32.mrf.mxu0
        %v3052 = vadd.f32 %v2939, %v3051
        %3053 = vmatmul.f32.gmra.mxu0 %v1789
        %v3054 = vpop.f32.mrf.mxu0
        %v3055 = vadd.f32 %v2942, %v3054
        %3056 = vmatmul.f32.gmra.mxu0 %v1869
        %v3057 = vpop.f32.mrf.mxu0
        %v3058 = vadd.f32 %v2945, %v3057
        %3059 = vmatmul.f32.gmra.mxu0 %v1792
        %v3060 = vpop.f32.mrf.mxu0
        %v3061 = vadd.f32 %v2948, %v3060
        %3062 = vmatmul.f32.gmra.mxu0 %v1870
        %v3063 = vpop.f32.mrf.mxu0
        %v3064 = vadd.f32 %v2951, %v3063
        %3065 = vmatmul.f32.gmra.mxu0 %v1795
        %v3066 = vpop.f32.mrf.mxu0
        %v3067 = vadd.f32 %v2954, %v3066
        %3068 = vmatmul.f32.gmra.mxu0 %v1871
        %v3069 = vpop.f32.mrf.mxu0
        %v3070 = vadd.f32 %v2957, %v3069
        %3071 = vmatmul.f32.gmra.mxu0 %v1798
        %v3072 = vpop.f32.mrf.mxu0
        %v3073 = vadd.f32 %v2960, %v3072
        %3074 = vmatmul.f32.gmra.mxu0 %v1872
        %v3075 = vpop.f32.mrf.mxu0
        %v3076 = vadd.f32 %v2963, %v3075
        %3077 = vmatmul.f32.gmra.mxu0 %v1801
        %v3078 = vpop.f32.mrf.mxu0
        %v3079 = vadd.f32 %v2966, %v3078
        %3080 = vmatmul.f32.gmra.mxu0 %v1873
        %v3081 = vpop.f32.mrf.mxu0
        %v3082 = vadd.f32 %v2969, %v3081
        %3083 = vmatmul.f32.gmra.mxu0 %v1804
        %v3084 = vpop.f32.mrf.mxu0
        %v3085 = vadd.f32 %v2972, %v3084
        %3086 = vmatmul.f32.gmra.mxu0 %v1874
        %v3087 = vpop.f32.mrf.mxu0
        %v3088 = vadd.f32 %v2975, %v3087
        %3089 = vmatmul.f32.gmra.mxu0 %v1807
        %v3090 = vpop.f32.mrf.mxu0
        %v3091 = vadd.f32 %v2978, %v3090
        %3092 = vmatmul.f32.gmra.mxu0 %v1858
        %v3093 = vpop.f32.mrf.mxu0
        %v3094 = vadd.f32 %v2981, %v3093
        %3095 = vmatmul.f32.gmra.mxu0 %v1759
        %v3096 = vpop.f32.mrf.mxu0
        %v3097 = vadd.f32 %v2984, %v3096
        %3098 = vdwg.mxu0
        %3099 = vmatpush.msra.mxu0 %v2291
        %3100 = vmatpush.msra.mxu0 %v2290
        %3101 = vmatpush.msra.mxu0 %v2289
        %3102 = vmatpush.msra.mxu0 %v2288
        %3103 = vmatpush.msra.mxu0 %v2287
        %3104 = vmatpush.msra.mxu0 %v2286
        %3105 = vmatpush.msra.mxu0 %v2285
        %3106 = vmatpush.msra.mxu0 %v2284
        %3107 = vmatpush.msra.mxu0 %v2283
        %3108 = vmatpush.msra.mxu0 %v2282
        %3109 = vmatpush.msra.mxu0 %v2281
        %3110 = vmatpush.msra.mxu0 %v2280
        %3111 = vmatpush.msra.mxu0 %v2279
        %3112 = vmatpush.msra.mxu0 %v2278
        %3113 = vmatpush.msra.mxu0 %v2277
        %3114 = vmatpush.msra.mxu0 %v2276
        %3115 = vmatmul.f32.gmra.mxu0 %v1936
        %v3116 = vpop.f32.mrf.mxu0
        %v3117 = vadd.f32 %v3004, %v3116
        %3118 = vmatmul.f32.gmra.mxu0 %v1938
        %v3119 = vpop.f32.mrf.mxu0
        %v3120 = vadd.f32 %v3007, %v3119
        %3121 = vmatmul.f32.gmra.mxu0 %v1941
        %v3122 = vpop.f32.mrf.mxu0
        %v3123 = vadd.f32 %v3010, %v3122
        %3124 = vmatmul.f32.gmra.mxu0 %v1943
        %v3125 = vpop.f32.mrf.mxu0
        %v3126 = vadd.f32 %v3013, %v3125
        %3127 = vmatmul.f32.gmra.mxu0 %v1946
        %v3128 = vpop.f32.mrf.mxu0
        %v3129 = vadd.f32 %v3016, %v3128
        %3130 = vmatmul.f32.gmra.mxu0 %v1948
        %v3131 = vpop.f32.mrf.mxu0
        %v3132 = vadd.f32 %v3019, %v3131
        %3133 = vmatmul.f32.gmra.mxu0 %v1951
        %v3134 = vpop.f32.mrf.mxu0
        %v3135 = vadd.f32 %v3022, %v3134
        %3136 = vmatmul.f32.gmra.mxu0 %v1953
        %v3137 = vpop.f32.mrf.mxu0
        %v3138 = vadd.f32 %v3025, %v3137
        %3139 = vmatmul.f32.gmra.mxu0 %v1956
        %v3140 = vpop.f32.mrf.mxu0
        %v3141 = vadd.f32 %v3028, %v3140
        %3142 = vmatmul.f32.gmra.mxu0 %v1958
        %v3143 = vpop.f32.mrf.mxu0
        %v3144 = vadd.f32 %v3031, %v3143
        %3145 = vmatmul.f32.gmra.mxu0 %v1961
        %v3146 = vpop.f32.mrf.mxu0
        %v3147 = vadd.f32 %v3034, %v3146
        %3148 = vmatmul.f32.gmra.mxu0 %v1963
        %v3149 = vpop.f32.mrf.mxu0
        %v3150 = vadd.f32 %v3037, %v3149
        %3151 = vmatmul.f32.gmra.mxu0 %v1966
        %v3152 = vpop.f32.mrf.mxu0
        %v3153 = vadd.f32 %v3040, %v3152
        %3154 = vmatmul.f32.gmra.mxu0 %v1968
        %v3155 = vpop.f32.mrf.mxu0
        %v3156 = vadd.f32 %v3043, %v3155
        %3157 = vmatmul.f32.gmra.mxu0 %v1971
        %v3158 = vpop.f32.mrf.mxu0
        %v3159 = vadd.f32 %v3046, %v3158
        %3160 = vmatmul.f32.gmra.mxu0 %v1973
        %v3161 = vpop.f32.mrf.mxu0
        %v3162 = vadd.f32 %v3049, %v3161
        %3163 = vmatmul.f32.gmra.mxu0 %v1976
        %v3164 = vpop.f32.mrf.mxu0
        %v3165 = vadd.f32 %v3052, %v3164
        %3166 = vmatmul.f32.gmra.mxu0 %v1978
        %v3167 = vpop.f32.mrf.mxu0
        %v3168 = vadd.f32 %v3055, %v3167
        %3169 = vmatmul.f32.gmra.mxu0 %v1981
        %v3170 = vpop.f32.mrf.mxu0
        %v3171 = vadd.f32 %v3058, %v3170
        %3172 = vmatmul.f32.gmra.mxu0 %v1983
        %v3173 = vpop.f32.mrf.mxu0
        %v3174 = vadd.f32 %v3061, %v3173
        %3175 = vmatmul.f32.gmra.mxu0 %v1986
        %v3176 = vpop.f32.mrf.mxu0
        %v3177 = vadd.f32 %v3064, %v3176
        %3178 = vmatmul.f32.gmra.mxu0 %v1988
        %v3179 = vpop.f32.mrf.mxu0
        %v3180 = vadd.f32 %v3067, %v3179
        %3181 = vmatmul.f32.gmra.mxu0 %v1991
        %v3182 = vpop.f32.mrf.mxu0
        %v3183 = vadd.f32 %v3070, %v3182
        %3184 = vmatmul.f32.gmra.mxu0 %v1993
        %v3185 = vpop.f32.mrf.mxu0
        %v3186 = vadd.f32 %v3073, %v3185
        %3187 = vmatmul.f32.gmra.mxu0 %v1996
        %v3188 = vpop.f32.mrf.mxu0
        %v3189 = vadd.f32 %v3076, %v3188
        %3190 = vmatmul.f32.gmra.mxu0 %v1998
        %v3191 = vpop.f32.mrf.mxu0
        %v3192 = vadd.f32 %v3079, %v3191
        %3193 = vmatmul.f32.gmra.mxu0 %v2001
        %v3194 = vpop.f32.mrf.mxu0
        %v3195 = vadd.f32 %v3082, %v3194
        %3196 = vmatmul.f32.gmra.mxu0 %v2003
        %v3197 = vpop.f32.mrf.mxu0
        %v3198 = vadd.f32 %v3085, %v3197
        %3199 = vmatmul.f32.gmra.mxu0 %v2152
        %v3200 = vpop.f32.mrf.mxu0
        %v3201 = vadd.f32 %v3088, %v3200
        %3202 = vmatmul.f32.gmra.mxu0 %v2154
        %v3203 = vpop.f32.mrf.mxu0
        %v3204 = vadd.f32 %v3091, %v3203
        %3205 = vmatmul.f32.gmra.mxu0 %v1926
        %v3206 = vpop.f32.mrf.mxu0
        %v3207 = vadd.f32 %v3094, %v3206
        %3208 = vmatmul.f32.gmra.mxu0 %v1928
        %v3209 = vpop.f32.mrf.mxu0
        %v3210 = vadd.f32 %v3097, %v3209
        %3211 = vdwg.mxu0
        %3212 = vmatpush.msra.mxu0 %v2307
        %3213 = vmatpush.msra.mxu0 %v2306
        %3214 = vmatpush.msra.mxu0 %v2305
        %3215 = vmatpush.msra.mxu0 %v2304
        %3216 = vmatpush.msra.mxu0 %v2303
        %3217 = vmatpush.msra.mxu0 %v2302
        %3218 = vmatpush.msra.mxu0 %v2301
        %3219 = vmatpush.msra.mxu0 %v2300
        %3220 = vmatpush.msra.mxu0 %v2299
        %3221 = vmatpush.msra.mxu0 %v2298
        %3222 = vmatpush.msra.mxu0 %v2297
        %3223 = vmatpush.msra.mxu0 %v2296
        %3224 = vmatpush.msra.mxu0 %v2295
        %3225 = vmatpush.msra.mxu0 %v2294
        %3226 = vmatpush.msra.mxu0 %v2293
        %3227 = vmatpush.msra.mxu0 %v2292
        %3228 = vmatmul.f32.gmra.mxu0 %v2048
        %v3229 = vpop.f32.mrf.mxu0
        %v3230 = vadd.f32 %v3117, %v3229
        %3231 = vmatmul.f32.gmra.mxu0 %v2050
        %v3232 = vpop.f32.mrf.mxu0
        %v3233 = vadd.f32 %v3120, %v3232
        %3234 = vmatmul.f32.gmra.mxu0 %v2053
        %v3235 = vpop.f32.mrf.mxu0
        %v3236 = vadd.f32 %v3123, %v3235
        %3237 = vmatmul.f32.gmra.mxu0 %v2055
        %v3238 = vpop.f32.mrf.mxu0
        %v3239 = vadd.f32 %v3126, %v3238
        %3240 = vmatmul.f32.gmra.mxu0 %v2058
        %v3241 = vpop.f32.mrf.mxu0
        %v3242 = vadd.f32 %v3129, %v3241
        %3243 = vmatmul.f32.gmra.mxu0 %v2060
        %v3244 = vpop.f32.mrf.mxu0
        %v3245 = vadd.f32 %v3132, %v3244
        %3246 = vmatmul.f32.gmra.mxu0 %v2063
        %v3247 = vpop.f32.mrf.mxu0
        %v3248 = vadd.f32 %v3135, %v3247
        %3249 = vmatmul.f32.gmra.mxu0 %v2065
        %v3250 = vpop.f32.mrf.mxu0
        %v3251 = vadd.f32 %v3138, %v3250
        %3252 = vmatmul.f32.gmra.mxu0 %v2068
        %v3253 = vpop.f32.mrf.mxu0
        %v3254 = vadd.f32 %v3141, %v3253
        %3255 = vmatmul.f32.gmra.mxu0 %v2070
        %v3256 = vpop.f32.mrf.mxu0
        %v3257 = vadd.f32 %v3144, %v3256
        %3258 = vmatmul.f32.gmra.mxu0 %v2073
        %v3259 = vpop.f32.mrf.mxu0
        %v3260 = vadd.f32 %v3147, %v3259
        %3261 = vmatmul.f32.gmra.mxu0 %v2075
        %v3262 = vpop.f32.mrf.mxu0
        %v3263 = vadd.f32 %v3150, %v3262
        %3264 = vmatmul.f32.gmra.mxu0 %v2078
        %v3265 = vpop.f32.mrf.mxu0
        %v3266 = vadd.f32 %v3153, %v3265
        %3267 = vmatmul.f32.gmra.mxu0 %v2080
        %v3268 = vpop.f32.mrf.mxu0
        %v3269 = vadd.f32 %v3156, %v3268
        %3270 = vmatmul.f32.gmra.mxu0 %v2083
        %v3271 = vpop.f32.mrf.mxu0
        %v3272 = vadd.f32 %v3159, %v3271
        %3273 = vmatmul.f32.gmra.mxu0 %v2085
        %v3274 = vpop.f32.mrf.mxu0
        %v3275 = vadd.f32 %v3162, %v3274
        %3276 = vmatmul.f32.gmra.mxu0 %v2088
        %v3277 = vpop.f32.mrf.mxu0
        %v3278 = vadd.f32 %v3165, %v3277
        %3279 = vmatmul.f32.gmra.mxu0 %v2090
        %v3280 = vpop.f32.mrf.mxu0
        %v3281 = vadd.f32 %v3168, %v3280
        %3282 = vmatmul.f32.gmra.mxu0 %v2093
        %v3283 = vpop.f32.mrf.mxu0
        %v3284 = vadd.f32 %v3171, %v3283
        %3285 = vmatmul.f32.gmra.mxu0 %v2095
        %v3286 = vpop.f32.mrf.mxu0
        %v3287 = vadd.f32 %v3174, %v3286
        %3288 = vmatmul.f32.gmra.mxu0 %v2098
        %v3289 = vpop.f32.mrf.mxu0
        %v3290 = vadd.f32 %v3177, %v3289
        %3291 = vmatmul.f32.gmra.mxu0 %v2100
        %v3292 = vpop.f32.mrf.mxu0
        %v3293 = vadd.f32 %v3180, %v3292
        %3294 = vmatmul.f32.gmra.mxu0 %v2103
        %v3295 = vpop.f32.mrf.mxu0
        %v3296 = vadd.f32 %v3183, %v3295
        %3297 = vmatmul.f32.gmra.mxu0 %v2105
        %v3298 = vpop.f32.mrf.mxu0
        %v3299 = vadd.f32 %v3186, %v3298
        %3300 = vmatmul.f32.gmra.mxu0 %v2108
        %v3301 = vpop.f32.mrf.mxu0
        %v3302 = vadd.f32 %v3189, %v3301
        %3303 = vmatmul.f32.gmra.mxu0 %v2110
        %v3304 = vpop.f32.mrf.mxu0
        %v3305 = vadd.f32 %v3192, %v3304
        %3306 = vmatmul.f32.gmra.mxu0 %v2113
        %v3307 = vpop.f32.mrf.mxu0
        %v3308 = vadd.f32 %v3195, %v3307
        %3309 = vmatmul.f32.gmra.mxu0 %v2115
        %v3310 = vpop.f32.mrf.mxu0
        %v3311 = vadd.f32 %v3198, %v3310
        %3312 = vmatmul.f32.gmra.mxu0 %v2159
        %v3313 = vpop.f32.mrf.mxu0
        %v3314 = vadd.f32 %v3201, %v3313
        %3315 = vmatmul.f32.gmra.mxu0 %v2161
        %v3316 = vpop.f32.mrf.mxu0
        %v3317 = vadd.f32 %v3204, %v3316
        %3318 = vmatmul.f32.gmra.mxu0 %v2038
        %v3319 = vpop.f32.mrf.mxu0
        %v3320 = vadd.f32 %v3207, %v3319
        %3321 = vmatmul.f32.gmra.mxu0 %v2040
        %v3322 = vpop.f32.mrf.mxu0
        %v3323 = vadd.f32 %v3210, %v3322
        %3324 = vdwg.mxu0
        %v3325 = vmax.f32 %v3230, 0.0
        %v3326 = vmax.f32 %v3233, 0.0
        %v3327 = vmax.f32 %v3236, 0.0
        %v3328 = vmax.f32 %v3239, 0.0
        %v3329 = vmax.f32 %v3242, 0.0
        %v3330 = vmax.f32 %v3245, 0.0
        %v3331 = vmax.f32 %v3248, 0.0
        %v3332 = vmax.f32 %v3251, 0.0
        %v3333 = vmax.f32 %v3254, 0.0
        %v3334 = vmax.f32 %v3257, 0.0
        %v3335 = vmax.f32 %v3260, 0.0
        %v3336 = vmax.f32 %v3263, 0.0
        %v3337 = vmax.f32 %v3266, 0.0
        %v3338 = vmax.f32 %v3269, 0.0
        %v3339 = vmax.f32 %v3272, 0.0
        %v3340 = vmax.f32 %v3275, 0.0
        %v3341 = vmax.f32 %v3278, 0.0
        %v3342 = vmax.f32 %v3281, 0.0
        %v3343 = vmax.f32 %v3284, 0.0
        %v3344 = vmax.f32 %v3287, 0.0
        %v3345 = vmax.f32 %v3290, 0.0
        %v3346 = vmax.f32 %v3293, 0.0
        %v3347 = vmax.f32 %v3296, 0.0
        %v3348 = vmax.f32 %v3299, 0.0
        %v3349 = vmax.f32 %v3302, 0.0
        %v3350 = vmax.f32 %v3305, 0.0
        %v3351 = vmax.f32 %v3308, 0.0
        %v3352 = vmax.f32 %v3311, 0.0
        %v3353 = vmax.f32 %v3314, 0.0
        %v3354 = vmax.f32 %v3317, 0.0
        %v3355 = vmax.f32 %v3320, 0.0
        %v3356 = vmax.f32 %v3323, 0.0
        %3357 = vst [vmem:[%s163] sm:$0xff] %v3325
        %3358 = vst [vmem:[%s163 + $0x8] sm:$0xff] %v3326
        %3359 = vst [vmem:[%s163 + $0x10] sm:$0xff] %v3327
        %3360 = vst [vmem:[%s163 + $0x18] sm:$0xff] %v3328
        %3361 = vst [vmem:[%s163 + $0x20] sm:$0xff] %v3329
        %3362 = vst [vmem:[%s163 + $0x28] sm:$0xff] %v3330
        %3363 = vst [vmem:[%s163 + $0x30] sm:$0xff] %v3331
        %3364 = vst [vmem:[%s163 + $0x38] sm:$0xff] %v3332
        %3365 = vst [vmem:[%s163 + $0x40] sm:$0xff] %v3333
        %3366 = vst [vmem:[%s163 + $0x48] sm:$0xff] %v3334
        %3367 = vst [vmem:[%s163 + $0x50] sm:$0xff] %v3335
        %3368 = vst [vmem:[%s163 + $0x58] sm:$0xff] %v3336
        %3369 = vst [vmem:[%s163 + $0x60] sm:$0xff] %v3337
        %3370 = vst [vmem:[%s163 + $0x68] sm:$0xff] %v3338
        %3371 = vst [vmem:[%s163 + $0x70] sm:$0xff] %v3339
        %3372 = vst [vmem:[%s163 + $0x78] sm:$0xff] %v3340
        %3373 = vst [vmem:[%s163 + $0x80] sm:$0xff] %v3341
        %3374 = vst [vmem:[%s163 + $0x88] sm:$0xff] %v3342
        %3375 = vst [vmem:[%s163 + $0x90] sm:$0xff] %v3343
        %3376 = vst [vmem:[%s163 + $0x98] sm:$0xff] %v3344
        %3377 = vst [vmem:[%s163 + $0xa0] sm:$0xff] %v3345
        %3378 = vst [vmem:[%s163 + $0xa8] sm:$0xff] %v3346
        %3379 = vst [vmem:[%s163 + $0xb0] sm:$0xff] %v3347
        %3380 = vst [vmem:[%s163 + $0xb8] sm:$0xff] %v3348
        %3381 = vst [vmem:[%s163 + $0xc0] sm:$0xff] %v3349
        %3382 = vst [vmem:[%s163 + $0xc8] sm:$0xff] %v3350
        %3383 = vst [vmem:[%s163 + $0xd0] sm:$0xff] %v3351
        %3384 = vst [vmem:[%s163 + $0xd8] sm:$0xff] %v3352
        %3385 = vst [vmem:[%s163 + $0xe0] sm:$0xff] %v3353
        %3386 = vst [vmem:[%s163 + $0xe8] sm:$0xff] %v3354
        %3387 = vst [vmem:[%s163 + $0xf0] sm:$0xff] %v3355
        %3388 = vst [vmem:[%s163 + $0xf8] sm:$0xff] %v3356
        %s3389 = sand.u32 %s93, 1
        %s3390 = scalar_lea.sflag [#allocation3], %s3389
        %s3391 = sand.u32 %s93, 1
        %s3392 = smul.addr %s3391, 256
        %s3393 = scalar_lea.vmem [#allocation2], %s3392
        // Predicated region
        $region33: #{residual_block.1} parent=31 // pred_check
          %p3394 = pneg %p103
        $region34: #{residual_block.1} parent=31 // pred_check_branch
          %3396 = sbr.rel (%p3394) target = $region36
        $region35: #{residual_block.1} parent=31 // pred_region
          %3398 = vsyncadd %s3390, 0
          %s3399 = smul.addr %s17, 32
          %s3400 = smul.addr %s3399, 8
          %s3401 = scalar_lea.hbm %s3, %s3400
          %s3402 = sshll.u32 %s3393, 4
          %s3403 = int_to_ptr.vmem [resolvable:$true] %s3402
          %s3404 = sshll.u32 %s3401, 4
          %s3405 = int_to_ptr.hbm [resolvable:$true] %s3404
          %3410 = dma.vmem_to_hbm [thread:$0]  %s3403, 4096, %s3405, %s3390, 128, 128, 8
        $region36: #{residual_block.1} parent=31 // pred_fallthru
          _
      $region32: #{residual_block.1} parent=5 // pred_fallthru
        _
      %p3411 = scmp.le.s32.totalorder 2, %s12
      // Predicated region
      $region37: #{residual_block.1} parent=5 // pred_check
        %p3412 = pneg %p3411
      $region38: #{residual_block.1} parent=5 // pred_check_branch
        %3414 = sbr.rel (%p3412) target = $region40
      $region39: #{residual_block.1} parent=5 // pred_region
        %s3415 = ssub.s32 %s12, 2
        // Predicated region
        $region41: #{residual_block.1} parent=39 // pred_check
          %p3416 = pneg %p109
        $region42: #{residual_block.1} parent=39 // pred_check_branch
          %3418 = sbr.rel (%p3416) target = $region44
        $region43: #{residual_block.1} parent=39 // pred_region
          %s3419 = sand.u32 %s94, 1
          %s3420 = scalar_lea.sflag [#allocation3], %s3419
          %s3421 = sand.u32 %s94, 1
          %s3422 = smul.addr %s3421, 256
          %s3423 = scalar_lea.vmem [#allocation2], %s3422
          %3425 = dma.done %s3420, 4096
        $region44: #{residual_block.1} parent=39 // pred_fallthru
          _
      $region40: #{residual_block.1} parent=5 // pred_fallthru
        _
    $region6: #{residual_block.1} parent=1 // loop_footer
      %s16 = sadd.s32 1, %s12
    $region7: #{residual_block.1} parent=1 // loop_footer_branch
      %11 = sbr.rel target = $region3
    $region8: #{residual_block.1} parent=1 // loop_exit
      _
    %3426 = vsyncpa [#allocation3], 1
    %s3427 = scalar_lea.sflag [#allocation3], 1
    %3428 = vsyncpa %s3427, 1

</llo_original>
